<compile_context>
chip_gen: v5e
topology: v5e:2x2
jax: 0.10.0
libtpu: 0.0.40
codegen_flags: <defaults>
</compile_context>

<pallas_src>
import functools

import jax
import jax.numpy as jnp
from jax.experimental import pallas as pl
from jax.experimental.pallas import tpu as pltpu


def _round_up(x, m):
    return (x + m - 1) // m * m


# ----------------------------------------------------------------------------
# Fused GEMM Pallas kernels:  pre_act(A) @ B  (+ colbias, + post_act) + BN stats
# ----------------------------------------------------------------------------
def _pre_act_bf16(a_ref, pre_act):
    """Input activation fused into the GEMM prologue (bf16 in -> bf16 out).
    Kept in f32 so it lowers identically on v5e (no bf16 VALU there)."""
    if pre_act == "none":
        return a_ref[...]
    a = a_ref[...].astype(jnp.float32)
    if pre_act == "relu":
        a = jnp.maximum(a, 0.0)
    else:  # leaky_relu(0.2)
        a = jnp.where(a > 0.0, a, 0.2 * a)
    return a.astype(jnp.bfloat16)


def _epilogue(acc, cb, post_act, y_ref, st_ref, i, tm, m_total):
    """Column bias + output activation + store + per-column BN stat partials."""
    acc = acc + cb
    if post_act == "tanh":
        acc = jnp.tanh(acc)
    y_ref[...] = acc.astype(y_ref.dtype)

    # Per-channel partial sum / sum-of-squares for training-mode BatchNorm,
    # masking rows past the true M extent of a partial tile.
    nrow, ncol = acc.shape
    row = jax.lax.broadcasted_iota(jnp.int32, (nrow, ncol), 0)
    accm = jnp.where(row < (m_total - i * tm), acc, 0.0)
    psum = jnp.sum(accm, axis=0, keepdims=True)
    psq = jnp.sum(accm * accm, axis=0, keepdims=True)
    r8 = jax.lax.broadcasted_iota(jnp.int32, (8, ncol), 0)
    st_ref[...] = jnp.where(r8 == 0, jnp.broadcast_to(psum, (8, ncol)),
                            jnp.where(r8 == 1, jnp.broadcast_to(psq, (8, ncol)),
                                      0.0))


def _gemm_kernel_k1(a_ref, b_ref, cb_ref, y_ref, st_ref, *,
                    pre_act, post_act, m_total, tm):
    """Single K block: write straight into the output block (no accumulator
    scratch, zero-init or read-modify-write)."""
    i = pl.program_id(0)
    a16 = _pre_act_bf16(a_ref, pre_act)
    acc = jnp.dot(a16, b_ref[...], preferred_element_type=jnp.float32)
    _epilogue(acc, cb_ref[...], post_act, y_ref, st_ref, i, tm, m_total)


def _gemm_kernel_acc(a_ref, b_ref, cb_ref, y_ref, st_ref, acc_ref, *,
                     pre_act, post_act, m_total, tm, kt):
    """K-tiled path: f32 VMEM accumulator, k as the innermost grid axis."""
    i = pl.program_id(0)
    k = pl.program_id(2)

    @pl.when(k == 0)
    def _():
        acc_ref[...] = jnp.zeros_like(acc_ref)

    a16 = _pre_act_bf16(a_ref, pre_act)
    acc_ref[...] += jnp.dot(a16, b_ref[...], preferred_element_type=jnp.float32)

    @pl.when(k == kt - 1)
    def _():
        _epilogue(acc_ref[...], cb_ref[...], post_act, y_ref, st_ref,
                  i, tm, m_total)


def fused_gemm(a, b, colbias, *, pre_act="none", post_act="none",
               out_dtype=jnp.bfloat16):
    """(M, K)bf16 @ (K, Ncp)bf16 -> (M, Ncp)out_dtype with f32 MXU accumulation.

    Ncp (and colbias) must already be lane-padded to a multiple of 128 so every
    store is a full, unmasked 128-lane store.  Fuses: input activation, column
    bias + output activation, and per-column sum / sum-of-squares partials
    (returned reduced over M tiles) for training-mode BatchNorm.
    """
    M, K = a.shape
    K2, Ncp = b.shape
    assert K == K2 and colbias.shape == (1, Ncp) and Ncp % 128 == 0

    # M tile: feed the MXU with 128/256 rows per step when M allows it.
    if M >= 256:
        tm = 256
    elif M >= 128:
        tm = 128
    else:
        tm = _round_up(M, 8)
    mt = (M + tm - 1) // tm

    # N tile: full extent (lane-dense) unless the padded width is large, then
    # tile to 512 lanes to bound VMEM (v7x has only 64 MiB physical).
    tn = Ncp if Ncp <= 512 else 512
    while Ncp % tn != 0:
        tn //= 2                    # Ncp is a multiple of 128 -> stops at >=128
    nt = Ncp // tn

    # K tile: a single full-extent block whenever reasonable so the (small)
    # weight matrix is DMA'd once and stays VMEM-resident across M/N tiles.
    if K <= 2048:
        tk = K
    else:
        tk = K
        for cand in (2048, 1536, 1024, 768, 512, 384, 256, 128):
            if K % cand == 0:
                tk = cand
                break
    assert K % tk == 0, "K tiling must divide K exactly"
    kt = K // tk

    # VMEM budget from the actual (double-buffered) block sizes.
    out_bytes = jnp.dtype(out_dtype).itemsize
    vmem_bytes = 2 * (tm * tk * 2 + tk * tn * 2 + tn * 4
                      + tm * tn * out_bytes + 8 * tn * 4)
    vmem_bytes += tm * tn * 4       # f32 accumulator (scratch / vregs)
    vmem_limit = int(min(64 * 1024 * 1024, max(8 * 1024 * 1024, 2 * vmem_bytes)))

    out_shape = (jax.ShapeDtypeStruct((M, Ncp), out_dtype),
                 jax.ShapeDtypeStruct((mt * 8, Ncp), jnp.float32))

    if kt == 1:
        kernel = functools.partial(_gemm_kernel_k1, pre_act=pre_act,
                                   post_act=post_act, m_total=M, tm=tm)
        y, st = pl.pallas_call(
            kernel,
            out_shape=out_shape,
            grid=(mt, nt),
            in_specs=[
                pl.BlockSpec((tm, K), lambda i, n: (i, 0)),
                pl.BlockSpec((K, tn), lambda i, n: (0, n)),
                pl.BlockSpec((1, tn), lambda i, n: (0, n)),
            ],
            out_specs=(
                pl.BlockSpec((tm, tn), lambda i, n: (i, n)),
                pl.BlockSpec((8, tn), lambda i, n: (i, n)),
            ),
            compiler_params=pltpu.CompilerParams(
                dimension_semantics=("parallel", "parallel"),
                vmem_limit_bytes=vmem_limit),
        )(a, b, colbias)
    else:
        kernel = functools.partial(_gemm_kernel_acc, pre_act=pre_act,
                                   post_act=post_act, m_total=M, tm=tm, kt=kt)
        y, st = pl.pallas_call(
            kernel,
            out_shape=out_shape,
            grid=(mt, nt, kt),
            in_specs=[
                pl.BlockSpec((tm, tk), lambda i, n, k: (i, k)),
                pl.BlockSpec((tk, tn), lambda i, n, k: (k, n)),
                pl.BlockSpec((1, tn), lambda i, n, k: (0, n)),
            ],
            out_specs=(
                pl.BlockSpec((tm, tn), lambda i, n, k: (i, n)),
                pl.BlockSpec((8, tn), lambda i, n, k: (i, n)),
            ),
            scratch_shapes=[pltpu.VMEM((tm, tn), jnp.float32)],
            compiler_params=pltpu.CompilerParams(
                dimension_semantics=("parallel", "parallel", "arbitrary"),
                vmem_limit_bytes=vmem_limit),
        )(a, b, colbias)

    st = st.reshape(mt, 8, Ncp)
    return y, st[:, 0, :].sum(axis=0), st[:, 1, :].sum(axis=0)


# ----------------------------------------------------------------------------
# Conv / ConvTranspose wrappers (NHWC, im2col glue in jnp, GEMM in Pallas)
# ----------------------------------------------------------------------------
def conv_down(x, wmat, cb, cout, pre_act):
    """Conv2d(k=4, s=2, p=1, bias=False) on an NHWC input via an im2col GEMM.
    The LeakyReLU/ReLU that precedes it in the PyTorch Sequential is fused into
    the GEMM prologue (act(0) == 0, so the zero spatial padding stays correct).
    """
    N, H, W, C = x.shape
    Ho, Wo = H // 2, W // 2
    xp = jnp.pad(x.astype(jnp.bfloat16), ((0, 0), (1, 1), (1, 1), (0, 0)))
    cols = [xp[:, i:i + 2 * Ho:2, j:j + 2 * Wo:2, :]
            for i in range(4) for j in range(4)]
    patches = jnp.concatenate(cols, axis=-1).reshape(N * Ho * Wo, 16 * C)
    y, s, ss = fused_gemm(patches, wmat, cb, pre_act=pre_act, post_act="none",
                          out_dtype=jnp.bfloat16)
    y = y[:, :cout].reshape(N, Ho, Wo, cout)
    return y, s[:cout], ss[:cout], N * Ho * Wo


def convT_up(x, wmat, cb, cout, pre_act, post_act, out_dtype):
    """ConvTranspose2d(k=4, s=2, p=1) on an NHWC input via the sub-pixel
    decomposition: one 3x3/stride-1 im2col GEMM producing the 4 output-parity
    column groups, then depth-to-space."""
    N, H, W, C = x.shape
    xp = jnp.pad(x.astype(jnp.bfloat16), ((0, 0), (1, 1), (1, 1), (0, 0)))
    cols = [xp[:, dr:dr + H, dc:dc + W, :] for dr in range(3) for dc in range(3)]
    patches = jnp.concatenate(cols, axis=-1).reshape(N * H * W, 9 * C)
    y, s, ss = fused_gemm(patches, wmat, cb, pre_act=pre_act,
                          post_act=post_act, out_dtype=out_dtype)
    # depth-to-space: column (a*2 + b)*cout + co -> pixel (2p + a, 2q + b, co)
    y = y[:, :4 * cout].reshape(N, H, W, 2, 2, cout)
    y = y.transpose(0, 1, 3, 2, 4, 5).reshape(N, 2 * H, 2 * W, cout)
    # fold the 4 parity groups' stats into per-output-channel stats
    s = s[:4 * cout].reshape(4, cout).sum(axis=0)
    ss = ss[:4 * cout].reshape(4, cout).sum(axis=0)
    return y, s, ss, N * (2 * H) * (2 * W)


def bn_apply(y, s, ss, count, gamma, beta, eps=1e-5):
    """Training-mode BatchNorm2d from the batch statistics produced inside the
    GEMM kernel; emitted as a bf16 per-channel multiply-add that XLA fuses with
    the next layer's patch gather (no extra f32 full-tensor pass)."""
    mean = s / count
    var = jnp.maximum(ss / count - mean * mean, 0.0)
    scale = gamma * jax.lax.rsqrt(var + eps)
    shift = beta - mean * scale
    return (y.astype(jnp.float32) * scale + shift).astype(jnp.bfloat16)


# ----------------------------------------------------------------------------
# Parameters (shapes exactly as the PyTorch module __init__ creates them)
# ----------------------------------------------------------------------------
def init_params(key, in_nc, out_nc, ngf):
    ks = iter(jax.random.split(key, 8))

    def cw(k, co, ci):      # Conv2d weight (Cout, Cin, 4, 4), bias=False (BatchNorm)
        return jax.random.normal(k, (co, ci, 4, 4), jnp.float32) / jnp.sqrt(ci * 16.0)

    def tw(k, ci, co):      # ConvTranspose2d weight (Cin, Cout, 4, 4)
        return jax.random.normal(k, (ci, co, 4, 4), jnp.float32) / jnp.sqrt(ci * 16.0)

    p = {}
    # outermost block (outer_nc=out_nc, inner_nc=ngf, input_nc=in_nc)
    p["w_down_o"] = cw(next(ks), ngf, in_nc)
    p["w_up_o"] = tw(next(ks), ngf * 2, out_nc)
    p["bias_up_o"] = 0.1 * jax.random.normal(next(ks), (out_nc,), jnp.float32)
    # middle block (outer_nc=ngf, inner_nc=2*ngf)
    p["w_down_m"] = cw(next(ks), ngf * 2, ngf)
    p["g_down_m"] = jnp.ones((ngf * 2,), jnp.float32)
    p["b_down_m"] = jnp.zeros((ngf * 2,), jnp.float32)
    p["w_up_m"] = tw(next(ks), ngf * 4, ngf)
    p["g_up_m"] = jnp.ones((ngf,), jnp.float32)
    p["b_up_m"] = jnp.zeros((ngf,), jnp.float32)
    # innermost block (outer_nc=2*ngf, inner_nc=4*ngf)
    p["w_down_i"] = cw(next(ks), ngf * 4, ngf * 2)
    p["w_up_i"] = tw(next(ks), ngf * 4, ngf * 2)
    p["g_up_i"] = jnp.ones((ngf * 2,), jnp.float32)
    p["b_up_i"] = jnp.zeros((ngf * 2,), jnp.float32)
    return p


def _pack_conv_weight(w):
    """(Cout, Cin, 4, 4) Conv2d weight -> (16*Cin, Ncp) bf16 GEMM matrix with
    the column dimension zero-padded to a multiple of 128 (lane-dense stores),
    plus a matching all-zero column bias."""
    Cout, Cin = w.shape[0], w.shape[1]
    wmat = jnp.transpose(w, (2, 3, 1, 0)).reshape(16 * Cin, Cout)
    Ncp = _round_up(Cout, 128)
    wmat = jnp.pad(wmat, ((0, 0), (0, Ncp - Cout))).astype(jnp.bfloat16)
    return wmat, jnp.zeros((1, Ncp), jnp.float32)


def _pack_convT_weight(w, bias=None):
    """(Cin, Cout, 4, 4) ConvTranspose2d weight -> (9*Cin, Ncp) bf16 matrix for
    the sub-pixel (3x3 stride-1 conv + depth-to-space) form of k=4, s=2, p=1,
    column-padded to a multiple of 128, plus the matching column bias."""
    Cin, Cout = w.shape[0], w.shape[1]
    m = jnp.zeros((3, 3, Cin, 2, 2, Cout), jnp.float32)
    for dr in range(3):
        for dc in range(3):
            for a in range(2):
                for b in range(2):
                    kh, kw = 3 + a - 2 * dr, 3 + b - 2 * dc
                    if 0 <= kh <= 3 and 0 <= kw <= 3:
                        m = m.at[dr, dc, :, a, b, :].set(w[:, :, kh, kw])
    wmat = m.reshape(9 * Cin, 4 * Cout)
    Ncp = _round_up(4 * Cout, 128)
    wmat = jnp.pad(wmat, ((0, 0), (0, Ncp - 4 * Cout))).astype(jnp.bfloat16)
    if bias is None:
        cb = jnp.zeros((1, Ncp), jnp.float32)
    else:
        cb = jnp.pad(jnp.tile(bias, 4), (0, Ncp - 4 * Cout))
        cb = cb.reshape(1, Ncp).astype(jnp.float32)
    return wmat, cb


def prepare_params(p):
    """One-time host-side weight packing, run OUTSIDE the jitted forward, so no
    per-call weight repacking / .at[].set scatter chains surround the Pallas
    calls."""
    q = {}
    q["w_down_o"], q["cb_down_o"] = _pack_conv_weight(p["w_down_o"])
    q["w_down_m"], q["cb_down_m"] = _pack_conv_weight(p["w_down_m"])
    q["w_down_i"], q["cb_down_i"] = _pack_conv_weight(p["w_down_i"])
    q["w_up_i"], q["cb_up_i"] = _pack_convT_weight(p["w_up_i"])
    q["w_up_m"], q["cb_up_m"] = _pack_convT_weight(p["w_up_m"])
    q["w_up_o"], q["cb_up_o"] = _pack_convT_weight(p["w_up_o"], p["bias_up_o"])
    for k in ("g_down_m", "b_down_m", "g_up_m", "b_up_m", "g_up_i", "b_up_i"):
        q[k] = p[k]
    return q


# ----------------------------------------------------------------------------
# UnetSkipConnectionBlock forward:  outermost( middle( innermost ) )
# ----------------------------------------------------------------------------
def unet_forward(params, x_nchw, *, out_nc, ngf, eps=1e-5):
    x = jnp.transpose(x_nchw, (0, 2, 3, 1))                      # NHWC

    # outermost down:  Conv (no pre-activation, no norm)
    d1, _, _, _ = conv_down(x, params["w_down_o"], params["cb_down_o"],
                            ngf, pre_act="none")

    # middle down:     LeakyReLU -> Conv -> BN
    d2, s, ss, n = conv_down(d1, params["w_down_m"], params["cb_down_m"],
                             2 * ngf, pre_act="leaky_relu")
    d2n = bn_apply(d2, s, ss, n, params["g_down_m"], params["b_down_m"], eps)

    # innermost down:  LeakyReLU -> Conv (no norm)
    d3, _, _, _ = conv_down(d2n, params["w_down_i"], params["cb_down_i"],
                            4 * ngf, pre_act="leaky_relu")

    # innermost up:    ReLU -> ConvT -> BN ;  skip: cat([x, model(x)])
    u3, s, ss, n = convT_up(d3, params["w_up_i"], params["cb_up_i"], 2 * ngf,
                            pre_act="relu", post_act="none",
                            out_dtype=jnp.bfloat16)
    u3n = bn_apply(u3, s, ss, n, params["g_up_i"], params["b_up_i"], eps)
    cat_i = jnp.concatenate([d2n, u3n], axis=-1)

    # middle up:       ReLU -> ConvT -> BN ;  skip: cat([x, model(x)])
    u2, s, ss, n = convT_up(cat_i, params["w_up_m"], params["cb_up_m"], ngf,
                            pre_act="relu", post_act="none",
                            out_dtype=jnp.bfloat16)
    u2n = bn_apply(u2, s, ss, n, params["g_up_m"], params["b_up_m"], eps)
    cat_m = jnp.concatenate([d1, u2n], axis=-1)

    # outermost up:    ReLU -> ConvT(+bias) -> Tanh   (returns model(x) directly)
    out, _, _, _ = convT_up(cat_m, params["w_up_o"], params["cb_up_o"], out_nc,
                            pre_act="relu", post_act="tanh",
                            out_dtype=jnp.float32)
    return jnp.transpose(out, (0, 3, 1, 2))                      # back to NCHW


if __name__ == "__main__":
    in_nc, out_nc, ngf = 3, 3, 16
    N, H, W = 2, 16, 16

    key = jax.random.PRNGKey(0)
    kp, kx = jax.random.split(key)
    raw_params = init_params(kp, in_nc, out_nc, ngf)
    params = prepare_params(raw_params)          # host-side packing, outside jit
    x = jax.random.normal(kx, (N, in_nc, H, W), jnp.float32)

    fwd = jax.jit(functools.partial(unet_forward, out_nc=out_nc, ngf=ngf))
    out = fwd(params, x)
    jax.block_until_ready(out)

    assert out.shape == (N, out_nc, H, W)
    assert bool(jnp.all(jnp.isfinite(out)))
    assert bool(jnp.all((out >= -1.0) & (out <= 1.0)))   # Tanh output head
    print("KERNEL_OK")
</pallas_src>

<mosaic_0001>
module attributes {stable_mosaic.version = 11 : i64} {
  func.func @_gemm_kernel_k1(%arg0: i32, %arg1: i32, %arg2: memref<128x48xbf16, #tpu.memory_space<vmem>>, %arg3: memref<48x128xbf16, #tpu.memory_space<vmem>>, %arg4: memref<1x128xf32, #tpu.memory_space<vmem>>, %arg5: memref<128x128xbf16, #tpu.memory_space<vmem>>, %arg6: memref<8x128xf32, #tpu.memory_space<vmem>>) attributes {dimension_semantics = [#tpu.dimension_semantics<parallel>, #tpu.dimension_semantics<parallel>], iteration_bounds = array<i64: 1, 1>, scalar_prefetch = 0 : i64, scratch_operands = 0 : i64, tpu.core_type = #tpu.core_type<tc>, window_params = [{transform_indices = @transform_0, window_bounds = array<i64: 128, 48>}, {transform_indices = @transform_1, window_bounds = array<i64: 48, 128>}, {transform_indices = @transform_2, window_bounds = array<i64: 1, 128>}, {transform_indices = @transform_3, window_bounds = array<i64: 128, 128>}, {transform_indices = @transform_4, window_bounds = array<i64: 8, 128>}]} {
    %c0 = arith.constant 0 : index
    %c0_0 = arith.constant 0 : index
    %0 = vector.load %arg2[%c0, %c0_0] : memref<128x48xbf16, #tpu.memory_space<vmem>>, vector<128x48xbf16>
    %c0_1 = arith.constant 0 : index
    %c0_2 = arith.constant 0 : index
    %1 = vector.load %arg3[%c0_1, %c0_2] : memref<48x128xbf16, #tpu.memory_space<vmem>>, vector<48x128xbf16>
    %cst = arith.constant dense<0.000000e+00> : vector<128x128xf32>
    %2 = tpu.matmul %0, %1, %cst {dimension_numbers = #tpu.dot_dimension_numbers<[1], [0], [0], [1], [0, 0, 1, 1], [], []>} : vector<128x48xbf16>, vector<48x128xbf16>, vector<128x128xf32> -> vector<128x128xf32>
    %c0_3 = arith.constant 0 : index
    %c0_4 = arith.constant 0 : index
    %3 = vector.load %arg4[%c0_3, %c0_4] : memref<1x128xf32, #tpu.memory_space<vmem>>, vector<1x128xf32>
    %4 = vector.broadcast %3 : vector<1x128xf32> to vector<128x128xf32>
    %5 = arith.addf %2, %4 : vector<128x128xf32>
    %6 = arith.truncf %5 : vector<128x128xf32> to vector<128x128xbf16>
    %c0_5 = arith.constant 0 : index
    %c0_6 = arith.constant 0 : index
    %7 = vector.load %arg5[%c0_5, %c0_6] : memref<128x128xbf16, #tpu.memory_space<vmem>>, vector<128x128xbf16>
    tpu.vector_store %arg5[%c0_5, %c0_6], %6 {strides = array<i32>} : memref<128x128xbf16, #tpu.memory_space<vmem>>, vector<128x128xbf16>,
    %8 = tpu.iota {dimensions = array<i32: 0>} : vector<128x128xi32>
    %c128_i32 = arith.constant 128 : i32
    %9 = arith.muli %arg0, %c128_i32 : i32
    %c128_i32_7 = arith.constant 128 : i32
    %10 = arith.subi %c128_i32_7, %9 : i32
    %11 = vector.broadcast %10 : i32 to vector<128x128xi32>
    %12 = arith.cmpi slt, %8, %11 : vector<128x128xi32>
    %cst_8 = arith.constant 0.000000e+00 : f32
    %13 = vector.broadcast %cst_8 : f32 to vector<128x128xf32>
    %14 = arith.select %12, %5, %13 : vector<128x128xi1>, vector<128x128xf32>
    %cst_9 = arith.constant dense<0.000000e+00> : vector<128xf32>
    %15 = vector.multi_reduction <add>, %14, %cst_9 [0] : vector<128x128xf32> to vector<128xf32>
    %16 = vector.shape_cast %15 : vector<128xf32> to vector<1x128xf32>
    %17 = arith.mulf %14, %14 : vector<128x128xf32>
    %cst_10 = arith.constant dense<0.000000e+00> : vector<128xf32>
    %18 = vector.multi_reduction <add>, %17, %cst_10 [0] : vector<128x128xf32> to vector<128xf32>
    %19 = vector.shape_cast %18 : vector<128xf32> to vector<1x128xf32>
    %20 = tpu.iota {dimensions = array<i32: 0>} : vector<8x128xi32>
    %c0_i32 = arith.constant 0 : i32
    %21 = vector.broadcast %c0_i32 : i32 to vector<8x128xi32>
    %22 = arith.cmpi eq, %20, %21 : vector<8x128xi32>
    %23 = vector.shape_cast %16 : vector<1x128xf32> to vector<1x128xf32>
    %24 = vector.broadcast %23 : vector<1x128xf32> to vector<8x128xf32>
    %c1_i32 = arith.constant 1 : i32
    %25 = vector.broadcast %c1_i32 : i32 to vector<8x128xi32>
    %26 = arith.cmpi eq, %20, %25 : vector<8x128xi32>
    %27 = vector.shape_cast %19 : vector<1x128xf32> to vector<1x128xf32>
    %28 = vector.broadcast %27 : vector<1x128xf32> to vector<8x128xf32>
    %cst_11 = arith.constant 0.000000e+00 : f32
    %29 = vector.broadcast %cst_11 : f32 to vector<8x128xf32>
    %30 = arith.select %26, %28, %29 : vector<8x128xi1>, vector<8x128xf32>
    %31 = arith.select %22, %24, %30 : vector<8x128xi1>, vector<8x128xf32>
    %c0_12 = arith.constant 0 : index
    %c0_13 = arith.constant 0 : index
    %32 = vector.load %arg6[%c0_12, %c0_13] : memref<8x128xf32, #tpu.memory_space<vmem>>, vector<8x128xf32>
    tpu.vector_store %arg6[%c0_12, %c0_13], %31 {strides = array<i32>} : memref<8x128xf32, #tpu.memory_space<vmem>>, vector<8x128xf32>,
    return
  }
  func.func @transform_0(%arg0: i32, %arg1: i32) -> (i32, i32) {
    %c0_i32 = arith.constant 0 : i32
    %c0_i32_0 = arith.constant 0 : i32
    return %arg0, %c0_i32 : i32, i32
  }
  func.func @transform_1(%arg0: i32, %arg1: i32) -> (i32, i32) {
    %c0_i32 = arith.constant 0 : i32
    %c0_i32_0 = arith.constant 0 : i32
    return %c0_i32, %arg1 : i32, i32
  }
  func.func @transform_2(%arg0: i32, %arg1: i32) -> (i32, i32) {
    %c0_i32 = arith.constant 0 : i32
    %c0_i32_0 = arith.constant 0 : i32
    return %c0_i32, %arg1 : i32, i32
  }
  func.func @transform_3(%arg0: i32, %arg1: i32) -> (i32, i32) {
    %c0_i32 = arith.constant 0 : i32
    return %arg0, %arg1 : i32, i32
  }
  func.func @transform_4(%arg0: i32, %arg1: i32) -> (i32, i32) {
    %c0_i32 = arith.constant 0 : i32
    return %arg0, %arg1 : i32, i32
  }
}

module attributes {stable_mosaic.version = 11 : i64} {
  func.func @_gemm_kernel_k1(%arg0: i32, %arg1: i32, %arg2: memref<32x256xbf16, #tpu.memory_space<vmem>>, %arg3: memref<256x128xbf16, #tpu.memory_space<vmem>>, %arg4: memref<1x128xf32, #tpu.memory_space<vmem>>, %arg5: memref<32x128xbf16, #tpu.memory_space<vmem>>, %arg6: memref<8x128xf32, #tpu.memory_space<vmem>>) attributes {dimension_semantics = [#tpu.dimension_semantics<parallel>, #tpu.dimension_semantics<parallel>], iteration_bounds = array<i64: 1, 1>, scalar_prefetch = 0 : i64, scratch_operands = 0 : i64, tpu.core_type = #tpu.core_type<tc>, window_params = [{transform_indices = @transform_0, window_bounds = array<i64: 32, 256>}, {transform_indices = @transform_1, window_bounds = array<i64: 256, 128>}, {transform_indices = @transform_2, window_bounds = array<i64: 1, 128>}, {transform_indices = @transform_3, window_bounds = array<i64: 32, 128>}, {transform_indices = @transform_4, window_bounds = array<i64: 8, 128>}]} {
    %c0 = arith.constant 0 : index
    %c0_0 = arith.constant 0 : index
    %0 = vector.load %arg2[%c0, %c0_0] : memref<32x256xbf16, #tpu.memory_space<vmem>>, vector<32x256xbf16>
    %1 = arith.extf %0 : vector<32x256xbf16> to vector<32x256xf32>
    %cst = arith.constant 0.000000e+00 : f32
    %2 = vector.broadcast %cst : f32 to vector<32x256xf32>
    %3 = arith.cmpf ogt, %1, %2 : vector<32x256xf32>
    %cst_1 = arith.constant 2.000000e-01 : f32
    %4 = vector.broadcast %cst_1 : f32 to vector<32x256xf32>
    %5 = arith.mulf %4, %1 : vector<32x256xf32>
    %6 = arith.select %3, %1, %5 : vector<32x256xi1>, vector<32x256xf32>
    %7 = arith.truncf %6 : vector<32x256xf32> to vector<32x256xbf16>
    %c0_2 = arith.constant 0 : index
    %c0_3 = arith.constant 0 : index
    %8 = vector.load %arg3[%c0_2, %c0_3] : memref<256x128xbf16, #tpu.memory_space<vmem>>, vector<256x128xbf16>
    %cst_4 = arith.constant dense<0.000000e+00> : vector<32x128xf32>
    %9 = tpu.matmul %7, %8, %cst_4 {dimension_numbers = #tpu.dot_dimension_numbers<[1], [0], [0], [1], [0, 0, 1, 1], [], []>} : vector<32x256xbf16>, vector<256x128xbf16>, vector<32x128xf32> -> vector<32x128xf32>
    %c0_5 = arith.constant 0 : index
    %c0_6 = arith.constant 0 : index
    %10 = vector.load %arg4[%c0_5, %c0_6] : memref<1x128xf32, #tpu.memory_space<vmem>>, vector<1x128xf32>
    %11 = vector.broadcast %10 : vector<1x128xf32> to vector<32x128xf32>
    %12 = arith.addf %9, %11 : vector<32x128xf32>
    %13 = arith.truncf %12 : vector<32x128xf32> to vector<32x128xbf16>
    %c0_7 = arith.constant 0 : index
    %c0_8 = arith.constant 0 : index
    %14 = vector.load %arg5[%c0_7, %c0_8] : memref<32x128xbf16, #tpu.memory_space<vmem>>, vector<32x128xbf16>
    tpu.vector_store %arg5[%c0_7, %c0_8], %13 {strides = array<i32>} : memref<32x128xbf16, #tpu.memory_space<vmem>>, vector<32x128xbf16>,
    %15 = tpu.iota {dimensions = array<i32: 0>} : vector<32x128xi32>
    %c32_i32 = arith.constant 32 : i32
    %16 = arith.muli %arg0, %c32_i32 : i32
    %c32_i32_9 = arith.constant 32 : i32
    %17 = arith.subi %c32_i32_9, %16 : i32
    %18 = vector.broadcast %17 : i32 to vector<32x128xi32>
    %19 = arith.cmpi slt, %15, %18 : vector<32x128xi32>
    %cst_10 = arith.constant 0.000000e+00 : f32
    %20 = vector.broadcast %cst_10 : f32 to vector<32x128xf32>
    %21 = arith.select %19, %12, %20 : vector<32x128xi1>, vector<32x128xf32>
    %cst_11 = arith.constant dense<0.000000e+00> : vector<128xf32>
    %22 = vector.multi_reduction <add>, %21, %cst_11 [0] : vector<32x128xf32> to vector<128xf32>
    %23 = vector.shape_cast %22 : vector<128xf32> to vector<1x128xf32>
    %24 = arith.mulf %21, %21 : vector<32x128xf32>
    %cst_12 = arith.constant dense<0.000000e+00> : vector<128xf32>
    %25 = vector.multi_reduction <add>, %24, %cst_12 [0] : vector<32x128xf32> to vector<128xf32>
    %26 = vector.shape_cast %25 : vector<128xf32> to vector<1x128xf32>
    %27 = tpu.iota {dimensions = array<i32: 0>} : vector<8x128xi32>
    %c0_i32 = arith.constant 0 : i32
    %28 = vector.broadcast %c0_i32 : i32 to vector<8x128xi32>
    %29 = arith.cmpi eq, %27, %28 : vector<8x128xi32>
    %30 = vector.shape_cast %23 : vector<1x128xf32> to vector<1x128xf32>
    %31 = vector.broadcast %30 : vector<1x128xf32> to vector<8x128xf32>
    %c1_i32 = arith.constant 1 : i32
    %32 = vector.broadcast %c1_i32 : i32 to vector<8x128xi32>
    %33 = arith.cmpi eq, %27, %32 : vector<8x128xi32>
    %34 = vector.shape_cast %26 : vector<1x128xf32> to vector<1x128xf32>
    %35 = vector.broadcast %34 : vector<1x128xf32> to vector<8x128xf32>
    %cst_13 = arith.constant 0.000000e+00 : f32
    %36 = vector.broadcast %cst_13 : f32 to vector<8x128xf32>
    %37 = arith.select %33, %35, %36 : vector<8x128xi1>, vector<8x128xf32>
    %38 = arith.select %29, %31, %37 : vector<8x128xi1>, vector<8x128xf32>
    %c0_14 = arith.constant 0 : index
    %c0_15 = arith.constant 0 : index
    %39 = vector.load %arg6[%c0_14, %c0_15] : memref<8x128xf32, #tpu.memory_space<vmem>>, vector<8x128xf32>
    tpu.vector_store %arg6[%c0_14, %c0_15], %38 {strides = array<i32>} : memref<8x128xf32, #tpu.memory_space<vmem>>, vector<8x128xf32>,
    return
  }
  func.func @transform_0(%arg0: i32, %arg1: i32) -> (i32, i32) {
    %c0_i32 = arith.constant 0 : i32
    %c0_i32_0 = arith.constant 0 : i32
    return %arg0, %c0_i32 : i32, i32
  }
  func.func @transform_1(%arg0: i32, %arg1: i32) -> (i32, i32) {
    %c0_i32 = arith.constant 0 : i32
    %c0_i32_0 = arith.constant 0 : i32
    return %c0_i32, %arg1 : i32, i32
  }
  func.func @transform_2(%arg0: i32, %arg1: i32) -> (i32, i32) {
    %c0_i32 = arith.constant 0 : i32
    %c0_i32_0 = arith.constant 0 : i32
    return %c0_i32, %arg1 : i32, i32
  }
  func.func @transform_3(%arg0: i32, %arg1: i32) -> (i32, i32) {
    %c0_i32 = arith.constant 0 : i32
    return %arg0, %arg1 : i32, i32
  }
  func.func @transform_4(%arg0: i32, %arg1: i32) -> (i32, i32) {
    %c0_i32 = arith.constant 0 : i32
    return %arg0, %arg1 : i32, i32
  }
}

module attributes {stable_mosaic.version = 11 : i64} {
  func.func @_gemm_kernel_k1(%arg0: i32, %arg1: i32, %arg2: memref<8x512xbf16, #tpu.memory_space<vmem>>, %arg3: memref<512x128xbf16, #tpu.memory_space<vmem>>, %arg4: memref<1x128xf32, #tpu.memory_space<vmem>>, %arg5: memref<8x128xbf16, #tpu.memory_space<vmem>>, %arg6: memref<8x128xf32, #tpu.memory_space<vmem>>) attributes {dimension_semantics = [#tpu.dimension_semantics<parallel>, #tpu.dimension_semantics<parallel>], iteration_bounds = array<i64: 1, 1>, scalar_prefetch = 0 : i64, scratch_operands = 0 : i64, tpu.core_type = #tpu.core_type<tc>, window_params = [{transform_indices = @transform_0, window_bounds = array<i64: 8, 512>}, {transform_indices = @transform_1, window_bounds = array<i64: 512, 128>}, {transform_indices = @transform_2, window_bounds = array<i64: 1, 128>}, {transform_indices = @transform_3, window_bounds = array<i64: 8, 128>}, {transform_indices = @transform_4, window_bounds = array<i64: 8, 128>}]} {
    %c0 = arith.constant 0 : index
    %c0_0 = arith.constant 0 : index
    %0 = vector.load %arg2[%c0, %c0_0] : memref<8x512xbf16, #tpu.memory_space<vmem>>, vector<8x512xbf16>
    %1 = arith.extf %0 : vector<8x512xbf16> to vector<8x512xf32>
    %cst = arith.constant 0.000000e+00 : f32
    %2 = vector.broadcast %cst : f32 to vector<8x512xf32>
    %3 = arith.cmpf ogt, %1, %2 : vector<8x512xf32>
    %cst_1 = arith.constant 2.000000e-01 : f32
    %4 = vector.broadcast %cst_1 : f32 to vector<8x512xf32>
    %5 = arith.mulf %4, %1 : vector<8x512xf32>
    %6 = arith.select %3, %1, %5 : vector<8x512xi1>, vector<8x512xf32>
    %7 = arith.truncf %6 : vector<8x512xf32> to vector<8x512xbf16>
    %c0_2 = arith.constant 0 : index
    %c0_3 = arith.constant 0 : index
    %8 = vector.load %arg3[%c0_2, %c0_3] : memref<512x128xbf16, #tpu.memory_space<vmem>>, vector<512x128xbf16>
    %cst_4 = arith.constant dense<0.000000e+00> : vector<8x128xf32>
    %9 = tpu.matmul %7, %8, %cst_4 {dimension_numbers = #tpu.dot_dimension_numbers<[1], [0], [0], [1], [0, 0, 1, 1], [], []>} : vector<8x512xbf16>, vector<512x128xbf16>, vector<8x128xf32> -> vector<8x128xf32>
    %c0_5 = arith.constant 0 : index
    %c0_6 = arith.constant 0 : index
    %10 = vector.load %arg4[%c0_5, %c0_6] : memref<1x128xf32, #tpu.memory_space<vmem>>, vector<1x128xf32>
    %11 = vector.broadcast %10 : vector<1x128xf32> to vector<8x128xf32>
    %12 = arith.addf %9, %11 : vector<8x128xf32>
    %13 = arith.truncf %12 : vector<8x128xf32> to vector<8x128xbf16>
    %c0_7 = arith.constant 0 : index
    %c0_8 = arith.constant 0 : index
    %14 = vector.load %arg5[%c0_7, %c0_8] : memref<8x128xbf16, #tpu.memory_space<vmem>>, vector<8x128xbf16>
    tpu.vector_store %arg5[%c0_7, %c0_8], %13 {strides = array<i32>} : memref<8x128xbf16, #tpu.memory_space<vmem>>, vector<8x128xbf16>,
    %15 = tpu.iota {dimensions = array<i32: 0>} : vector<8x128xi32>
    %c8_i32 = arith.constant 8 : i32
    %16 = arith.muli %arg0, %c8_i32 : i32
    %c8_i32_9 = arith.constant 8 : i32
    %17 = arith.subi %c8_i32_9, %16 : i32
    %18 = vector.broadcast %17 : i32 to vector<8x128xi32>
    %19 = arith.cmpi slt, %15, %18 : vector<8x128xi32>
    %cst_10 = arith.constant 0.000000e+00 : f32
    %20 = vector.broadcast %cst_10 : f32 to vector<8x128xf32>
    %21 = arith.select %19, %12, %20 : vector<8x128xi1>, vector<8x128xf32>
    %cst_11 = arith.constant dense<0.000000e+00> : vector<128xf32>
    %22 = vector.multi_reduction <add>, %21, %cst_11 [0] : vector<8x128xf32> to vector<128xf32>
    %23 = vector.shape_cast %22 : vector<128xf32> to vector<1x128xf32>
    %24 = arith.mulf %21, %21 : vector<8x128xf32>
    %cst_12 = arith.constant dense<0.000000e+00> : vector<128xf32>
    %25 = vector.multi_reduction <add>, %24, %cst_12 [0] : vector<8x128xf32> to vector<128xf32>
    %26 = vector.shape_cast %25 : vector<128xf32> to vector<1x128xf32>
    %27 = tpu.iota {dimensions = array<i32: 0>} : vector<8x128xi32>
    %c0_i32 = arith.constant 0 : i32
    %28 = vector.broadcast %c0_i32 : i32 to vector<8x128xi32>
    %29 = arith.cmpi eq, %27, %28 : vector<8x128xi32>
    %30 = vector.shape_cast %23 : vector<1x128xf32> to vector<1x128xf32>
    %31 = vector.broadcast %30 : vector<1x128xf32> to vector<8x128xf32>
    %c1_i32 = arith.constant 1 : i32
    %32 = vector.broadcast %c1_i32 : i32 to vector<8x128xi32>
    %33 = arith.cmpi eq, %27, %32 : vector<8x128xi32>
    %34 = vector.shape_cast %26 : vector<1x128xf32> to vector<1x128xf32>
    %35 = vector.broadcast %34 : vector<1x128xf32> to vector<8x128xf32>
    %cst_13 = arith.constant 0.000000e+00 : f32
    %36 = vector.broadcast %cst_13 : f32 to vector<8x128xf32>
    %37 = arith.select %33, %35, %36 : vector<8x128xi1>, vector<8x128xf32>
    %38 = arith.select %29, %31, %37 : vector<8x128xi1>, vector<8x128xf32>
    %c0_14 = arith.constant 0 : index
    %c0_15 = arith.constant 0 : index
    %39 = vector.load %arg6[%c0_14, %c0_15] : memref<8x128xf32, #tpu.memory_space<vmem>>, vector<8x128xf32>
    tpu.vector_store %arg6[%c0_14, %c0_15], %38 {strides = array<i32>} : memref<8x128xf32, #tpu.memory_space<vmem>>, vector<8x128xf32>,
    return
  }
  func.func @transform_0(%arg0: i32, %arg1: i32) -> (i32, i32) {
    %c0_i32 = arith.constant 0 : i32
    %c0_i32_0 = arith.constant 0 : i32
    return %arg0, %c0_i32 : i32, i32
  }
  func.func @transform_1(%arg0: i32, %arg1: i32) -> (i32, i32) {
    %c0_i32 = arith.constant 0 : i32
    %c0_i32_0 = arith.constant 0 : i32
    return %c0_i32, %arg1 : i32, i32
  }
  func.func @transform_2(%arg0: i32, %arg1: i32) -> (i32, i32) {
    %c0_i32 = arith.constant 0 : i32
    %c0_i32_0 = arith.constant 0 : i32
    return %c0_i32, %arg1 : i32, i32
  }
  func.func @transform_3(%arg0: i32, %arg1: i32) -> (i32, i32) {
    %c0_i32 = arith.constant 0 : i32
    return %arg0, %arg1 : i32, i32
  }
  func.func @transform_4(%arg0: i32, %arg1: i32) -> (i32, i32) {
    %c0_i32 = arith.constant 0 : i32
    return %arg0, %arg1 : i32, i32
  }
}

module attributes {stable_mosaic.version = 11 : i64} {
  func.func @_gemm_kernel_k1(%arg0: i32, %arg1: i32, %arg2: memref<8x576xbf16, #tpu.memory_space<vmem>>, %arg3: memref<576x128xbf16, #tpu.memory_space<vmem>>, %arg4: memref<1x128xf32, #tpu.memory_space<vmem>>, %arg5: memref<8x128xbf16, #tpu.memory_space<vmem>>, %arg6: memref<8x128xf32, #tpu.memory_space<vmem>>) attributes {dimension_semantics = [#tpu.dimension_semantics<parallel>, #tpu.dimension_semantics<parallel>], iteration_bounds = array<i64: 1, 1>, scalar_prefetch = 0 : i64, scratch_operands = 0 : i64, tpu.core_type = #tpu.core_type<tc>, window_params = [{transform_indices = @transform_0, window_bounds = array<i64: 8, 576>}, {transform_indices = @transform_1, window_bounds = array<i64: 576, 128>}, {transform_indices = @transform_2, window_bounds = array<i64: 1, 128>}, {transform_indices = @transform_3, window_bounds = array<i64: 8, 128>}, {transform_indices = @transform_4, window_bounds = array<i64: 8, 128>}]} {
    %c0 = arith.constant 0 : index
    %c0_0 = arith.constant 0 : index
    %0 = vector.load %arg2[%c0, %c0_0] : memref<8x576xbf16, #tpu.memory_space<vmem>>, vector<8x576xbf16>
    %1 = arith.extf %0 : vector<8x576xbf16> to vector<8x576xf32>
    %cst = arith.constant 0.000000e+00 : f32
    %2 = vector.broadcast %cst : f32 to vector<8x576xf32>
    %3 = arith.maximumf %1, %2 : vector<8x576xf32>
    %4 = arith.truncf %3 : vector<8x576xf32> to vector<8x576xbf16>
    %c0_1 = arith.constant 0 : index
    %c0_2 = arith.constant 0 : index
    %5 = vector.load %arg3[%c0_1, %c0_2] : memref<576x128xbf16, #tpu.memory_space<vmem>>, vector<576x128xbf16>
    %cst_3 = arith.constant dense<0.000000e+00> : vector<8x128xf32>
    %6 = tpu.matmul %4, %5, %cst_3 {dimension_numbers = #tpu.dot_dimension_numbers<[1], [0], [0], [1], [0, 0, 1, 1], [], []>} : vector<8x576xbf16>, vector<576x128xbf16>, vector<8x128xf32> -> vector<8x128xf32>
    %c0_4 = arith.constant 0 : index
    %c0_5 = arith.constant 0 : index
    %7 = vector.load %arg4[%c0_4, %c0_5] : memref<1x128xf32, #tpu.memory_space<vmem>>, vector<1x128xf32>
    %8 = vector.broadcast %7 : vector<1x128xf32> to vector<8x128xf32>
    %9 = arith.addf %6, %8 : vector<8x128xf32>
    %10 = arith.truncf %9 : vector<8x128xf32> to vector<8x128xbf16>
    %c0_6 = arith.constant 0 : index
    %c0_7 = arith.constant 0 : index
    %11 = vector.load %arg5[%c0_6, %c0_7] : memref<8x128xbf16, #tpu.memory_space<vmem>>, vector<8x128xbf16>
    tpu.vector_store %arg5[%c0_6, %c0_7], %10 {strides = array<i32>} : memref<8x128xbf16, #tpu.memory_space<vmem>>, vector<8x128xbf16>,
    %12 = tpu.iota {dimensions = array<i32: 0>} : vector<8x128xi32>
    %c8_i32 = arith.constant 8 : i32
    %13 = arith.muli %arg0, %c8_i32 : i32
    %c8_i32_8 = arith.constant 8 : i32
    %14 = arith.subi %c8_i32_8, %13 : i32
    %15 = vector.broadcast %14 : i32 to vector<8x128xi32>
    %16 = arith.cmpi slt, %12, %15 : vector<8x128xi32>
    %cst_9 = arith.constant 0.000000e+00 : f32
    %17 = vector.broadcast %cst_9 : f32 to vector<8x128xf32>
    %18 = arith.select %16, %9, %17 : vector<8x128xi1>, vector<8x128xf32>
    %cst_10 = arith.constant dense<0.000000e+00> : vector<128xf32>
    %19 = vector.multi_reduction <add>, %18, %cst_10 [0] : vector<8x128xf32> to vector<128xf32>
    %20 = vector.shape_cast %19 : vector<128xf32> to vector<1x128xf32>
    %21 = arith.mulf %18, %18 : vector<8x128xf32>
    %cst_11 = arith.constant dense<0.000000e+00> : vector<128xf32>
    %22 = vector.multi_reduction <add>, %21, %cst_11 [0] : vector<8x128xf32> to vector<128xf32>
    %23 = vector.shape_cast %22 : vector<128xf32> to vector<1x128xf32>
    %24 = tpu.iota {dimensions = array<i32: 0>} : vector<8x128xi32>
    %c0_i32 = arith.constant 0 : i32
    %25 = vector.broadcast %c0_i32 : i32 to vector<8x128xi32>
    %26 = arith.cmpi eq, %24, %25 : vector<8x128xi32>
    %27 = vector.shape_cast %20 : vector<1x128xf32> to vector<1x128xf32>
    %28 = vector.broadcast %27 : vector<1x128xf32> to vector<8x128xf32>
    %c1_i32 = arith.constant 1 : i32
    %29 = vector.broadcast %c1_i32 : i32 to vector<8x128xi32>
    %30 = arith.cmpi eq, %24, %29 : vector<8x128xi32>
    %31 = vector.shape_cast %23 : vector<1x128xf32> to vector<1x128xf32>
    %32 = vector.broadcast %31 : vector<1x128xf32> to vector<8x128xf32>
    %cst_12 = arith.constant 0.000000e+00 : f32
    %33 = vector.broadcast %cst_12 : f32 to vector<8x128xf32>
    %34 = arith.select %30, %32, %33 : vector<8x128xi1>, vector<8x128xf32>
    %35 = arith.select %26, %28, %34 : vector<8x128xi1>, vector<8x128xf32>
    %c0_13 = arith.constant 0 : index
    %c0_14 = arith.constant 0 : index
    %36 = vector.load %arg6[%c0_13, %c0_14] : memref<8x128xf32, #tpu.memory_space<vmem>>, vector<8x128xf32>
    tpu.vector_store %arg6[%c0_13, %c0_14], %35 {strides = array<i32>} : memref<8x128xf32, #tpu.memory_space<vmem>>, vector<8x128xf32>,
    return
  }
  func.func @transform_0(%arg0: i32, %arg1: i32) -> (i32, i32) {
    %c0_i32 = arith.constant 0 : i32
    %c0_i32_0 = arith.constant 0 : i32
    return %arg0, %c0_i32 : i32, i32
  }
  func.func @transform_1(%arg0: i32, %arg1: i32) -> (i32, i32) {
    %c0_i32 = arith.constant 0 : i32
    %c0_i32_0 = arith.constant 0 : i32
    return %c0_i32, %arg1 : i32, i32
  }
  func.func @transform_2(%arg0: i32, %arg1: i32) -> (i32, i32) {
    %c0_i32 = arith.constant 0 : i32
    %c0_i32_0 = arith.constant 0 : i32
    return %c0_i32, %arg1 : i32, i32
  }
  func.func @transform_3(%arg0: i32, %arg1: i32) -> (i32, i32) {
    %c0_i32 = arith.constant 0 : i32
    return %arg0, %arg1 : i32, i32
  }
  func.func @transform_4(%arg0: i32, %arg1: i32) -> (i32, i32) {
    %c0_i32 = arith.constant 0 : i32
    return %arg0, %arg1 : i32, i32
  }
}

module attributes {stable_mosaic.version = 11 : i64} {
  func.func @_gemm_kernel_k1(%arg0: i32, %arg1: i32, %arg2: memref<32x576xbf16, #tpu.memory_space<vmem>>, %arg3: memref<576x128xbf16, #tpu.memory_space<vmem>>, %arg4: memref<1x128xf32, #tpu.memory_space<vmem>>, %arg5: memref<32x128xbf16, #tpu.memory_space<vmem>>, %arg6: memref<8x128xf32, #tpu.memory_space<vmem>>) attributes {dimension_semantics = [#tpu.dimension_semantics<parallel>, #tpu.dimension_semantics<parallel>], iteration_bounds = array<i64: 1, 1>, scalar_prefetch = 0 : i64, scratch_operands = 0 : i64, tpu.core_type = #tpu.core_type<tc>, window_params = [{transform_indices = @transform_0, window_bounds = array<i64: 32, 576>}, {transform_indices = @transform_1, window_bounds = array<i64: 576, 128>}, {transform_indices = @transform_2, window_bounds = array<i64: 1, 128>}, {transform_indices = @transform_3, window_bounds = array<i64: 32, 128>}, {transform_indices = @transform_4, window_bounds = array<i64: 8, 128>}]} {
    %c0 = arith.constant 0 : index
    %c0_0 = arith.constant 0 : index
    %0 = vector.load %arg2[%c0, %c0_0] : memref<32x576xbf16, #tpu.memory_space<vmem>>, vector<32x576xbf16>
    %1 = arith.extf %0 : vector<32x576xbf16> to vector<32x576xf32>
    %cst = arith.constant 0.000000e+00 : f32
    %2 = vector.broadcast %cst : f32 to vector<32x576xf32>
    %3 = arith.maximumf %1, %2 : vector<32x576xf32>
    %4 = arith.truncf %3 : vector<32x576xf32> to vector<32x576xbf16>
    %c0_1 = arith.constant 0 : index
    %c0_2 = arith.constant 0 : index
    %5 = vector.load %arg3[%c0_1, %c0_2] : memref<576x128xbf16, #tpu.memory_space<vmem>>, vector<576x128xbf16>
    %cst_3 = arith.constant dense<0.000000e+00> : vector<32x128xf32>
    %6 = tpu.matmul %4, %5, %cst_3 {dimension_numbers = #tpu.dot_dimension_numbers<[1], [0], [0], [1], [0, 0, 1, 1], [], []>} : vector<32x576xbf16>, vector<576x128xbf16>, vector<32x128xf32> -> vector<32x128xf32>
    %c0_4 = arith.constant 0 : index
    %c0_5 = arith.constant 0 : index
    %7 = vector.load %arg4[%c0_4, %c0_5] : memref<1x128xf32, #tpu.memory_space<vmem>>, vector<1x128xf32>
    %8 = vector.broadcast %7 : vector<1x128xf32> to vector<32x128xf32>
    %9 = arith.addf %6, %8 : vector<32x128xf32>
    %10 = arith.truncf %9 : vector<32x128xf32> to vector<32x128xbf16>
    %c0_6 = arith.constant 0 : index
    %c0_7 = arith.constant 0 : index
    %11 = vector.load %arg5[%c0_6, %c0_7] : memref<32x128xbf16, #tpu.memory_space<vmem>>, vector<32x128xbf16>
    tpu.vector_store %arg5[%c0_6, %c0_7], %10 {strides = array<i32>} : memref<32x128xbf16, #tpu.memory_space<vmem>>, vector<32x128xbf16>,
    %12 = tpu.iota {dimensions = array<i32: 0>} : vector<32x128xi32>
    %c32_i32 = arith.constant 32 : i32
    %13 = arith.muli %arg0, %c32_i32 : i32
    %c32_i32_8 = arith.constant 32 : i32
    %14 = arith.subi %c32_i32_8, %13 : i32
    %15 = vector.broadcast %14 : i32 to vector<32x128xi32>
    %16 = arith.cmpi slt, %12, %15 : vector<32x128xi32>
    %cst_9 = arith.constant 0.000000e+00 : f32
    %17 = vector.broadcast %cst_9 : f32 to vector<32x128xf32>
    %18 = arith.select %16, %9, %17 : vector<32x128xi1>, vector<32x128xf32>
    %cst_10 = arith.constant dense<0.000000e+00> : vector<128xf32>
    %19 = vector.multi_reduction <add>, %18, %cst_10 [0] : vector<32x128xf32> to vector<128xf32>
    %20 = vector.shape_cast %19 : vector<128xf32> to vector<1x128xf32>
    %21 = arith.mulf %18, %18 : vector<32x128xf32>
    %cst_11 = arith.constant dense<0.000000e+00> : vector<128xf32>
    %22 = vector.multi_reduction <add>, %21, %cst_11 [0] : vector<32x128xf32> to vector<128xf32>
    %23 = vector.shape_cast %22 : vector<128xf32> to vector<1x128xf32>
    %24 = tpu.iota {dimensions = array<i32: 0>} : vector<8x128xi32>
    %c0_i32 = arith.constant 0 : i32
    %25 = vector.broadcast %c0_i32 : i32 to vector<8x128xi32>
    %26 = arith.cmpi eq, %24, %25 : vector<8x128xi32>
    %27 = vector.shape_cast %20 : vector<1x128xf32> to vector<1x128xf32>
    %28 = vector.broadcast %27 : vector<1x128xf32> to vector<8x128xf32>
    %c1_i32 = arith.constant 1 : i32
    %29 = vector.broadcast %c1_i32 : i32 to vector<8x128xi32>
    %30 = arith.cmpi eq, %24, %29 : vector<8x128xi32>
    %31 = vector.shape_cast %23 : vector<1x128xf32> to vector<1x128xf32>
    %32 = vector.broadcast %31 : vector<1x128xf32> to vector<8x128xf32>
    %cst_12 = arith.constant 0.000000e+00 : f32
    %33 = vector.broadcast %cst_12 : f32 to vector<8x128xf32>
    %34 = arith.select %30, %32, %33 : vector<8x128xi1>, vector<8x128xf32>
    %35 = arith.select %26, %28, %34 : vector<8x128xi1>, vector<8x128xf32>
    %c0_13 = arith.constant 0 : index
    %c0_14 = arith.constant 0 : index
    %36 = vector.load %arg6[%c0_13, %c0_14] : memref<8x128xf32, #tpu.memory_space<vmem>>, vector<8x128xf32>
    tpu.vector_store %arg6[%c0_13, %c0_14], %35 {strides = array<i32>} : memref<8x128xf32, #tpu.memory_space<vmem>>, vector<8x128xf32>,
    return
  }
  func.func @transform_0(%arg0: i32, %arg1: i32) -> (i32, i32) {
    %c0_i32 = arith.constant 0 : i32
    %c0_i32_0 = arith.constant 0 : i32
    return %arg0, %c0_i32 : i32, i32
  }
  func.func @transform_1(%arg0: i32, %arg1: i32) -> (i32, i32) {
    %c0_i32 = arith.constant 0 : i32
    %c0_i32_0 = arith.constant 0 : i32
    return %c0_i32, %arg1 : i32, i32
  }
  func.func @transform_2(%arg0: i32, %arg1: i32) -> (i32, i32) {
    %c0_i32 = arith.constant 0 : i32
    %c0_i32_0 = arith.constant 0 : i32
    return %c0_i32, %arg1 : i32, i32
  }
  func.func @transform_3(%arg0: i32, %arg1: i32) -> (i32, i32) {
    %c0_i32 = arith.constant 0 : i32
    return %arg0, %arg1 : i32, i32
  }
  func.func @transform_4(%arg0: i32, %arg1: i32) -> (i32, i32) {
    %c0_i32 = arith.constant 0 : i32
    return %arg0, %arg1 : i32, i32
  }
}

module attributes {stable_mosaic.version = 11 : i64} {
  func.func @_gemm_kernel_k1(%arg0: i32, %arg1: i32, %arg2: memref<128x288xbf16, #tpu.memory_space<vmem>>, %arg3: memref<288x128xbf16, #tpu.memory_space<vmem>>, %arg4: memref<1x128xf32, #tpu.memory_space<vmem>>, %arg5: memref<128x128xf32, #tpu.memory_space<vmem>>, %arg6: memref<8x128xf32, #tpu.memory_space<vmem>>) attributes {dimension_semantics = [#tpu.dimension_semantics<parallel>, #tpu.dimension_semantics<parallel>], iteration_bounds = array<i64: 1, 1>, scalar_prefetch = 0 : i64, scratch_operands = 0 : i64, tpu.core_type = #tpu.core_type<tc>, window_params = [{transform_indices = @transform_0, window_bounds = array<i64: 128, 288>}, {transform_indices = @transform_1, window_bounds = array<i64: 288, 128>}, {transform_indices = @transform_2, window_bounds = array<i64: 1, 128>}, {transform_indices = @transform_3, window_bounds = array<i64: 128, 128>}, {transform_indices = @transform_4, window_bounds = array<i64: 8, 128>}]} {
    %c0 = arith.constant 0 : index
    %c0_0 = arith.constant 0 : index
    %0 = vector.load %arg2[%c0, %c0_0] : memref<128x288xbf16, #tpu.memory_space<vmem>>, vector<128x288xbf16>
    %1 = arith.extf %0 : vector<128x288xbf16> to vector<128x288xf32>
    %cst = arith.constant 0.000000e+00 : f32
    %2 = vector.broadcast %cst : f32 to vector<128x288xf32>
    %3 = arith.maximumf %1, %2 : vector<128x288xf32>
    %4 = arith.truncf %3 : vector<128x288xf32> to vector<128x288xbf16>
    %c0_1 = arith.constant 0 : index
    %c0_2 = arith.constant 0 : index
    %5 = vector.load %arg3[%c0_1, %c0_2] : memref<288x128xbf16, #tpu.memory_space<vmem>>, vector<288x128xbf16>
    %cst_3 = arith.constant dense<0.000000e+00> : vector<128x128xf32>
    %6 = tpu.matmul %4, %5, %cst_3 {dimension_numbers = #tpu.dot_dimension_numbers<[1], [0], [0], [1], [0, 0, 1, 1], [], []>} : vector<128x288xbf16>, vector<288x128xbf16>, vector<128x128xf32> -> vector<128x128xf32>
    %c0_4 = arith.constant 0 : index
    %c0_5 = arith.constant 0 : index
    %7 = vector.load %arg4[%c0_4, %c0_5] : memref<1x128xf32, #tpu.memory_space<vmem>>, vector<1x128xf32>
    %8 = vector.broadcast %7 : vector<1x128xf32> to vector<128x128xf32>
    %9 = arith.addf %6, %8 : vector<128x128xf32>
    %10 = math.tanh %9 : vector<128x128xf32>
    %c0_6 = arith.constant 0 : index
    %c0_7 = arith.constant 0 : index
    %11 = vector.load %arg5[%c0_6, %c0_7] : memref<128x128xf32, #tpu.memory_space<vmem>>, vector<128x128xf32>
    tpu.vector_store %arg5[%c0_6, %c0_7], %10 {strides = array<i32>} : memref<128x128xf32, #tpu.memory_space<vmem>>, vector<128x128xf32>,
    %12 = tpu.iota {dimensions = array<i32: 0>} : vector<128x128xi32>
    %c128_i32 = arith.constant 128 : i32
    %13 = arith.muli %arg0, %c128_i32 : i32
    %c128_i32_8 = arith.constant 128 : i32
    %14 = arith.subi %c128_i32_8, %13 : i32
    %15 = vector.broadcast %14 : i32 to vector<128x128xi32>
    %16 = arith.cmpi slt, %12, %15 : vector<128x128xi32>
    %cst_9 = arith.constant 0.000000e+00 : f32
    %17 = vector.broadcast %cst_9 : f32 to vector<128x128xf32>
    %18 = arith.select %16, %10, %17 : vector<128x128xi1>, vector<128x128xf32>
    %cst_10 = arith.constant dense<0.000000e+00> : vector<128xf32>
    %19 = vector.multi_reduction <add>, %18, %cst_10 [0] : vector<128x128xf32> to vector<128xf32>
    %20 = vector.shape_cast %19 : vector<128xf32> to vector<1x128xf32>
    %21 = arith.mulf %18, %18 : vector<128x128xf32>
    %cst_11 = arith.constant dense<0.000000e+00> : vector<128xf32>
    %22 = vector.multi_reduction <add>, %21, %cst_11 [0] : vector<128x128xf32> to vector<128xf32>
    %23 = vector.shape_cast %22 : vector<128xf32> to vector<1x128xf32>
    %24 = tpu.iota {dimensions = array<i32: 0>} : vector<8x128xi32>
    %c0_i32 = arith.constant 0 : i32
    %25 = vector.broadcast %c0_i32 : i32 to vector<8x128xi32>
    %26 = arith.cmpi eq, %24, %25 : vector<8x128xi32>
    %27 = vector.shape_cast %20 : vector<1x128xf32> to vector<1x128xf32>
    %28 = vector.broadcast %27 : vector<1x128xf32> to vector<8x128xf32>
    %c1_i32 = arith.constant 1 : i32
    %29 = vector.broadcast %c1_i32 : i32 to vector<8x128xi32>
    %30 = arith.cmpi eq, %24, %29 : vector<8x128xi32>
    %31 = vector.shape_cast %23 : vector<1x128xf32> to vector<1x128xf32>
    %32 = vector.broadcast %31 : vector<1x128xf32> to vector<8x128xf32>
    %cst_12 = arith.constant 0.000000e+00 : f32
    %33 = vector.broadcast %cst_12 : f32 to vector<8x128xf32>
    %34 = arith.select %30, %32, %33 : vector<8x128xi1>, vector<8x128xf32>
    %35 = arith.select %26, %28, %34 : vector<8x128xi1>, vector<8x128xf32>
    %c0_13 = arith.constant 0 : index
    %c0_14 = arith.constant 0 : index
    %36 = vector.load %arg6[%c0_13, %c0_14] : memref<8x128xf32, #tpu.memory_space<vmem>>, vector<8x128xf32>
    tpu.vector_store %arg6[%c0_13, %c0_14], %35 {strides = array<i32>} : memref<8x128xf32, #tpu.memory_space<vmem>>, vector<8x128xf32>,
    return
  }
  func.func @transform_0(%arg0: i32, %arg1: i32) -> (i32, i32) {
    %c0_i32 = arith.constant 0 : i32
    %c0_i32_0 = arith.constant 0 : i32
    return %arg0, %c0_i32 : i32, i32
  }
  func.func @transform_1(%arg0: i32, %arg1: i32) -> (i32, i32) {
    %c0_i32 = arith.constant 0 : i32
    %c0_i32_0 = arith.constant 0 : i32
    return %c0_i32, %arg1 : i32, i32
  }
  func.func @transform_2(%arg0: i32, %arg1: i32) -> (i32, i32) {
    %c0_i32 = arith.constant 0 : i32
    %c0_i32_0 = arith.constant 0 : i32
    return %c0_i32, %arg1 : i32, i32
  }
  func.func @transform_3(%arg0: i32, %arg1: i32) -> (i32, i32) {
    %c0_i32 = arith.constant 0 : i32
    return %arg0, %arg1 : i32, i32
  }
  func.func @transform_4(%arg0: i32, %arg1: i32) -> (i32, i32) {
    %c0_i32 = arith.constant 0 : i32
    return %arg0, %arg1 : i32, i32
  }
}

</mosaic_0001>

<llo_original>
// kernel: unet_forward.6
$region0: #{unet_forward.6}
  #allocation0 [shape = 'u32[]', space=smem, size = 0x4, offset = 0x4, fixed_abs, tag = 'smem constant byte address 0x4 - core index']
  #allocation1 [shape = 'u32[72,128]{1,0:T(1,128)}', space=vmem, size = 0x9000, scoped, tag = 'internal scratch']
  %s0 = inlined_call_operand.vmem [shape: bf16[128,48], index: 0, kind: input, shape index: {}]
  %s1 = inlined_call_operand.vmem [shape: bf16[48,128], index: 1, kind: input, shape index: {}]
  %s2 = inlined_call_operand.vmem [shape: f32[1,128], index: 2, kind: input, shape index: {}]
  %s3 = inlined_call_operand.vmem [shape: bf16[128,128], index: 3, kind: output, shape index: {0}]
  %s4 = inlined_call_operand.hbm [shape: f32[8,128], index: 4, kind: output, shape index: {1}]
  %5 = xla_tuple %s3, %s4
  %s6 = sld [smem:[#allocation0]]
  $region30: #{unet_forward.6} parent=0
    _
  %s8 = ssub.s32 1, %s6
  %s9 = scalar_select 0, %s8, %s6
  $region1: #{unet_forward.6} parent=0
    #allocation2 [shape = 'u8[4096]{0}', space=vmem, size = 0x1000, scoped, tag = 'output window, operand 1, single buffered']
    #allocation3 [shape = 's32[1]{0}', space=sflag, size = 0x4, scoped, tag = 'scoped memory for unet_forward.6']
    %10 = vsyncpa [#allocation3], 0
    // Predicated region
    $region2: #{unet_forward.6} parent=1 // pred_check
      _
    $region3: #{unet_forward.6} parent=1 // pred_check_branch
      %12 = sbr.rel (0) target = $region5
    $region4: #{unet_forward.6} parent=1 // pred_region
      _
    $region5: #{unet_forward.6} parent=1 // pred_fallthru
      _
    // Predicated region
    $region6: #{unet_forward.6} parent=1 // pred_check
      _
    $region7: #{unet_forward.6} parent=1 // pred_check_branch
      %14 = sbr.rel (0) target = $region9
    $region8: #{unet_forward.6} parent=1 // pred_region
      _
    $region9: #{unet_forward.6} parent=1 // pred_fallthru
      _
    // Predicated region
    $region10: #{unet_forward.6} parent=1 // pred_check
      _
    $region11: #{unet_forward.6} parent=1 // pred_check_branch
      %16 = sbr.rel (0) target = $region13
    $region12: #{unet_forward.6} parent=1 // pred_region
      _
    $region13: #{unet_forward.6} parent=1 // pred_fallthru
      _
    %v18 = vld [vmem:[%s0] sm:$0xf]
    %v19 = vld [vmem:[%s0 + $0x4] sm:$0xf]
    %v20 = vld [vmem:[%s0 + $0x8] sm:$0xf]
    %v21 = vld [vmem:[%s0 + $0xc] sm:$0xf]
    %v22 = vld [vmem:[%s0 + $0x10] sm:$0xf]
    %v23 = vld [vmem:[%s0 + $0x14] sm:$0xf]
    %v24 = vld [vmem:[%s0 + $0x18] sm:$0xf]
    %v25 = vld [vmem:[%s0 + $0x1c] sm:$0xf]
    %v26 = vld [vmem:[%s0 + $0x20] sm:$0xf]
    %v27 = vld [vmem:[%s0 + $0x24] sm:$0xf]
    %v28 = vld [vmem:[%s0 + $0x28] sm:$0xf]
    %v29 = vld [vmem:[%s0 + $0x2c] sm:$0xf]
    %v30 = vld [vmem:[%s0 + $0x30] sm:$0xf]
    %v31 = vld [vmem:[%s0 + $0x34] sm:$0xf]
    %v32 = vld [vmem:[%s0 + $0x38] sm:$0xf]
    %v33 = vld [vmem:[%s0 + $0x3c] sm:$0xf]
    %v34 = vld [vmem:[%s1] sm:$0xf]
    %v35 = vld [vmem:[%s1 + $0x4] sm:$0xf]
    %v36 = vld [vmem:[%s1 + $0x8] sm:$0xf]
    %v37 = vld [vmem:[%s1 + $0xc] sm:$0xf]
    %v38 = vld [vmem:[%s1 + $0x10] sm:$0xf]
    %v39 = vld [vmem:[%s1 + $0x14] sm:$0xf]
    %v40 = vld [vmem:[%s2] sm:$0x1]
    %v42 = vperm.slane %v40, 0
    %v60 = vunpack.c.l.b16 %v18
    %v61 = vunpack.c.l.b16 %v19
    %v62 = vunpack.c.l.b16 %v20
    %v63 = vunpack.c.l.b16 %v21
    %v64 = vunpack.c.l.b16 %v22
    %v65 = vunpack.c.l.b16 %v23
    %v66 = vunpack.c.l.b16 %v24
    %v67 = vunpack.c.l.b16 %v25
    %v68 = vunpack.c.l.b16 %v26
    %v69 = vunpack.c.l.b16 %v27
    %v70 = vunpack.c.l.b16 %v28
    %v71 = vunpack.c.l.b16 %v29
    %v72 = vunpack.c.l.b16 %v30
    %v73 = vunpack.c.l.b16 %v31
    %v74 = vunpack.c.l.b16 %v32
    %v75 = vunpack.c.l.b16 %v33
    %v76 = vpack.c.b16 %v61, %v60
    %v77 = vpack.c.b16 %v63, %v62
    %v78 = vpack.c.b16 %v65, %v64
    %v79 = vpack.c.b16 %v67, %v66
    %v80 = vpack.c.b16 %v69, %v68
    %v81 = vpack.c.b16 %v71, %v70
    %v82 = vpack.c.b16 %v73, %v72
    %v83 = vpack.c.b16 %v75, %v74
    %v90 = vunpack.c.l.b16 %v34
    %v91 = vunpack.c.l.b16 %v35
    %v92 = vunpack.c.l.b16 %v36
    %v93 = vunpack.c.l.b16 %v37
    %v94 = vunpack.c.l.b16 %v38
    %v95 = vunpack.c.l.b16 %v39
    %v96 = vpack.c.b16 %v91, %v90
    %v97 = vpack.c.b16 %v93, %v92
    %v98 = vpack.c.b16 %v95, %v94
    %vm102 = vcmask 392192
    %v104 = vsel %vm102, %v76, 0
    %v107 = vsel %vm102, %v77, 0
    %v110 = vsel %vm102, %v78, 0
    %v113 = vsel %vm102, %v79, 0
    %v116 = vsel %vm102, %v80, 0
    %v119 = vsel %vm102, %v81, 0
    %v122 = vsel %vm102, %v82, 0
    %v125 = vsel %vm102, %v83, 0
    %127 = vmatpush.bf16.msra.mxu0 0
    %128 = vmatpush.bf16.msra.mxu0 0
    %129 = vmatpush.bf16.msra.mxu0 0
    %130 = vmatpush.bf16.msra.mxu0 0
    %131 = vmatpush.bf16.msra.mxu0 0
    %132 = vmatpush.bf16.msra.mxu0 %v98
    %133 = vmatpush.bf16.msra.mxu0 %v97
    %134 = vmatpush.bf16.msra.mxu0 %v96
    %135 = vmatmul.bf16.gmra.mxu0 %v104
    %v136 = vpop.f32.mrf.mxu0
    %v137 = vadd.f32 %v42, %v136
    %v138 = vpop.f32.mrf.mxu0
    %v139 = vadd.f32 %v42, %v138
    %140 = vmatmul.bf16.gmra.mxu0 %v107
    %v141 = vpop.f32.mrf.mxu0
    %v142 = vadd.f32 %v42, %v141
    %v143 = vpop.f32.mrf.mxu0
    %v144 = vadd.f32 %v42, %v143
    %145 = vmatmul.bf16.gmra.mxu0 %v110
    %v146 = vpop.f32.mrf.mxu0
    %v147 = vadd.f32 %v42, %v146
    %v148 = vpop.f32.mrf.mxu0
    %v149 = vadd.f32 %v42, %v148
    %150 = vmatmul.bf16.gmra.mxu0 %v113
    %v151 = vpop.f32.mrf.mxu0
    %v152 = vadd.f32 %v42, %v151
    %v153 = vpop.f32.mrf.mxu0
    %v154 = vadd.f32 %v42, %v153
    %155 = vmatmul.bf16.gmra.mxu0 %v116
    %v156 = vpop.f32.mrf.mxu0
    %v157 = vadd.f32 %v42, %v156
    %v158 = vpop.f32.mrf.mxu0
    %v159 = vadd.f32 %v42, %v158
    %160 = vmatmul.bf16.gmra.mxu0 %v119
    %v161 = vpop.f32.mrf.mxu0
    %v162 = vadd.f32 %v42, %v161
    %v163 = vpop.f32.mrf.mxu0
    %v164 = vadd.f32 %v42, %v163
    %165 = vmatmul.bf16.gmra.mxu0 %v122
    %v166 = vpop.f32.mrf.mxu0
    %v167 = vadd.f32 %v42, %v166
    %v168 = vpop.f32.mrf.mxu0
    %v169 = vadd.f32 %v42, %v168
    %170 = vmatmul.bf16.gmra.mxu0 %v125
    %v171 = vpop.f32.mrf.mxu0
    %v172 = vadd.f32 %v42, %v171
    %v173 = vpop.f32.mrf.mxu0
    %v174 = vadd.f32 %v42, %v173
    %175 = vdwg.mxu0
    %v176 = vpack.c.bf16 %v137, %v137
    %v177 = vpack.c.bf16 %v139, %v139
    %v178 = vpack.c.bf16 %v142, %v142
    %v179 = vpack.c.bf16 %v144, %v144
    %v180 = vpack.c.bf16 %v147, %v147
    %v181 = vpack.c.bf16 %v149, %v149
    %v182 = vpack.c.bf16 %v152, %v152
    %v183 = vpack.c.bf16 %v154, %v154
    %v184 = vpack.c.bf16 %v157, %v157
    %v185 = vpack.c.bf16 %v159, %v159
    %v186 = vpack.c.bf16 %v162, %v162
    %v187 = vpack.c.bf16 %v164, %v164
    %v188 = vpack.c.bf16 %v167, %v167
    %v189 = vpack.c.bf16 %v169, %v169
    %v190 = vpack.c.bf16 %v172, %v172
    %v191 = vpack.c.bf16 %v174, %v174
    %192 = vst [vmem:[%s3] sm:$0xf] %v176
    %193 = vst [vmem:[%s3 + $0x4] sm:$0xf] %v177
    %194 = vst [vmem:[%s3 + $0x8] sm:$0xf] %v178
    %195 = vst [vmem:[%s3 + $0xc] sm:$0xf] %v179
    %196 = vst [vmem:[%s3 + $0x10] sm:$0xf] %v180
    %197 = vst [vmem:[%s3 + $0x14] sm:$0xf] %v181
    %198 = vst [vmem:[%s3 + $0x18] sm:$0xf] %v182
    %199 = vst [vmem:[%s3 + $0x1c] sm:$0xf] %v183
    %200 = vst [vmem:[%s3 + $0x20] sm:$0xf] %v184
    %201 = vst [vmem:[%s3 + $0x24] sm:$0xf] %v185
    %202 = vst [vmem:[%s3 + $0x28] sm:$0xf] %v186
    %203 = vst [vmem:[%s3 + $0x2c] sm:$0xf] %v187
    %204 = vst [vmem:[%s3 + $0x30] sm:$0xf] %v188
    %205 = vst [vmem:[%s3 + $0x34] sm:$0xf] %v189
    %206 = vst [vmem:[%s3 + $0x38] sm:$0xf] %v190
    %207 = vst [vmem:[%s3 + $0x3c] sm:$0xf] %v191
    %v208 = vlaneseq
    %v209 = vshrl.u32 %v208, 7
    %v210 = vadd.s32 %v209, 8
    %v211 = vadd.s32 %v209, 16
    %v212 = vadd.s32 %v209, 24
    %v213 = vadd.s32 %v209, 32
    %v214 = vadd.s32 %v209, 40
    %v215 = vadd.s32 %v209, 48
    %v216 = vadd.s32 %v209, 56
    %v217 = vadd.s32 %v209, 64
    %v218 = vadd.s32 %v209, 72
    %v219 = vadd.s32 %v209, 80
    %v220 = vadd.s32 %v209, 88
    %v221 = vadd.s32 %v209, 96
    %v222 = vadd.s32 %v209, 104
    %v223 = vadd.s32 %v209, 112
    %v224 = vadd.s32 %v209, 120
    %s225 = smul.u32 0, 128
    %s226 = ssub.s32 128, %s225
    %v227 = vstv %s226
    %vm228 = vcmp.lt.s32.totalorder %v209, %v227
    %vm229 = vcmp.lt.s32.totalorder %v210, %v227
    %vm230 = vcmp.lt.s32.totalorder %v211, %v227
    %vm231 = vcmp.lt.s32.totalorder %v212, %v227
    %vm232 = vcmp.lt.s32.totalorder %v213, %v227
    %vm233 = vcmp.lt.s32.totalorder %v214, %v227
    %vm234 = vcmp.lt.s32.totalorder %v215, %v227
    %vm235 = vcmp.lt.s32.totalorder %v216, %v227
    %vm236 = vcmp.lt.s32.totalorder %v217, %v227
    %vm237 = vcmp.lt.s32.totalorder %v218, %v227
    %vm238 = vcmp.lt.s32.totalorder %v219, %v227
    %vm239 = vcmp.lt.s32.totalorder %v220, %v227
    %vm240 = vcmp.lt.s32.totalorder %v221, %v227
    %vm241 = vcmp.lt.s32.totalorder %v222, %v227
    %vm242 = vcmp.lt.s32.totalorder %v223, %v227
    %vm243 = vcmp.lt.s32.totalorder %v224, %v227
    %v244 = vsel %vm228, %v137, 0.0
    %v245 = vsel %vm229, %v139, 0.0
    %v246 = vsel %vm230, %v142, 0.0
    %v247 = vsel %vm231, %v144, 0.0
    %v248 = vsel %vm232, %v147, 0.0
    %v249 = vsel %vm233, %v149, 0.0
    %v250 = vsel %vm234, %v152, 0.0
    %v251 = vsel %vm235, %v154, 0.0
    %v252 = vsel %vm236, %v157, 0.0
    %v253 = vsel %vm237, %v159, 0.0
    %v254 = vsel %vm238, %v162, 0.0
    %v255 = vsel %vm239, %v164, 0.0
    %v256 = vsel %vm240, %v167, 0.0
    %v257 = vsel %vm241, %v169, 0.0
    %v258 = vsel %vm242, %v172, 0.0
    %v259 = vsel %vm243, %v174, 0.0
    %v260 = vadd.f32 %v244, %v245
    %v261 = vadd.f32 %v260, %v246
    %v262 = vadd.f32 %v261, %v247
    %v263 = vadd.f32 %v262, %v248
    %v264 = vadd.f32 %v263, %v249
    %v265 = vadd.f32 %v264, %v250
    %v266 = vadd.f32 %v265, %v251
    %v267 = vadd.f32 %v266, %v252
    %v268 = vadd.f32 %v267, %v253
    %v269 = vadd.f32 %v268, %v254
    %v270 = vadd.f32 %v269, %v255
    %v271 = vadd.f32 %v270, %v256
    %v272 = vadd.f32 %v271, %v257
    %v273 = vadd.f32 %v272, %v258
    %v274 = vadd.f32 %v273, %v259
    %v275 = vrot.slane %v274, 4
    %v276 = vadd.f32 %v274, %v275
    %v277 = vrot.slane %v276, 2
    %v278 = vadd.f32 %v276, %v277
    %v279 = vrot.slane %v278, 1
    %v280 = vadd.f32 %v278, %v279
    %v281 = vmul.f32 %v244, %v244
    %v282 = vmul.f32 %v245, %v245
    %v283 = vmul.f32 %v246, %v246
    %v284 = vmul.f32 %v247, %v247
    %v285 = vmul.f32 %v248, %v248
    %v286 = vmul.f32 %v249, %v249
    %v287 = vmul.f32 %v250, %v250
    %v288 = vmul.f32 %v251, %v251
    %v289 = vmul.f32 %v252, %v252
    %v290 = vmul.f32 %v253, %v253
    %v291 = vmul.f32 %v254, %v254
    %v292 = vmul.f32 %v255, %v255
    %v293 = vmul.f32 %v256, %v256
    %v294 = vmul.f32 %v257, %v257
    %v295 = vmul.f32 %v258, %v258
    %v296 = vmul.f32 %v259, %v259
    %v297 = vadd.f32 %v281, %v282
    %v298 = vadd.f32 %v297, %v283
    %v299 = vadd.f32 %v298, %v284
    %v300 = vadd.f32 %v299, %v285
    %v301 = vadd.f32 %v300, %v286
    %v302 = vadd.f32 %v301, %v287
    %v303 = vadd.f32 %v302, %v288
    %v304 = vadd.f32 %v303, %v289
    %v305 = vadd.f32 %v304, %v290
    %v306 = vadd.f32 %v305, %v291
    %v307 = vadd.f32 %v306, %v292
    %v308 = vadd.f32 %v307, %v293
    %v309 = vadd.f32 %v308, %v294
    %v310 = vadd.f32 %v309, %v295
    %v311 = vadd.f32 %v310, %v296
    %v312 = vrot.slane %v311, 4
    %v313 = vadd.f32 %v311, %v312
    %v314 = vrot.slane %v313, 2
    %v315 = vadd.f32 %v313, %v314
    %v316 = vrot.slane %v315, 1
    %v317 = vadd.f32 %v315, %v316
    %vm318 = vcmp.eq.s32.totalorder %v209, 0
    %vm319 = vcmp.eq.s32.totalorder %v209, 1
    %v320 = vsel %vm319, %v317, 0.0
    %v321 = vsel %vm318, %v280, %v320
    %322 = vst [vmem:[#allocation2] sm:$0xff] %v321
    // Predicated region
    $region14: #{unet_forward.6} parent=1 // pred_check
      _
    $region15: #{unet_forward.6} parent=1 // pred_check_branch
      %324 = sbr.rel (0) target = $region17
    $region16: #{unet_forward.6} parent=1 // pred_region
      _
    $region17: #{unet_forward.6} parent=1 // pred_fallthru
      _
    // Predicated region
    $region18: #{unet_forward.6} parent=1 // pred_check
      _
    $region19: #{unet_forward.6} parent=1 // pred_check_branch
      %326 = sbr.rel (0) target = $region21
    $region20: #{unet_forward.6} parent=1 // pred_region
      %328 = vsyncadd [#allocation3], 0
      %s330 = sshll.u32 [#allocation2], 4
      %s331 = int_to_ptr.vmem [resolvable:$true] %s330
      %s332 = sshll.u32 %s4, 4
      %s333 = int_to_ptr.hbm [resolvable:$true] %s332
      %335 = dma.vmem_to_hbm [thread:$0]  %s331, 128, %s333, [#allocation3]
    $region21: #{unet_forward.6} parent=1 // pred_fallthru
      _
    // Predicated region
    $region22: #{unet_forward.6} parent=1 // pred_check
      _
    $region23: #{unet_forward.6} parent=1 // pred_check_branch
      %337 = sbr.rel (0) target = $region25
    $region24: #{unet_forward.6} parent=1 // pred_region
      _
    $region25: #{unet_forward.6} parent=1 // pred_fallthru
      _
    // Predicated region
    $region26: #{unet_forward.6} parent=1 // pred_check
      _
    $region27: #{unet_forward.6} parent=1 // pred_check_branch
      %339 = sbr.rel (0) target = $region29
    $region28: #{unet_forward.6} parent=1 // pred_region
      %341 = dma.done [#allocation3], 128
    $region29: #{unet_forward.6} parent=1 // pred_fallthru
      _
    %342 = vsyncpa [#allocation3], 1

// kernel: unet_forward.7
$region0: #{unet_forward.7}
  #allocation0 [shape = 'u32[]', space=smem, size = 0x4, offset = 0x4, fixed_abs, tag = 'smem constant byte address 0x4 - core index']
  #allocation1 [shape = 'u32[72,128]{1,0:T(1,128)}', space=vmem, size = 0x9000, scoped, tag = 'internal scratch']
  %s0 = inlined_call_operand.vmem [shape: bf16[32,256], index: 0, kind: input, shape index: {}]
  %s1 = inlined_call_operand.vmem [shape: bf16[256,128], index: 1, kind: input, shape index: {}]
  %s2 = inlined_call_operand.vmem [shape: f32[1,128], index: 2, kind: input, shape index: {}]
  %s3 = inlined_call_operand.vmem [shape: bf16[32,128], index: 3, kind: output, shape index: {0}]
  %s4 = inlined_call_operand.vmem [shape: f32[8,128], index: 4, kind: output, shape index: {1}]
  %5 = xla_tuple %s3, %s4
  %s6 = sld [smem:[#allocation0]]
  $region30: #{unet_forward.7} parent=0
    _
  %s8 = ssub.s32 1, %s6
  %s9 = scalar_select 0, %s8, %s6
  // Predicated region
  $region2: #{unet_forward.7} parent=0 // pred_check
    _
  $region3: #{unet_forward.7} parent=0 // pred_check_branch
    %11 = sbr.rel (0) target = $region5
  $region4: #{unet_forward.7} parent=0 // pred_region
    _
  $region5: #{unet_forward.7} parent=0 // pred_fallthru
    _
  // Predicated region
  $region6: #{unet_forward.7} parent=0 // pred_check
    _
  $region7: #{unet_forward.7} parent=0 // pred_check_branch
    %13 = sbr.rel (0) target = $region9
  $region8: #{unet_forward.7} parent=0 // pred_region
    _
  $region9: #{unet_forward.7} parent=0 // pred_fallthru
    _
  // Predicated region
  $region10: #{unet_forward.7} parent=0 // pred_check
    _
  $region11: #{unet_forward.7} parent=0 // pred_check_branch
    %15 = sbr.rel (0) target = $region13
  $region12: #{unet_forward.7} parent=0 // pred_region
    _
  $region13: #{unet_forward.7} parent=0 // pred_fallthru
    _
  %v16 = vld [vmem:[%s0] sm:$0xff]
  %v17 = vld [vmem:[%s0 + $0x8] sm:$0xff]
  %v18 = vld [vmem:[%s0 + $0x10] sm:$0xff]
  %v19 = vld [vmem:[%s0 + $0x18] sm:$0xff]
  %v20 = vunpack.c.l.bf16 %v16
  %v21 = vunpack.c.h.bf16 %v16
  %v22 = vunpack.c.l.bf16 %v17
  %v23 = vunpack.c.h.bf16 %v17
  %v24 = vunpack.c.l.bf16 %v18
  %v25 = vunpack.c.h.bf16 %v18
  %v26 = vunpack.c.l.bf16 %v19
  %v27 = vunpack.c.h.bf16 %v19
  %vm28 = vcmp.gt.f32.partialorder %v20, 0.0
  %vm29 = vcmp.gt.f32.partialorder %v21, 0.0
  %vm30 = vcmp.gt.f32.partialorder %v22, 0.0
  %vm31 = vcmp.gt.f32.partialorder %v23, 0.0
  %vm32 = vcmp.gt.f32.partialorder %v24, 0.0
  %vm33 = vcmp.gt.f32.partialorder %v25, 0.0
  %vm34 = vcmp.gt.f32.partialorder %v26, 0.0
  %vm35 = vcmp.gt.f32.partialorder %v27, 0.0
  %v36 = vmul.f32 %v20, 0.2
  %v37 = vmul.f32 %v21, 0.2
  %v38 = vmul.f32 %v22, 0.2
  %v39 = vmul.f32 %v23, 0.2
  %v40 = vmul.f32 %v24, 0.2
  %v41 = vmul.f32 %v25, 0.2
  %v42 = vmul.f32 %v26, 0.2
  %v43 = vmul.f32 %v27, 0.2
  %v44 = vsel %vm28, %v20, %v36
  %v45 = vsel %vm29, %v21, %v37
  %v46 = vsel %vm30, %v22, %v38
  %v47 = vsel %vm31, %v23, %v39
  %v48 = vsel %vm32, %v24, %v40
  %v49 = vsel %vm33, %v25, %v41
  %v50 = vsel %vm34, %v26, %v42
  %v51 = vsel %vm35, %v27, %v43
  %v52 = vpack.c.bf16 %v46, %v44
  %v53 = vpack.c.bf16 %v47, %v45
  %v54 = vpack.c.bf16 %v50, %v48
  %v55 = vpack.c.bf16 %v51, %v49
  %v56 = vld [vmem:[%s1] sm:$0xf]
  %v57 = vld [vmem:[%s1 + $0x4] sm:$0xf]
  %v58 = vld [vmem:[%s1 + $0x8] sm:$0xf]
  %v59 = vld [vmem:[%s1 + $0xc] sm:$0xf]
  %v60 = vld [vmem:[%s1 + $0x10] sm:$0xf]
  %v61 = vld [vmem:[%s1 + $0x14] sm:$0xf]
  %v62 = vld [vmem:[%s1 + $0x18] sm:$0xf]
  %v63 = vld [vmem:[%s1 + $0x1c] sm:$0xf]
  %v64 = vld [vmem:[%s1 + $0x20] sm:$0xf]
  %v65 = vld [vmem:[%s1 + $0x24] sm:$0xf]
  %v66 = vld [vmem:[%s1 + $0x28] sm:$0xf]
  %v67 = vld [vmem:[%s1 + $0x2c] sm:$0xf]
  %v68 = vld [vmem:[%s1 + $0x30] sm:$0xf]
  %v69 = vld [vmem:[%s1 + $0x34] sm:$0xf]
  %v70 = vld [vmem:[%s1 + $0x38] sm:$0xf]
  %v71 = vld [vmem:[%s1 + $0x3c] sm:$0xf]
  %v72 = vld [vmem:[%s1 + $0x40] sm:$0xf]
  %v73 = vld [vmem:[%s1 + $0x44] sm:$0xf]
  %v74 = vld [vmem:[%s1 + $0x48] sm:$0xf]
  %v75 = vld [vmem:[%s1 + $0x4c] sm:$0xf]
  %v76 = vld [vmem:[%s1 + $0x50] sm:$0xf]
  %v77 = vld [vmem:[%s1 + $0x54] sm:$0xf]
  %v78 = vld [vmem:[%s1 + $0x58] sm:$0xf]
  %v79 = vld [vmem:[%s1 + $0x5c] sm:$0xf]
  %v80 = vld [vmem:[%s1 + $0x60] sm:$0xf]
  %v81 = vld [vmem:[%s1 + $0x64] sm:$0xf]
  %v82 = vld [vmem:[%s1 + $0x68] sm:$0xf]
  %v83 = vld [vmem:[%s1 + $0x6c] sm:$0xf]
  %v84 = vld [vmem:[%s1 + $0x70] sm:$0xf]
  %v85 = vld [vmem:[%s1 + $0x74] sm:$0xf]
  %v86 = vld [vmem:[%s1 + $0x78] sm:$0xf]
  %v87 = vld [vmem:[%s1 + $0x7c] sm:$0xf]
  %v88 = vld [vmem:[%s2] sm:$0x1]
  %v90 = vperm.slane %v88, 0
  %v124 = vunpack.c.l.b16 %v56
  %v125 = vunpack.c.l.b16 %v57
  %v126 = vunpack.c.l.b16 %v58
  %v127 = vunpack.c.l.b16 %v59
  %v128 = vunpack.c.l.b16 %v60
  %v129 = vunpack.c.l.b16 %v61
  %v130 = vunpack.c.l.b16 %v62
  %v131 = vunpack.c.l.b16 %v63
  %v132 = vunpack.c.l.b16 %v64
  %v133 = vunpack.c.l.b16 %v65
  %v134 = vunpack.c.l.b16 %v66
  %v135 = vunpack.c.l.b16 %v67
  %v136 = vunpack.c.l.b16 %v68
  %v137 = vunpack.c.l.b16 %v69
  %v138 = vunpack.c.l.b16 %v70
  %v139 = vunpack.c.l.b16 %v71
  %v140 = vunpack.c.l.b16 %v72
  %v141 = vunpack.c.l.b16 %v73
  %v142 = vunpack.c.l.b16 %v74
  %v143 = vunpack.c.l.b16 %v75
  %v144 = vunpack.c.l.b16 %v76
  %v145 = vunpack.c.l.b16 %v77
  %v146 = vunpack.c.l.b16 %v78
  %v147 = vunpack.c.l.b16 %v79
  %v148 = vunpack.c.l.b16 %v80
  %v149 = vunpack.c.l.b16 %v81
  %v150 = vunpack.c.l.b16 %v82
  %v151 = vunpack.c.l.b16 %v83
  %v152 = vunpack.c.l.b16 %v84
  %v153 = vunpack.c.l.b16 %v85
  %v154 = vunpack.c.l.b16 %v86
  %v155 = vunpack.c.l.b16 %v87
  %v156 = vpack.c.b16 %v125, %v124
  %v157 = vpack.c.b16 %v127, %v126
  %v158 = vpack.c.b16 %v129, %v128
  %v159 = vpack.c.b16 %v131, %v130
  %v160 = vpack.c.b16 %v133, %v132
  %v161 = vpack.c.b16 %v135, %v134
  %v162 = vpack.c.b16 %v137, %v136
  %v163 = vpack.c.b16 %v139, %v138
  %v164 = vpack.c.b16 %v141, %v140
  %v165 = vpack.c.b16 %v143, %v142
  %v166 = vpack.c.b16 %v145, %v144
  %v167 = vpack.c.b16 %v147, %v146
  %v168 = vpack.c.b16 %v149, %v148
  %v169 = vpack.c.b16 %v151, %v150
  %v170 = vpack.c.b16 %v153, %v152
  %v171 = vpack.c.b16 %v155, %v154
  %188 = vmatpush.bf16.msra.mxu0 %v163
  %189 = vmatpush.bf16.msra.mxu0 %v162
  %190 = vmatpush.bf16.msra.mxu0 %v161
  %191 = vmatpush.bf16.msra.mxu0 %v160
  %192 = vmatpush.bf16.msra.mxu0 %v159
  %193 = vmatpush.bf16.msra.mxu0 %v158
  %194 = vmatpush.bf16.msra.mxu0 %v157
  %195 = vmatpush.bf16.msra.mxu0 %v156
  %196 = vmatmul.bf16.gmra.mxu0 %v52
  %v197 = vpop.f32.mrf.mxu0
  %v198 = vadd.f32 %v90, %v197
  %v199 = vpop.f32.mrf.mxu0
  %v200 = vadd.f32 %v90, %v199
  %201 = vmatmul.bf16.gmra.mxu0 %v54
  %v202 = vpop.f32.mrf.mxu0
  %v203 = vadd.f32 %v90, %v202
  %v204 = vpop.f32.mrf.mxu0
  %v205 = vadd.f32 %v90, %v204
  %206 = vdwg.mxu0
  %207 = vmatpush.bf16.msra.mxu0 %v171
  %208 = vmatpush.bf16.msra.mxu0 %v170
  %209 = vmatpush.bf16.msra.mxu0 %v169
  %210 = vmatpush.bf16.msra.mxu0 %v168
  %211 = vmatpush.bf16.msra.mxu0 %v167
  %212 = vmatpush.bf16.msra.mxu0 %v166
  %213 = vmatpush.bf16.msra.mxu0 %v165
  %214 = vmatpush.bf16.msra.mxu0 %v164
  %215 = vmatmul.bf16.gmra.mxu0 %v53
  %v216 = vpop.f32.mrf.mxu0
  %v217 = vadd.f32 %v198, %v216
  %v218 = vpop.f32.mrf.mxu0
  %v219 = vadd.f32 %v200, %v218
  %220 = vmatmul.bf16.gmra.mxu0 %v55
  %v221 = vpop.f32.mrf.mxu0
  %v222 = vadd.f32 %v203, %v221
  %v223 = vpop.f32.mrf.mxu0
  %v224 = vadd.f32 %v205, %v223
  %225 = vdwg.mxu0
  %v226 = vpack.c.bf16 %v217, %v217
  %v227 = vpack.c.bf16 %v219, %v219
  %v228 = vpack.c.bf16 %v222, %v222
  %v229 = vpack.c.bf16 %v224, %v224
  %230 = vst [vmem:[%s3] sm:$0xf] %v226
  %231 = vst [vmem:[%s3 + $0x4] sm:$0xf] %v227
  %232 = vst [vmem:[%s3 + $0x8] sm:$0xf] %v228
  %233 = vst [vmem:[%s3 + $0xc] sm:$0xf] %v229
  %v234 = vlaneseq
  %v235 = vshrl.u32 %v234, 7
  %v236 = vadd.s32 %v235, 8
  %v237 = vadd.s32 %v235, 16
  %v238 = vadd.s32 %v235, 24
  %s239 = smul.u32 0, 32
  %s240 = ssub.s32 32, %s239
  %v241 = vstv %s240
  %vm242 = vcmp.lt.s32.totalorder %v235, %v241
  %vm243 = vcmp.lt.s32.totalorder %v236, %v241
  %vm244 = vcmp.lt.s32.totalorder %v237, %v241
  %vm245 = vcmp.lt.s32.totalorder %v238, %v241
  %v246 = vsel %vm242, %v217, 0.0
  %v247 = vsel %vm243, %v219, 0.0
  %v248 = vsel %vm244, %v222, 0.0
  %v249 = vsel %vm245, %v224, 0.0
  %v250 = vadd.f32 %v246, %v247
  %v251 = vadd.f32 %v250, %v248
  %v252 = vadd.f32 %v251, %v249
  %v253 = vrot.slane %v252, 4
  %v254 = vadd.f32 %v252, %v253
  %v255 = vrot.slane %v254, 2
  %v256 = vadd.f32 %v254, %v255
  %v257 = vrot.slane %v256, 1
  %v258 = vadd.f32 %v256, %v257
  %v259 = vmul.f32 %v246, %v246
  %v260 = vmul.f32 %v247, %v247
  %v261 = vmul.f32 %v248, %v248
  %v262 = vmul.f32 %v249, %v249
  %v263 = vadd.f32 %v259, %v260
  %v264 = vadd.f32 %v263, %v261
  %v265 = vadd.f32 %v264, %v262
  %v266 = vrot.slane %v265, 4
  %v267 = vadd.f32 %v265, %v266
  %v268 = vrot.slane %v267, 2
  %v269 = vadd.f32 %v267, %v268
  %v270 = vrot.slane %v269, 1
  %v271 = vadd.f32 %v269, %v270
  %vm272 = vcmp.eq.s32.totalorder %v235, 0
  %vm273 = vcmp.eq.s32.totalorder %v235, 1
  %v274 = vsel %vm273, %v271, 0.0
  %v275 = vsel %vm272, %v258, %v274
  %276 = vst [vmem:[%s4] sm:$0xff] %v275
  // Predicated region
  $region14: #{unet_forward.7} parent=0 // pred_check
    _
  $region15: #{unet_forward.7} parent=0 // pred_check_branch
    %278 = sbr.rel (0) target = $region17
  $region16: #{unet_forward.7} parent=0 // pred_region
    _
  $region17: #{unet_forward.7} parent=0 // pred_fallthru
    _
  // Predicated region
  $region18: #{unet_forward.7} parent=0 // pred_check
    _
  $region19: #{unet_forward.7} parent=0 // pred_check_branch
    %280 = sbr.rel (0) target = $region21
  $region20: #{unet_forward.7} parent=0 // pred_region
    _
  $region21: #{unet_forward.7} parent=0 // pred_fallthru
    _
  // Predicated region
  $region22: #{unet_forward.7} parent=0 // pred_check
    _
  $region23: #{unet_forward.7} parent=0 // pred_check_branch
    %282 = sbr.rel (0) target = $region25
  $region24: #{unet_forward.7} parent=0 // pred_region
    _
  $region25: #{unet_forward.7} parent=0 // pred_fallthru
    _
  // Predicated region
  $region26: #{unet_forward.7} parent=0 // pred_check
    _
  $region27: #{unet_forward.7} parent=0 // pred_check_branch
    %284 = sbr.rel (0) target = $region29
  $region28: #{unet_forward.7} parent=0 // pred_region
    _
  $region29: #{unet_forward.7} parent=0 // pred_fallthru
    _

// kernel: unet_forward.9
$region0: #{unet_forward.9}
  #allocation0 [shape = 'u32[]', space=smem, size = 0x4, offset = 0x4, fixed_abs, tag = 'smem constant byte address 0x4 - core index']
  #allocation1 [shape = 'u32[72,128]{1,0:T(1,128)}', space=vmem, size = 0x9000, scoped, tag = 'internal scratch']
  %s0 = inlined_call_operand.vmem [shape: bf16[8,576], index: 0, kind: input, shape index: {}]
  %s1 = inlined_call_operand.vmem [shape: bf16[576,128], index: 1, kind: input, shape index: {}]
  %s2 = inlined_call_operand.vmem [shape: f32[1,128], index: 2, kind: input, shape index: {}]
  %s3 = inlined_call_operand.vmem [shape: bf16[8,128], index: 3, kind: output, shape index: {0}]
  %s4 = inlined_call_operand.vmem [shape: f32[8,128], index: 4, kind: output, shape index: {1}]
  %5 = xla_tuple %s3, %s4
  %s6 = sld [smem:[#allocation0]]
  $region30: #{unet_forward.9} parent=0
    _
  %s8 = ssub.s32 1, %s6
  %s9 = scalar_select 0, %s8, %s6
  // Predicated region
  $region2: #{unet_forward.9} parent=0 // pred_check
    _
  $region3: #{unet_forward.9} parent=0 // pred_check_branch
    %11 = sbr.rel (0) target = $region5
  $region4: #{unet_forward.9} parent=0 // pred_region
    _
  $region5: #{unet_forward.9} parent=0 // pred_fallthru
    _
  // Predicated region
  $region6: #{unet_forward.9} parent=0 // pred_check
    _
  $region7: #{unet_forward.9} parent=0 // pred_check_branch
    %13 = sbr.rel (0) target = $region9
  $region8: #{unet_forward.9} parent=0 // pred_region
    _
  $region9: #{unet_forward.9} parent=0 // pred_fallthru
    _
  // Predicated region
  $region10: #{unet_forward.9} parent=0 // pred_check
    _
  $region11: #{unet_forward.9} parent=0 // pred_check_branch
    %15 = sbr.rel (0) target = $region13
  $region12: #{unet_forward.9} parent=0 // pred_region
    _
  $region13: #{unet_forward.9} parent=0 // pred_fallthru
    _
  %v17 = vld [vmem:[%s0] sm:$0xff]
  %v18 = vld [vmem:[%s0 + $0x8] sm:$0xff]
  %v19 = vld [vmem:[%s0 + $0x10] sm:$0xf]
  %v20 = vunpack.c.l.bf16 %v17
  %v21 = vunpack.c.h.bf16 %v17
  %v22 = vunpack.c.l.bf16 %v18
  %v23 = vunpack.c.h.bf16 %v18
  %v24 = vunpack.c.l.bf16 %v19
  %v25 = vmax.f32 %v20, 0.0
  %v26 = vmax.f32 %v21, 0.0
  %v27 = vmax.f32 %v22, 0.0
  %v28 = vmax.f32 %v23, 0.0
  %v29 = vmax.f32 %v24, 0.0
  %v30 = vpack.c.bf16 %v25, %v25
  %v31 = vpack.c.bf16 %v26, %v26
  %v32 = vpack.c.bf16 %v27, %v27
  %v33 = vpack.c.bf16 %v28, %v28
  %v34 = vpack.c.bf16 %v29, %v29
  %v35 = vld [vmem:[%s1] sm:$0xf]
  %v36 = vld [vmem:[%s1 + $0x4] sm:$0xf]
  %v37 = vld [vmem:[%s1 + $0x8] sm:$0xf]
  %v38 = vld [vmem:[%s1 + $0xc] sm:$0xf]
  %v39 = vld [vmem:[%s1 + $0x10] sm:$0xf]
  %v40 = vld [vmem:[%s1 + $0x14] sm:$0xf]
  %v41 = vld [vmem:[%s1 + $0x18] sm:$0xf]
  %v42 = vld [vmem:[%s1 + $0x1c] sm:$0xf]
  %v43 = vld [vmem:[%s1 + $0x20] sm:$0xf]
  %v44 = vld [vmem:[%s1 + $0x24] sm:$0xf]
  %v45 = vld [vmem:[%s1 + $0x28] sm:$0xf]
  %v46 = vld [vmem:[%s1 + $0x2c] sm:$0xf]
  %v47 = vld [vmem:[%s1 + $0x30] sm:$0xf]
  %v48 = vld [vmem:[%s1 + $0x34] sm:$0xf]
  %v49 = vld [vmem:[%s1 + $0x38] sm:$0xf]
  %v50 = vld [vmem:[%s1 + $0x3c] sm:$0xf]
  %v51 = vld [vmem:[%s1 + $0x40] sm:$0xf]
  %v52 = vld [vmem:[%s1 + $0x44] sm:$0xf]
  %v53 = vld [vmem:[%s1 + $0x48] sm:$0xf]
  %v54 = vld [vmem:[%s1 + $0x4c] sm:$0xf]
  %v55 = vld [vmem:[%s1 + $0x50] sm:$0xf]
  %v56 = vld [vmem:[%s1 + $0x54] sm:$0xf]
  %v57 = vld [vmem:[%s1 + $0x58] sm:$0xf]
  %v58 = vld [vmem:[%s1 + $0x5c] sm:$0xf]
  %v59 = vld [vmem:[%s1 + $0x60] sm:$0xf]
  %v60 = vld [vmem:[%s1 + $0x64] sm:$0xf]
  %v61 = vld [vmem:[%s1 + $0x68] sm:$0xf]
  %v62 = vld [vmem:[%s1 + $0x6c] sm:$0xf]
  %v63 = vld [vmem:[%s1 + $0x70] sm:$0xf]
  %v64 = vld [vmem:[%s1 + $0x74] sm:$0xf]
  %v65 = vld [vmem:[%s1 + $0x78] sm:$0xf]
  %v66 = vld [vmem:[%s1 + $0x7c] sm:$0xf]
  %v67 = vld [vmem:[%s1 + $0x80] sm:$0xf]
  %v68 = vld [vmem:[%s1 + $0x84] sm:$0xf]
  %v69 = vld [vmem:[%s1 + $0x88] sm:$0xf]
  %v70 = vld [vmem:[%s1 + $0x8c] sm:$0xf]
  %v71 = vld [vmem:[%s1 + $0x90] sm:$0xf]
  %v72 = vld [vmem:[%s1 + $0x94] sm:$0xf]
  %v73 = vld [vmem:[%s1 + $0x98] sm:$0xf]
  %v74 = vld [vmem:[%s1 + $0x9c] sm:$0xf]
  %v75 = vld [vmem:[%s1 + $0xa0] sm:$0xf]
  %v76 = vld [vmem:[%s1 + $0xa4] sm:$0xf]
  %v77 = vld [vmem:[%s1 + $0xa8] sm:$0xf]
  %v78 = vld [vmem:[%s1 + $0xac] sm:$0xf]
  %v79 = vld [vmem:[%s1 + $0xb0] sm:$0xf]
  %v80 = vld [vmem:[%s1 + $0xb4] sm:$0xf]
  %v81 = vld [vmem:[%s1 + $0xb8] sm:$0xf]
  %v82 = vld [vmem:[%s1 + $0xbc] sm:$0xf]
  %v83 = vld [vmem:[%s1 + $0xc0] sm:$0xf]
  %v84 = vld [vmem:[%s1 + $0xc4] sm:$0xf]
  %v85 = vld [vmem:[%s1 + $0xc8] sm:$0xf]
  %v86 = vld [vmem:[%s1 + $0xcc] sm:$0xf]
  %v87 = vld [vmem:[%s1 + $0xd0] sm:$0xf]
  %v88 = vld [vmem:[%s1 + $0xd4] sm:$0xf]
  %v89 = vld [vmem:[%s1 + $0xd8] sm:$0xf]
  %v90 = vld [vmem:[%s1 + $0xdc] sm:$0xf]
  %v91 = vld [vmem:[%s1 + $0xe0] sm:$0xf]
  %v92 = vld [vmem:[%s1 + $0xe4] sm:$0xf]
  %v93 = vld [vmem:[%s1 + $0xe8] sm:$0xf]
  %v94 = vld [vmem:[%s1 + $0xec] sm:$0xf]
  %v95 = vld [vmem:[%s1 + $0xf0] sm:$0xf]
  %v96 = vld [vmem:[%s1 + $0xf4] sm:$0xf]
  %v97 = vld [vmem:[%s1 + $0xf8] sm:$0xf]
  %v98 = vld [vmem:[%s1 + $0xfc] sm:$0xf]
  %v99 = vld [vmem:[%s1 + $0x100] sm:$0xf]
  %v100 = vld [vmem:[%s1 + $0x104] sm:$0xf]
  %v101 = vld [vmem:[%s1 + $0x108] sm:$0xf]
  %v102 = vld [vmem:[%s1 + $0x10c] sm:$0xf]
  %v103 = vld [vmem:[%s1 + $0x110] sm:$0xf]
  %v104 = vld [vmem:[%s1 + $0x114] sm:$0xf]
  %v105 = vld [vmem:[%s1 + $0x118] sm:$0xf]
  %v106 = vld [vmem:[%s1 + $0x11c] sm:$0xf]
  %v107 = vld [vmem:[%s2] sm:$0x1]
  %v109 = vperm.slane %v107, 0
  %v183 = vunpack.c.l.b16 %v35
  %v184 = vunpack.c.l.b16 %v36
  %v185 = vunpack.c.l.b16 %v37
  %v186 = vunpack.c.l.b16 %v38
  %v187 = vunpack.c.l.b16 %v39
  %v188 = vunpack.c.l.b16 %v40
  %v189 = vunpack.c.l.b16 %v41
  %v190 = vunpack.c.l.b16 %v42
  %v191 = vunpack.c.l.b16 %v43
  %v192 = vunpack.c.l.b16 %v44
  %v193 = vunpack.c.l.b16 %v45
  %v194 = vunpack.c.l.b16 %v46
  %v195 = vunpack.c.l.b16 %v47
  %v196 = vunpack.c.l.b16 %v48
  %v197 = vunpack.c.l.b16 %v49
  %v198 = vunpack.c.l.b16 %v50
  %v199 = vunpack.c.l.b16 %v51
  %v200 = vunpack.c.l.b16 %v52
  %v201 = vunpack.c.l.b16 %v53
  %v202 = vunpack.c.l.b16 %v54
  %v203 = vunpack.c.l.b16 %v55
  %v204 = vunpack.c.l.b16 %v56
  %v205 = vunpack.c.l.b16 %v57
  %v206 = vunpack.c.l.b16 %v58
  %v207 = vunpack.c.l.b16 %v59
  %v208 = vunpack.c.l.b16 %v60
  %v209 = vunpack.c.l.b16 %v61
  %v210 = vunpack.c.l.b16 %v62
  %v211 = vunpack.c.l.b16 %v63
  %v212 = vunpack.c.l.b16 %v64
  %v213 = vunpack.c.l.b16 %v65
  %v214 = vunpack.c.l.b16 %v66
  %v215 = vunpack.c.l.b16 %v67
  %v216 = vunpack.c.l.b16 %v68
  %v217 = vunpack.c.l.b16 %v69
  %v218 = vunpack.c.l.b16 %v70
  %v219 = vunpack.c.l.b16 %v71
  %v220 = vunpack.c.l.b16 %v72
  %v221 = vunpack.c.l.b16 %v73
  %v222 = vunpack.c.l.b16 %v74
  %v223 = vunpack.c.l.b16 %v75
  %v224 = vunpack.c.l.b16 %v76
  %v225 = vunpack.c.l.b16 %v77
  %v226 = vunpack.c.l.b16 %v78
  %v227 = vunpack.c.l.b16 %v79
  %v228 = vunpack.c.l.b16 %v80
  %v229 = vunpack.c.l.b16 %v81
  %v230 = vunpack.c.l.b16 %v82
  %v231 = vunpack.c.l.b16 %v83
  %v232 = vunpack.c.l.b16 %v84
  %v233 = vunpack.c.l.b16 %v85
  %v234 = vunpack.c.l.b16 %v86
  %v235 = vunpack.c.l.b16 %v87
  %v236 = vunpack.c.l.b16 %v88
  %v237 = vunpack.c.l.b16 %v89
  %v238 = vunpack.c.l.b16 %v90
  %v239 = vunpack.c.l.b16 %v91
  %v240 = vunpack.c.l.b16 %v92
  %v241 = vunpack.c.l.b16 %v93
  %v242 = vunpack.c.l.b16 %v94
  %v243 = vunpack.c.l.b16 %v95
  %v244 = vunpack.c.l.b16 %v96
  %v245 = vunpack.c.l.b16 %v97
  %v246 = vunpack.c.l.b16 %v98
  %v247 = vunpack.c.l.b16 %v99
  %v248 = vunpack.c.l.b16 %v100
  %v249 = vunpack.c.l.b16 %v101
  %v250 = vunpack.c.l.b16 %v102
  %v251 = vunpack.c.l.b16 %v103
  %v252 = vunpack.c.l.b16 %v104
  %v253 = vunpack.c.l.b16 %v105
  %v254 = vunpack.c.l.b16 %v106
  %v255 = vpack.c.b16 %v184, %v183
  %v256 = vpack.c.b16 %v186, %v185
  %v257 = vpack.c.b16 %v188, %v187
  %v258 = vpack.c.b16 %v190, %v189
  %v259 = vpack.c.b16 %v192, %v191
  %v260 = vpack.c.b16 %v194, %v193
  %v261 = vpack.c.b16 %v196, %v195
  %v262 = vpack.c.b16 %v198, %v197
  %v263 = vpack.c.b16 %v200, %v199
  %v264 = vpack.c.b16 %v202, %v201
  %v265 = vpack.c.b16 %v204, %v203
  %v266 = vpack.c.b16 %v206, %v205
  %v267 = vpack.c.b16 %v208, %v207
  %v268 = vpack.c.b16 %v210, %v209
  %v269 = vpack.c.b16 %v212, %v211
  %v270 = vpack.c.b16 %v214, %v213
  %v271 = vpack.c.b16 %v216, %v215
  %v272 = vpack.c.b16 %v218, %v217
  %v273 = vpack.c.b16 %v220, %v219
  %v274 = vpack.c.b16 %v222, %v221
  %v275 = vpack.c.b16 %v224, %v223
  %v276 = vpack.c.b16 %v226, %v225
  %v277 = vpack.c.b16 %v228, %v227
  %v278 = vpack.c.b16 %v230, %v229
  %v279 = vpack.c.b16 %v232, %v231
  %v280 = vpack.c.b16 %v234, %v233
  %v281 = vpack.c.b16 %v236, %v235
  %v282 = vpack.c.b16 %v238, %v237
  %v283 = vpack.c.b16 %v240, %v239
  %v284 = vpack.c.b16 %v242, %v241
  %v285 = vpack.c.b16 %v244, %v243
  %v286 = vpack.c.b16 %v246, %v245
  %v287 = vpack.c.b16 %v248, %v247
  %v288 = vpack.c.b16 %v250, %v249
  %v289 = vpack.c.b16 %v252, %v251
  %v290 = vpack.c.b16 %v254, %v253
  %vm327 = vcmask 523264
  %v329 = vsel %vm327, %v34, 0
  %331 = vmatpush.bf16.msra.mxu0 %v262
  %332 = vmatpush.bf16.msra.mxu0 %v261
  %333 = vmatpush.bf16.msra.mxu0 %v260
  %334 = vmatpush.bf16.msra.mxu0 %v259
  %335 = vmatpush.bf16.msra.mxu0 %v258
  %336 = vmatpush.bf16.msra.mxu0 %v257
  %337 = vmatpush.bf16.msra.mxu0 %v256
  %338 = vmatpush.bf16.msra.mxu0 %v255
  %339 = vmatmul.bf16.gmra.mxu0 %v30
  %v340 = vpop.f32.mrf.mxu0
  %v341 = vadd.f32 %v109, %v340
  %v342 = vpop.f32.mrf.mxu0
  %343 = vdwg.mxu0
  %344 = vmatpush.bf16.msra.mxu0 %v270
  %345 = vmatpush.bf16.msra.mxu0 %v269
  %346 = vmatpush.bf16.msra.mxu0 %v268
  %347 = vmatpush.bf16.msra.mxu0 %v267
  %348 = vmatpush.bf16.msra.mxu0 %v266
  %349 = vmatpush.bf16.msra.mxu0 %v265
  %350 = vmatpush.bf16.msra.mxu0 %v264
  %351 = vmatpush.bf16.msra.mxu0 %v263
  %352 = vmatmul.bf16.gmra.mxu0 %v31
  %v353 = vpop.f32.mrf.mxu0
  %v354 = vadd.f32 %v341, %v353
  %v355 = vpop.f32.mrf.mxu0
  %356 = vdwg.mxu0
  %357 = vmatpush.bf16.msra.mxu0 %v278
  %358 = vmatpush.bf16.msra.mxu0 %v277
  %359 = vmatpush.bf16.msra.mxu0 %v276
  %360 = vmatpush.bf16.msra.mxu0 %v275
  %361 = vmatpush.bf16.msra.mxu0 %v274
  %362 = vmatpush.bf16.msra.mxu0 %v273
  %363 = vmatpush.bf16.msra.mxu0 %v272
  %364 = vmatpush.bf16.msra.mxu0 %v271
  %365 = vmatmul.bf16.gmra.mxu0 %v32
  %v366 = vpop.f32.mrf.mxu0
  %v367 = vadd.f32 %v354, %v366
  %v368 = vpop.f32.mrf.mxu0
  %369 = vdwg.mxu0
  %370 = vmatpush.bf16.msra.mxu0 %v286
  %371 = vmatpush.bf16.msra.mxu0 %v285
  %372 = vmatpush.bf16.msra.mxu0 %v284
  %373 = vmatpush.bf16.msra.mxu0 %v283
  %374 = vmatpush.bf16.msra.mxu0 %v282
  %375 = vmatpush.bf16.msra.mxu0 %v281
  %376 = vmatpush.bf16.msra.mxu0 %v280
  %377 = vmatpush.bf16.msra.mxu0 %v279
  %378 = vmatmul.bf16.gmra.mxu0 %v33
  %v379 = vpop.f32.mrf.mxu0
  %v380 = vadd.f32 %v367, %v379
  %v381 = vpop.f32.mrf.mxu0
  %382 = vdwg.mxu0
  %383 = vmatpush.bf16.msra.mxu0 0
  %384 = vmatpush.bf16.msra.mxu0 0
  %385 = vmatpush.bf16.msra.mxu0 0
  %386 = vmatpush.bf16.msra.mxu0 0
  %387 = vmatpush.bf16.msra.mxu0 %v290
  %388 = vmatpush.bf16.msra.mxu0 %v289
  %389 = vmatpush.bf16.msra.mxu0 %v288
  %390 = vmatpush.bf16.msra.mxu0 %v287
  %391 = vmatmul.bf16.gmra.mxu0 %v329
  %v392 = vpop.f32.mrf.mxu0
  %v393 = vadd.f32 %v380, %v392
  %v394 = vpop.f32.mrf.mxu0
  %395 = vdwg.mxu0
  %v396 = vpack.c.bf16 %v393, %v393
  %397 = vst [vmem:[%s3] sm:$0xf] %v396
  %v398 = vlaneseq
  %v399 = vshrl.u32 %v398, 7
  %s400 = smul.u32 0, 8
  %s401 = ssub.s32 8, %s400
  %v402 = vstv %s401
  %vm403 = vcmp.lt.s32.totalorder %v399, %v402
  %v404 = vsel %vm403, %v393, 0.0
  %v405 = vrot.slane %v404, 4
  %v406 = vadd.f32 %v404, %v405
  %v407 = vrot.slane %v406, 2
  %v408 = vadd.f32 %v406, %v407
  %v409 = vrot.slane %v408, 1
  %v410 = vadd.f32 %v408, %v409
  %v411 = vmul.f32 %v404, %v404
  %v412 = vrot.slane %v411, 4
  %v413 = vadd.f32 %v411, %v412
  %v414 = vrot.slane %v413, 2
  %v415 = vadd.f32 %v413, %v414
  %v416 = vrot.slane %v415, 1
  %v417 = vadd.f32 %v415, %v416
  %vm418 = vcmp.eq.s32.totalorder %v399, 0
  %vm419 = vcmp.eq.s32.totalorder %v399, 1
  %v420 = vsel %vm419, %v417, 0.0
  %v421 = vsel %vm418, %v410, %v420
  %422 = vst [vmem:[%s4] sm:$0xff] %v421
  // Predicated region
  $region14: #{unet_forward.9} parent=0 // pred_check
    _
  $region15: #{unet_forward.9} parent=0 // pred_check_branch
    %424 = sbr.rel (0) target = $region17
  $region16: #{unet_forward.9} parent=0 // pred_region
    _
  $region17: #{unet_forward.9} parent=0 // pred_fallthru
    _
  // Predicated region
  $region18: #{unet_forward.9} parent=0 // pred_check
    _
  $region19: #{unet_forward.9} parent=0 // pred_check_branch
    %426 = sbr.rel (0) target = $region21
  $region20: #{unet_forward.9} parent=0 // pred_region
    _
  $region21: #{unet_forward.9} parent=0 // pred_fallthru
    _
  // Predicated region
  $region22: #{unet_forward.9} parent=0 // pred_check
    _
  $region23: #{unet_forward.9} parent=0 // pred_check_branch
    %428 = sbr.rel (0) target = $region25
  $region24: #{unet_forward.9} parent=0 // pred_region
    _
  $region25: #{unet_forward.9} parent=0 // pred_fallthru
    _
  // Predicated region
  $region26: #{unet_forward.9} parent=0 // pred_check
    _
  $region27: #{unet_forward.9} parent=0 // pred_check_branch
    %430 = sbr.rel (0) target = $region29
  $region28: #{unet_forward.9} parent=0 // pred_region
    _
  $region29: #{unet_forward.9} parent=0 // pred_fallthru
    _

// kernel: unet_forward.8
$region0: #{unet_forward.8}
  #allocation0 [shape = 'u32[]', space=smem, size = 0x4, offset = 0x4, fixed_abs, tag = 'smem constant byte address 0x4 - core index']
  #allocation1 [shape = 'u32[72,128]{1,0:T(1,128)}', space=vmem, size = 0x9000, scoped, tag = 'internal scratch']
  %s0 = inlined_call_operand.vmem [shape: bf16[8,512], index: 0, kind: input, shape index: {}]
  %s1 = inlined_call_operand.vmem [shape: bf16[512,128], index: 1, kind: input, shape index: {}]
  %s2 = inlined_call_operand.vmem [shape: f32[1,128], index: 2, kind: input, shape index: {}]
  %s3 = inlined_call_operand.vmem [shape: bf16[8,128], index: 3, kind: output, shape index: {0}]
  %s4 = inlined_call_operand.hbm [shape: f32[8,128], index: 4, kind: output, shape index: {1}]
  %5 = xla_tuple %s3, %s4
  %s6 = sld [smem:[#allocation0]]
  $region30: #{unet_forward.8} parent=0
    _
  %s8 = ssub.s32 1, %s6
  %s9 = scalar_select 0, %s8, %s6
  $region1: #{unet_forward.8} parent=0
    #allocation2 [shape = 'u8[4096]{0}', space=vmem, size = 0x1000, scoped, tag = 'output window, operand 1, single buffered']
    #allocation3 [shape = 's32[1]{0}', space=sflag, size = 0x4, scoped, tag = 'scoped memory for unet_forward.8']
    %10 = vsyncpa [#allocation3], 0
    // Predicated region
    $region2: #{unet_forward.8} parent=1 // pred_check
      _
    $region3: #{unet_forward.8} parent=1 // pred_check_branch
      %12 = sbr.rel (0) target = $region5
    $region4: #{unet_forward.8} parent=1 // pred_region
      _
    $region5: #{unet_forward.8} parent=1 // pred_fallthru
      _
    // Predicated region
    $region6: #{unet_forward.8} parent=1 // pred_check
      _
    $region7: #{unet_forward.8} parent=1 // pred_check_branch
      %14 = sbr.rel (0) target = $region9
    $region8: #{unet_forward.8} parent=1 // pred_region
      _
    $region9: #{unet_forward.8} parent=1 // pred_fallthru
      _
    // Predicated region
    $region10: #{unet_forward.8} parent=1 // pred_check
      _
    $region11: #{unet_forward.8} parent=1 // pred_check_branch
      %16 = sbr.rel (0) target = $region13
    $region12: #{unet_forward.8} parent=1 // pred_region
      _
    $region13: #{unet_forward.8} parent=1 // pred_fallthru
      _
    %v17 = vld [vmem:[%s0] sm:$0xff]
    %v18 = vld [vmem:[%s0 + $0x8] sm:$0xff]
    %v19 = vunpack.c.l.bf16 %v17
    %v20 = vunpack.c.h.bf16 %v17
    %v21 = vunpack.c.l.bf16 %v18
    %v22 = vunpack.c.h.bf16 %v18
    %vm23 = vcmp.gt.f32.partialorder %v19, 0.0
    %vm24 = vcmp.gt.f32.partialorder %v20, 0.0
    %vm25 = vcmp.gt.f32.partialorder %v21, 0.0
    %vm26 = vcmp.gt.f32.partialorder %v22, 0.0
    %v27 = vmul.f32 %v19, 0.2
    %v28 = vmul.f32 %v20, 0.2
    %v29 = vmul.f32 %v21, 0.2
    %v30 = vmul.f32 %v22, 0.2
    %v31 = vsel %vm23, %v19, %v27
    %v32 = vsel %vm24, %v20, %v28
    %v33 = vsel %vm25, %v21, %v29
    %v34 = vsel %vm26, %v22, %v30
    %v35 = vpack.c.bf16 %v31, %v31
    %v36 = vpack.c.bf16 %v32, %v32
    %v37 = vpack.c.bf16 %v33, %v33
    %v38 = vpack.c.bf16 %v34, %v34
    %v39 = vld [vmem:[%s1] sm:$0xf]
    %v40 = vld [vmem:[%s1 + $0x4] sm:$0xf]
    %v41 = vld [vmem:[%s1 + $0x8] sm:$0xf]
    %v42 = vld [vmem:[%s1 + $0xc] sm:$0xf]
    %v43 = vld [vmem:[%s1 + $0x10] sm:$0xf]
    %v44 = vld [vmem:[%s1 + $0x14] sm:$0xf]
    %v45 = vld [vmem:[%s1 + $0x18] sm:$0xf]
    %v46 = vld [vmem:[%s1 + $0x1c] sm:$0xf]
    %v47 = vld [vmem:[%s1 + $0x20] sm:$0xf]
    %v48 = vld [vmem:[%s1 + $0x24] sm:$0xf]
    %v49 = vld [vmem:[%s1 + $0x28] sm:$0xf]
    %v50 = vld [vmem:[%s1 + $0x2c] sm:$0xf]
    %v51 = vld [vmem:[%s1 + $0x30] sm:$0xf]
    %v52 = vld [vmem:[%s1 + $0x34] sm:$0xf]
    %v53 = vld [vmem:[%s1 + $0x38] sm:$0xf]
    %v54 = vld [vmem:[%s1 + $0x3c] sm:$0xf]
    %v55 = vld [vmem:[%s1 + $0x40] sm:$0xf]
    %v56 = vld [vmem:[%s1 + $0x44] sm:$0xf]
    %v57 = vld [vmem:[%s1 + $0x48] sm:$0xf]
    %v58 = vld [vmem:[%s1 + $0x4c] sm:$0xf]
    %v59 = vld [vmem:[%s1 + $0x50] sm:$0xf]
    %v60 = vld [vmem:[%s1 + $0x54] sm:$0xf]
    %v61 = vld [vmem:[%s1 + $0x58] sm:$0xf]
    %v62 = vld [vmem:[%s1 + $0x5c] sm:$0xf]
    %v63 = vld [vmem:[%s1 + $0x60] sm:$0xf]
    %v64 = vld [vmem:[%s1 + $0x64] sm:$0xf]
    %v65 = vld [vmem:[%s1 + $0x68] sm:$0xf]
    %v66 = vld [vmem:[%s1 + $0x6c] sm:$0xf]
    %v67 = vld [vmem:[%s1 + $0x70] sm:$0xf]
    %v68 = vld [vmem:[%s1 + $0x74] sm:$0xf]
    %v69 = vld [vmem:[%s1 + $0x78] sm:$0xf]
    %v70 = vld [vmem:[%s1 + $0x7c] sm:$0xf]
    %v71 = vld [vmem:[%s1 + $0x80] sm:$0xf]
    %v72 = vld [vmem:[%s1 + $0x84] sm:$0xf]
    %v73 = vld [vmem:[%s1 + $0x88] sm:$0xf]
    %v74 = vld [vmem:[%s1 + $0x8c] sm:$0xf]
    %v75 = vld [vmem:[%s1 + $0x90] sm:$0xf]
    %v76 = vld [vmem:[%s1 + $0x94] sm:$0xf]
    %v77 = vld [vmem:[%s1 + $0x98] sm:$0xf]
    %v78 = vld [vmem:[%s1 + $0x9c] sm:$0xf]
    %v79 = vld [vmem:[%s1 + $0xa0] sm:$0xf]
    %v80 = vld [vmem:[%s1 + $0xa4] sm:$0xf]
    %v81 = vld [vmem:[%s1 + $0xa8] sm:$0xf]
    %v82 = vld [vmem:[%s1 + $0xac] sm:$0xf]
    %v83 = vld [vmem:[%s1 + $0xb0] sm:$0xf]
    %v84 = vld [vmem:[%s1 + $0xb4] sm:$0xf]
    %v85 = vld [vmem:[%s1 + $0xb8] sm:$0xf]
    %v86 = vld [vmem:[%s1 + $0xbc] sm:$0xf]
    %v87 = vld [vmem:[%s1 + $0xc0] sm:$0xf]
    %v88 = vld [vmem:[%s1 + $0xc4] sm:$0xf]
    %v89 = vld [vmem:[%s1 + $0xc8] sm:$0xf]
    %v90 = vld [vmem:[%s1 + $0xcc] sm:$0xf]
    %v91 = vld [vmem:[%s1 + $0xd0] sm:$0xf]
    %v92 = vld [vmem:[%s1 + $0xd4] sm:$0xf]
    %v93 = vld [vmem:[%s1 + $0xd8] sm:$0xf]
    %v94 = vld [vmem:[%s1 + $0xdc] sm:$0xf]
    %v95 = vld [vmem:[%s1 + $0xe0] sm:$0xf]
    %v96 = vld [vmem:[%s1 + $0xe4] sm:$0xf]
    %v97 = vld [vmem:[%s1 + $0xe8] sm:$0xf]
    %v98 = vld [vmem:[%s1 + $0xec] sm:$0xf]
    %v99 = vld [vmem:[%s1 + $0xf0] sm:$0xf]
    %v100 = vld [vmem:[%s1 + $0xf4] sm:$0xf]
    %v101 = vld [vmem:[%s1 + $0xf8] sm:$0xf]
    %v102 = vld [vmem:[%s1 + $0xfc] sm:$0xf]
    %v103 = vld [vmem:[%s2] sm:$0x1]
    %v105 = vperm.slane %v103, 0
    %v171 = vunpack.c.l.b16 %v39
    %v172 = vunpack.c.l.b16 %v40
    %v173 = vunpack.c.l.b16 %v41
    %v174 = vunpack.c.l.b16 %v42
    %v175 = vunpack.c.l.b16 %v43
    %v176 = vunpack.c.l.b16 %v44
    %v177 = vunpack.c.l.b16 %v45
    %v178 = vunpack.c.l.b16 %v46
    %v179 = vunpack.c.l.b16 %v47
    %v180 = vunpack.c.l.b16 %v48
    %v181 = vunpack.c.l.b16 %v49
    %v182 = vunpack.c.l.b16 %v50
    %v183 = vunpack.c.l.b16 %v51
    %v184 = vunpack.c.l.b16 %v52
    %v185 = vunpack.c.l.b16 %v53
    %v186 = vunpack.c.l.b16 %v54
    %v187 = vunpack.c.l.b16 %v55
    %v188 = vunpack.c.l.b16 %v56
    %v189 = vunpack.c.l.b16 %v57
    %v190 = vunpack.c.l.b16 %v58
    %v191 = vunpack.c.l.b16 %v59
    %v192 = vunpack.c.l.b16 %v60
    %v193 = vunpack.c.l.b16 %v61
    %v194 = vunpack.c.l.b16 %v62
    %v195 = vunpack.c.l.b16 %v63
    %v196 = vunpack.c.l.b16 %v64
    %v197 = vunpack.c.l.b16 %v65
    %v198 = vunpack.c.l.b16 %v66
    %v199 = vunpack.c.l.b16 %v67
    %v200 = vunpack.c.l.b16 %v68
    %v201 = vunpack.c.l.b16 %v69
    %v202 = vunpack.c.l.b16 %v70
    %v203 = vunpack.c.l.b16 %v71
    %v204 = vunpack.c.l.b16 %v72
    %v205 = vunpack.c.l.b16 %v73
    %v206 = vunpack.c.l.b16 %v74
    %v207 = vunpack.c.l.b16 %v75
    %v208 = vunpack.c.l.b16 %v76
    %v209 = vunpack.c.l.b16 %v77
    %v210 = vunpack.c.l.b16 %v78
    %v211 = vunpack.c.l.b16 %v79
    %v212 = vunpack.c.l.b16 %v80
    %v213 = vunpack.c.l.b16 %v81
    %v214 = vunpack.c.l.b16 %v82
    %v215 = vunpack.c.l.b16 %v83
    %v216 = vunpack.c.l.b16 %v84
    %v217 = vunpack.c.l.b16 %v85
    %v218 = vunpack.c.l.b16 %v86
    %v219 = vunpack.c.l.b16 %v87
    %v220 = vunpack.c.l.b16 %v88
    %v221 = vunpack.c.l.b16 %v89
    %v222 = vunpack.c.l.b16 %v90
    %v223 = vunpack.c.l.b16 %v91
    %v224 = vunpack.c.l.b16 %v92
    %v225 = vunpack.c.l.b16 %v93
    %v226 = vunpack.c.l.b16 %v94
    %v227 = vunpack.c.l.b16 %v95
    %v228 = vunpack.c.l.b16 %v96
    %v229 = vunpack.c.l.b16 %v97
    %v230 = vunpack.c.l.b16 %v98
    %v231 = vunpack.c.l.b16 %v99
    %v232 = vunpack.c.l.b16 %v100
    %v233 = vunpack.c.l.b16 %v101
    %v234 = vunpack.c.l.b16 %v102
    %v235 = vpack.c.b16 %v172, %v171
    %v236 = vpack.c.b16 %v174, %v173
    %v237 = vpack.c.b16 %v176, %v175
    %v238 = vpack.c.b16 %v178, %v177
    %v239 = vpack.c.b16 %v180, %v179
    %v240 = vpack.c.b16 %v182, %v181
    %v241 = vpack.c.b16 %v184, %v183
    %v242 = vpack.c.b16 %v186, %v185
    %v243 = vpack.c.b16 %v188, %v187
    %v244 = vpack.c.b16 %v190, %v189
    %v245 = vpack.c.b16 %v192, %v191
    %v246 = vpack.c.b16 %v194, %v193
    %v247 = vpack.c.b16 %v196, %v195
    %v248 = vpack.c.b16 %v198, %v197
    %v249 = vpack.c.b16 %v200, %v199
    %v250 = vpack.c.b16 %v202, %v201
    %v251 = vpack.c.b16 %v204, %v203
    %v252 = vpack.c.b16 %v206, %v205
    %v253 = vpack.c.b16 %v208, %v207
    %v254 = vpack.c.b16 %v210, %v209
    %v255 = vpack.c.b16 %v212, %v211
    %v256 = vpack.c.b16 %v214, %v213
    %v257 = vpack.c.b16 %v216, %v215
    %v258 = vpack.c.b16 %v218, %v217
    %v259 = vpack.c.b16 %v220, %v219
    %v260 = vpack.c.b16 %v222, %v221
    %v261 = vpack.c.b16 %v224, %v223
    %v262 = vpack.c.b16 %v226, %v225
    %v263 = vpack.c.b16 %v228, %v227
    %v264 = vpack.c.b16 %v230, %v229
    %v265 = vpack.c.b16 %v232, %v231
    %v266 = vpack.c.b16 %v234, %v233
    %299 = vmatpush.bf16.msra.mxu0 %v242
    %300 = vmatpush.bf16.msra.mxu0 %v241
    %301 = vmatpush.bf16.msra.mxu0 %v240
    %302 = vmatpush.bf16.msra.mxu0 %v239
    %303 = vmatpush.bf16.msra.mxu0 %v238
    %304 = vmatpush.bf16.msra.mxu0 %v237
    %305 = vmatpush.bf16.msra.mxu0 %v236
    %306 = vmatpush.bf16.msra.mxu0 %v235
    %307 = vmatmul.bf16.gmra.mxu0 %v35
    %v308 = vpop.f32.mrf.mxu0
    %v309 = vadd.f32 %v105, %v308
    %v310 = vpop.f32.mrf.mxu0
    %311 = vdwg.mxu0
    %312 = vmatpush.bf16.msra.mxu0 %v250
    %313 = vmatpush.bf16.msra.mxu0 %v249
    %314 = vmatpush.bf16.msra.mxu0 %v248
    %315 = vmatpush.bf16.msra.mxu0 %v247
    %316 = vmatpush.bf16.msra.mxu0 %v246
    %317 = vmatpush.bf16.msra.mxu0 %v245
    %318 = vmatpush.bf16.msra.mxu0 %v244
    %319 = vmatpush.bf16.msra.mxu0 %v243
    %320 = vmatmul.bf16.gmra.mxu0 %v36
    %v321 = vpop.f32.mrf.mxu0
    %v322 = vadd.f32 %v309, %v321
    %v323 = vpop.f32.mrf.mxu0
    %324 = vdwg.mxu0
    %325 = vmatpush.bf16.msra.mxu0 %v258
    %326 = vmatpush.bf16.msra.mxu0 %v257
    %327 = vmatpush.bf16.msra.mxu0 %v256
    %328 = vmatpush.bf16.msra.mxu0 %v255
    %329 = vmatpush.bf16.msra.mxu0 %v254
    %330 = vmatpush.bf16.msra.mxu0 %v253
    %331 = vmatpush.bf16.msra.mxu0 %v252
    %332 = vmatpush.bf16.msra.mxu0 %v251
    %333 = vmatmul.bf16.gmra.mxu0 %v37
    %v334 = vpop.f32.mrf.mxu0
    %v335 = vadd.f32 %v322, %v334
    %v336 = vpop.f32.mrf.mxu0
    %337 = vdwg.mxu0
    %338 = vmatpush.bf16.msra.mxu0 %v266
    %339 = vmatpush.bf16.msra.mxu0 %v265
    %340 = vmatpush.bf16.msra.mxu0 %v264
    %341 = vmatpush.bf16.msra.mxu0 %v263
    %342 = vmatpush.bf16.msra.mxu0 %v262
    %343 = vmatpush.bf16.msra.mxu0 %v261
    %344 = vmatpush.bf16.msra.mxu0 %v260
    %345 = vmatpush.bf16.msra.mxu0 %v259
    %346 = vmatmul.bf16.gmra.mxu0 %v38
    %v347 = vpop.f32.mrf.mxu0
    %v348 = vadd.f32 %v335, %v347
    %v349 = vpop.f32.mrf.mxu0
    %350 = vdwg.mxu0
    %v351 = vpack.c.bf16 %v348, %v348
    %352 = vst [vmem:[%s3] sm:$0xf] %v351
    %v353 = vlaneseq
    %v354 = vshrl.u32 %v353, 7
    %s355 = smul.u32 0, 8
    %s356 = ssub.s32 8, %s355
    %v357 = vstv %s356
    %vm358 = vcmp.lt.s32.totalorder %v354, %v357
    %v359 = vsel %vm358, %v348, 0.0
    %v360 = vrot.slane %v359, 4
    %v361 = vadd.f32 %v359, %v360
    %v362 = vrot.slane %v361, 2
    %v363 = vadd.f32 %v361, %v362
    %v364 = vrot.slane %v363, 1
    %v365 = vadd.f32 %v363, %v364
    %v366 = vmul.f32 %v359, %v359
    %v367 = vrot.slane %v366, 4
    %v368 = vadd.f32 %v366, %v367
    %v369 = vrot.slane %v368, 2
    %v370 = vadd.f32 %v368, %v369
    %v371 = vrot.slane %v370, 1
    %v372 = vadd.f32 %v370, %v371
    %vm373 = vcmp.eq.s32.totalorder %v354, 0
    %vm374 = vcmp.eq.s32.totalorder %v354, 1
    %v375 = vsel %vm374, %v372, 0.0
    %v376 = vsel %vm373, %v365, %v375
    %377 = vst [vmem:[#allocation2] sm:$0xff] %v376
    // Predicated region
    $region14: #{unet_forward.8} parent=1 // pred_check
      _
    $region15: #{unet_forward.8} parent=1 // pred_check_branch
      %379 = sbr.rel (0) target = $region17
    $region16: #{unet_forward.8} parent=1 // pred_region
      _
    $region17: #{unet_forward.8} parent=1 // pred_fallthru
      _
    // Predicated region
    $region18: #{unet_forward.8} parent=1 // pred_check
      _
    $region19: #{unet_forward.8} parent=1 // pred_check_branch
      %381 = sbr.rel (0) target = $region21
    $region20: #{unet_forward.8} parent=1 // pred_region
      %383 = vsyncadd [#allocation3], 0
      %s385 = sshll.u32 [#allocation2], 4
      %s386 = int_to_ptr.vmem [resolvable:$true] %s385
      %s387 = sshll.u32 %s4, 4
      %s388 = int_to_ptr.hbm [resolvable:$true] %s387
      %390 = dma.vmem_to_hbm [thread:$0]  %s386, 128, %s388, [#allocation3]
    $region21: #{unet_forward.8} parent=1 // pred_fallthru
      _
    // Predicated region
    $region22: #{unet_forward.8} parent=1 // pred_check
      _
    $region23: #{unet_forward.8} parent=1 // pred_check_branch
      %392 = sbr.rel (0) target = $region25
    $region24: #{unet_forward.8} parent=1 // pred_region
      _
    $region25: #{unet_forward.8} parent=1 // pred_fallthru
      _
    // Predicated region
    $region26: #{unet_forward.8} parent=1 // pred_check
      _
    $region27: #{unet_forward.8} parent=1 // pred_check_branch
      %394 = sbr.rel (0) target = $region29
    $region28: #{unet_forward.8} parent=1 // pred_region
      %396 = dma.done [#allocation3], 128
    $region29: #{unet_forward.8} parent=1 // pred_fallthru
      _
    %397 = vsyncpa [#allocation3], 1

// kernel: unet_forward.10
$region0: #{unet_forward.10}
  #allocation0 [shape = 'u32[]', space=smem, size = 0x4, offset = 0x4, fixed_abs, tag = 'smem constant byte address 0x4 - core index']
  #allocation1 [shape = 'u32[72,128]{1,0:T(1,128)}', space=vmem, size = 0x9000, scoped, tag = 'internal scratch']
  %s0 = inlined_call_operand.vmem [shape: bf16[32,576], index: 0, kind: input, shape index: {}]
  %s1 = inlined_call_operand.vmem [shape: bf16[576,128], index: 1, kind: input, shape index: {}]
  %s2 = inlined_call_operand.vmem [shape: f32[1,128], index: 2, kind: input, shape index: {}]
  %s3 = inlined_call_operand.vmem [shape: bf16[32,128], index: 3, kind: output, shape index: {0}]
  %s4 = inlined_call_operand.vmem [shape: f32[8,128], index: 4, kind: output, shape index: {1}]
  %5 = xla_tuple %s3, %s4
  %s6 = sld [smem:[#allocation0]]
  $region30: #{unet_forward.10} parent=0
    _
  %s8 = ssub.s32 1, %s6
  %s9 = scalar_select 0, %s8, %s6
  // Predicated region
  $region2: #{unet_forward.10} parent=0 // pred_check
    _
  $region3: #{unet_forward.10} parent=0 // pred_check_branch
    %11 = sbr.rel (0) target = $region5
  $region4: #{unet_forward.10} parent=0 // pred_region
    _
  $region5: #{unet_forward.10} parent=0 // pred_fallthru
    _
  // Predicated region
  $region6: #{unet_forward.10} parent=0 // pred_check
    _
  $region7: #{unet_forward.10} parent=0 // pred_check_branch
    %13 = sbr.rel (0) target = $region9
  $region8: #{unet_forward.10} parent=0 // pred_region
    _
  $region9: #{unet_forward.10} parent=0 // pred_fallthru
    _
  // Predicated region
  $region10: #{unet_forward.10} parent=0 // pred_check
    _
  $region11: #{unet_forward.10} parent=0 // pred_check_branch
    %15 = sbr.rel (0) target = $region13
  $region12: #{unet_forward.10} parent=0 // pred_region
    _
  $region13: #{unet_forward.10} parent=0 // pred_fallthru
    _
  %v17 = vld [vmem:[%s0] sm:$0xff]
  %v18 = vld [vmem:[%s0 + $0x8] sm:$0xff]
  %v19 = vld [vmem:[%s0 + $0x10] sm:$0xf]
  %v20 = vld [vmem:[%s0 + $0x14] sm:$0xff]
  %v21 = vld [vmem:[%s0 + $0x1c] sm:$0xff]
  %v22 = vld [vmem:[%s0 + $0x24] sm:$0xf]
  %v23 = vld [vmem:[%s0 + $0x28] sm:$0xff]
  %v24 = vld [vmem:[%s0 + $0x30] sm:$0xff]
  %v25 = vld [vmem:[%s0 + $0x38] sm:$0xf]
  %v26 = vld [vmem:[%s0 + $0x3c] sm:$0xff]
  %v27 = vld [vmem:[%s0 + $0x44] sm:$0xff]
  %v28 = vld [vmem:[%s0 + $0x4c] sm:$0xf]
  %v29 = vunpack.c.l.bf16 %v17
  %v30 = vunpack.c.h.bf16 %v17
  %v31 = vunpack.c.l.bf16 %v18
  %v32 = vunpack.c.h.bf16 %v18
  %v33 = vunpack.c.l.bf16 %v19
  %v34 = vunpack.c.l.bf16 %v20
  %v35 = vunpack.c.h.bf16 %v20
  %v36 = vunpack.c.l.bf16 %v21
  %v37 = vunpack.c.h.bf16 %v21
  %v38 = vunpack.c.l.bf16 %v22
  %v39 = vunpack.c.l.bf16 %v23
  %v40 = vunpack.c.h.bf16 %v23
  %v41 = vunpack.c.l.bf16 %v24
  %v42 = vunpack.c.h.bf16 %v24
  %v43 = vunpack.c.l.bf16 %v25
  %v44 = vunpack.c.l.bf16 %v26
  %v45 = vunpack.c.h.bf16 %v26
  %v46 = vunpack.c.l.bf16 %v27
  %v47 = vunpack.c.h.bf16 %v27
  %v48 = vunpack.c.l.bf16 %v28
  %v49 = vmax.f32 %v29, 0.0
  %v50 = vmax.f32 %v30, 0.0
  %v51 = vmax.f32 %v31, 0.0
  %v52 = vmax.f32 %v32, 0.0
  %v53 = vmax.f32 %v33, 0.0
  %v54 = vmax.f32 %v34, 0.0
  %v55 = vmax.f32 %v35, 0.0
  %v56 = vmax.f32 %v36, 0.0
  %v57 = vmax.f32 %v37, 0.0
  %v58 = vmax.f32 %v38, 0.0
  %v59 = vmax.f32 %v39, 0.0
  %v60 = vmax.f32 %v40, 0.0
  %v61 = vmax.f32 %v41, 0.0
  %v62 = vmax.f32 %v42, 0.0
  %v63 = vmax.f32 %v43, 0.0
  %v64 = vmax.f32 %v44, 0.0
  %v65 = vmax.f32 %v45, 0.0
  %v66 = vmax.f32 %v46, 0.0
  %v67 = vmax.f32 %v47, 0.0
  %v68 = vmax.f32 %v48, 0.0
  %v69 = vpack.c.bf16 %v54, %v49
  %v70 = vpack.c.bf16 %v55, %v50
  %v71 = vpack.c.bf16 %v56, %v51
  %v72 = vpack.c.bf16 %v57, %v52
  %v73 = vpack.c.bf16 %v58, %v53
  %v74 = vpack.c.bf16 %v64, %v59
  %v75 = vpack.c.bf16 %v65, %v60
  %v76 = vpack.c.bf16 %v66, %v61
  %v77 = vpack.c.bf16 %v67, %v62
  %v78 = vpack.c.bf16 %v68, %v63
  %v79 = vld [vmem:[%s1] sm:$0xf]
  %v80 = vld [vmem:[%s1 + $0x4] sm:$0xf]
  %v81 = vld [vmem:[%s1 + $0x8] sm:$0xf]
  %v82 = vld [vmem:[%s1 + $0xc] sm:$0xf]
  %v83 = vld [vmem:[%s1 + $0x10] sm:$0xf]
  %v84 = vld [vmem:[%s1 + $0x14] sm:$0xf]
  %v85 = vld [vmem:[%s1 + $0x18] sm:$0xf]
  %v86 = vld [vmem:[%s1 + $0x1c] sm:$0xf]
  %v87 = vld [vmem:[%s1 + $0x20] sm:$0xf]
  %v88 = vld [vmem:[%s1 + $0x24] sm:$0xf]
  %v89 = vld [vmem:[%s1 + $0x28] sm:$0xf]
  %v90 = vld [vmem:[%s1 + $0x2c] sm:$0xf]
  %v91 = vld [vmem:[%s1 + $0x30] sm:$0xf]
  %v92 = vld [vmem:[%s1 + $0x34] sm:$0xf]
  %v93 = vld [vmem:[%s1 + $0x38] sm:$0xf]
  %v94 = vld [vmem:[%s1 + $0x3c] sm:$0xf]
  %v95 = vld [vmem:[%s1 + $0x40] sm:$0xf]
  %v96 = vld [vmem:[%s1 + $0x44] sm:$0xf]
  %v97 = vld [vmem:[%s1 + $0x48] sm:$0xf]
  %v98 = vld [vmem:[%s1 + $0x4c] sm:$0xf]
  %v99 = vld [vmem:[%s1 + $0x50] sm:$0xf]
  %v100 = vld [vmem:[%s1 + $0x54] sm:$0xf]
  %v101 = vld [vmem:[%s1 + $0x58] sm:$0xf]
  %v102 = vld [vmem:[%s1 + $0x5c] sm:$0xf]
  %v103 = vld [vmem:[%s1 + $0x60] sm:$0xf]
  %v104 = vld [vmem:[%s1 + $0x64] sm:$0xf]
  %v105 = vld [vmem:[%s1 + $0x68] sm:$0xf]
  %v106 = vld [vmem:[%s1 + $0x6c] sm:$0xf]
  %v107 = vld [vmem:[%s1 + $0x70] sm:$0xf]
  %v108 = vld [vmem:[%s1 + $0x74] sm:$0xf]
  %v109 = vld [vmem:[%s1 + $0x78] sm:$0xf]
  %v110 = vld [vmem:[%s1 + $0x7c] sm:$0xf]
  %v111 = vld [vmem:[%s1 + $0x80] sm:$0xf]
  %v112 = vld [vmem:[%s1 + $0x84] sm:$0xf]
  %v113 = vld [vmem:[%s1 + $0x88] sm:$0xf]
  %v114 = vld [vmem:[%s1 + $0x8c] sm:$0xf]
  %v115 = vld [vmem:[%s1 + $0x90] sm:$0xf]
  %v116 = vld [vmem:[%s1 + $0x94] sm:$0xf]
  %v117 = vld [vmem:[%s1 + $0x98] sm:$0xf]
  %v118 = vld [vmem:[%s1 + $0x9c] sm:$0xf]
  %v119 = vld [vmem:[%s1 + $0xa0] sm:$0xf]
  %v120 = vld [vmem:[%s1 + $0xa4] sm:$0xf]
  %v121 = vld [vmem:[%s1 + $0xa8] sm:$0xf]
  %v122 = vld [vmem:[%s1 + $0xac] sm:$0xf]
  %v123 = vld [vmem:[%s1 + $0xb0] sm:$0xf]
  %v124 = vld [vmem:[%s1 + $0xb4] sm:$0xf]
  %v125 = vld [vmem:[%s1 + $0xb8] sm:$0xf]
  %v126 = vld [vmem:[%s1 + $0xbc] sm:$0xf]
  %v127 = vld [vmem:[%s1 + $0xc0] sm:$0xf]
  %v128 = vld [vmem:[%s1 + $0xc4] sm:$0xf]
  %v129 = vld [vmem:[%s1 + $0xc8] sm:$0xf]
  %v130 = vld [vmem:[%s1 + $0xcc] sm:$0xf]
  %v131 = vld [vmem:[%s1 + $0xd0] sm:$0xf]
  %v132 = vld [vmem:[%s1 + $0xd4] sm:$0xf]
  %v133 = vld [vmem:[%s1 + $0xd8] sm:$0xf]
  %v134 = vld [vmem:[%s1 + $0xdc] sm:$0xf]
  %v135 = vld [vmem:[%s1 + $0xe0] sm:$0xf]
  %v136 = vld [vmem:[%s1 + $0xe4] sm:$0xf]
  %v137 = vld [vmem:[%s1 + $0xe8] sm:$0xf]
  %v138 = vld [vmem:[%s1 + $0xec] sm:$0xf]
  %v139 = vld [vmem:[%s1 + $0xf0] sm:$0xf]
  %v140 = vld [vmem:[%s1 + $0xf4] sm:$0xf]
  %v141 = vld [vmem:[%s1 + $0xf8] sm:$0xf]
  %v142 = vld [vmem:[%s1 + $0xfc] sm:$0xf]
  %v143 = vld [vmem:[%s1 + $0x100] sm:$0xf]
  %v144 = vld [vmem:[%s1 + $0x104] sm:$0xf]
  %v145 = vld [vmem:[%s1 + $0x108] sm:$0xf]
  %v146 = vld [vmem:[%s1 + $0x10c] sm:$0xf]
  %v147 = vld [vmem:[%s1 + $0x110] sm:$0xf]
  %v148 = vld [vmem:[%s1 + $0x114] sm:$0xf]
  %v149 = vld [vmem:[%s1 + $0x118] sm:$0xf]
  %v150 = vld [vmem:[%s1 + $0x11c] sm:$0xf]
  %v151 = vld [vmem:[%s2] sm:$0x1]
  %v153 = vperm.slane %v151, 0
  %v227 = vunpack.c.l.b16 %v79
  %v228 = vunpack.c.l.b16 %v80
  %v229 = vunpack.c.l.b16 %v81
  %v230 = vunpack.c.l.b16 %v82
  %v231 = vunpack.c.l.b16 %v83
  %v232 = vunpack.c.l.b16 %v84
  %v233 = vunpack.c.l.b16 %v85
  %v234 = vunpack.c.l.b16 %v86
  %v235 = vunpack.c.l.b16 %v87
  %v236 = vunpack.c.l.b16 %v88
  %v237 = vunpack.c.l.b16 %v89
  %v238 = vunpack.c.l.b16 %v90
  %v239 = vunpack.c.l.b16 %v91
  %v240 = vunpack.c.l.b16 %v92
  %v241 = vunpack.c.l.b16 %v93
  %v242 = vunpack.c.l.b16 %v94
  %v243 = vunpack.c.l.b16 %v95
  %v244 = vunpack.c.l.b16 %v96
  %v245 = vunpack.c.l.b16 %v97
  %v246 = vunpack.c.l.b16 %v98
  %v247 = vunpack.c.l.b16 %v99
  %v248 = vunpack.c.l.b16 %v100
  %v249 = vunpack.c.l.b16 %v101
  %v250 = vunpack.c.l.b16 %v102
  %v251 = vunpack.c.l.b16 %v103
  %v252 = vunpack.c.l.b16 %v104
  %v253 = vunpack.c.l.b16 %v105
  %v254 = vunpack.c.l.b16 %v106
  %v255 = vunpack.c.l.b16 %v107
  %v256 = vunpack.c.l.b16 %v108
  %v257 = vunpack.c.l.b16 %v109
  %v258 = vunpack.c.l.b16 %v110
  %v259 = vunpack.c.l.b16 %v111
  %v260 = vunpack.c.l.b16 %v112
  %v261 = vunpack.c.l.b16 %v113
  %v262 = vunpack.c.l.b16 %v114
  %v263 = vunpack.c.l.b16 %v115
  %v264 = vunpack.c.l.b16 %v116
  %v265 = vunpack.c.l.b16 %v117
  %v266 = vunpack.c.l.b16 %v118
  %v267 = vunpack.c.l.b16 %v119
  %v268 = vunpack.c.l.b16 %v120
  %v269 = vunpack.c.l.b16 %v121
  %v270 = vunpack.c.l.b16 %v122
  %v271 = vunpack.c.l.b16 %v123
  %v272 = vunpack.c.l.b16 %v124
  %v273 = vunpack.c.l.b16 %v125
  %v274 = vunpack.c.l.b16 %v126
  %v275 = vunpack.c.l.b16 %v127
  %v276 = vunpack.c.l.b16 %v128
  %v277 = vunpack.c.l.b16 %v129
  %v278 = vunpack.c.l.b16 %v130
  %v279 = vunpack.c.l.b16 %v131
  %v280 = vunpack.c.l.b16 %v132
  %v281 = vunpack.c.l.b16 %v133
  %v282 = vunpack.c.l.b16 %v134
  %v283 = vunpack.c.l.b16 %v135
  %v284 = vunpack.c.l.b16 %v136
  %v285 = vunpack.c.l.b16 %v137
  %v286 = vunpack.c.l.b16 %v138
  %v287 = vunpack.c.l.b16 %v139
  %v288 = vunpack.c.l.b16 %v140
  %v289 = vunpack.c.l.b16 %v141
  %v290 = vunpack.c.l.b16 %v142
  %v291 = vunpack.c.l.b16 %v143
  %v292 = vunpack.c.l.b16 %v144
  %v293 = vunpack.c.l.b16 %v145
  %v294 = vunpack.c.l.b16 %v146
  %v295 = vunpack.c.l.b16 %v147
  %v296 = vunpack.c.l.b16 %v148
  %v297 = vunpack.c.l.b16 %v149
  %v298 = vunpack.c.l.b16 %v150
  %v299 = vpack.c.b16 %v228, %v227
  %v300 = vpack.c.b16 %v230, %v229
  %v301 = vpack.c.b16 %v232, %v231
  %v302 = vpack.c.b16 %v234, %v233
  %v303 = vpack.c.b16 %v236, %v235
  %v304 = vpack.c.b16 %v238, %v237
  %v305 = vpack.c.b16 %v240, %v239
  %v306 = vpack.c.b16 %v242, %v241
  %v307 = vpack.c.b16 %v244, %v243
  %v308 = vpack.c.b16 %v246, %v245
  %v309 = vpack.c.b16 %v248, %v247
  %v310 = vpack.c.b16 %v250, %v249
  %v311 = vpack.c.b16 %v252, %v251
  %v312 = vpack.c.b16 %v254, %v253
  %v313 = vpack.c.b16 %v256, %v255
  %v314 = vpack.c.b16 %v258, %v257
  %v315 = vpack.c.b16 %v260, %v259
  %v316 = vpack.c.b16 %v262, %v261
  %v317 = vpack.c.b16 %v264, %v263
  %v318 = vpack.c.b16 %v266, %v265
  %v319 = vpack.c.b16 %v268, %v267
  %v320 = vpack.c.b16 %v270, %v269
  %v321 = vpack.c.b16 %v272, %v271
  %v322 = vpack.c.b16 %v274, %v273
  %v323 = vpack.c.b16 %v276, %v275
  %v324 = vpack.c.b16 %v278, %v277
  %v325 = vpack.c.b16 %v280, %v279
  %v326 = vpack.c.b16 %v282, %v281
  %v327 = vpack.c.b16 %v284, %v283
  %v328 = vpack.c.b16 %v286, %v285
  %v329 = vpack.c.b16 %v288, %v287
  %v330 = vpack.c.b16 %v290, %v289
  %v331 = vpack.c.b16 %v292, %v291
  %v332 = vpack.c.b16 %v294, %v293
  %v333 = vpack.c.b16 %v296, %v295
  %v334 = vpack.c.b16 %v298, %v297
  %vm371 = vcmask 523264
  %v373 = vsel %vm371, %v73, 0
  %v376 = vsel %vm371, %v78, 0
  %378 = vmatpush.bf16.msra.mxu0 %v306
  %379 = vmatpush.bf16.msra.mxu0 %v305
  %380 = vmatpush.bf16.msra.mxu0 %v304
  %381 = vmatpush.bf16.msra.mxu0 %v303
  %382 = vmatpush.bf16.msra.mxu0 %v302
  %383 = vmatpush.bf16.msra.mxu0 %v301
  %384 = vmatpush.bf16.msra.mxu0 %v300
  %385 = vmatpush.bf16.msra.mxu0 %v299
  %386 = vmatmul.bf16.gmra.mxu0 %v69
  %v387 = vpop.f32.mrf.mxu0
  %v388 = vadd.f32 %v153, %v387
  %v389 = vpop.f32.mrf.mxu0
  %v390 = vadd.f32 %v153, %v389
  %391 = vmatmul.bf16.gmra.mxu0 %v74
  %v392 = vpop.f32.mrf.mxu0
  %v393 = vadd.f32 %v153, %v392
  %v394 = vpop.f32.mrf.mxu0
  %v395 = vadd.f32 %v153, %v394
  %396 = vdwg.mxu0
  %397 = vmatpush.bf16.msra.mxu0 %v314
  %398 = vmatpush.bf16.msra.mxu0 %v313
  %399 = vmatpush.bf16.msra.mxu0 %v312
  %400 = vmatpush.bf16.msra.mxu0 %v311
  %401 = vmatpush.bf16.msra.mxu0 %v310
  %402 = vmatpush.bf16.msra.mxu0 %v309
  %403 = vmatpush.bf16.msra.mxu0 %v308
  %404 = vmatpush.bf16.msra.mxu0 %v307
  %405 = vmatmul.bf16.gmra.mxu0 %v70
  %v406 = vpop.f32.mrf.mxu0
  %v407 = vadd.f32 %v388, %v406
  %v408 = vpop.f32.mrf.mxu0
  %v409 = vadd.f32 %v390, %v408
  %410 = vmatmul.bf16.gmra.mxu0 %v75
  %v411 = vpop.f32.mrf.mxu0
  %v412 = vadd.f32 %v393, %v411
  %v413 = vpop.f32.mrf.mxu0
  %v414 = vadd.f32 %v395, %v413
  %415 = vdwg.mxu0
  %416 = vmatpush.bf16.msra.mxu0 %v322
  %417 = vmatpush.bf16.msra.mxu0 %v321
  %418 = vmatpush.bf16.msra.mxu0 %v320
  %419 = vmatpush.bf16.msra.mxu0 %v319
  %420 = vmatpush.bf16.msra.mxu0 %v318
  %421 = vmatpush.bf16.msra.mxu0 %v317
  %422 = vmatpush.bf16.msra.mxu0 %v316
  %423 = vmatpush.bf16.msra.mxu0 %v315
  %424 = vmatmul.bf16.gmra.mxu0 %v71
  %v425 = vpop.f32.mrf.mxu0
  %v426 = vadd.f32 %v407, %v425
  %v427 = vpop.f32.mrf.mxu0
  %v428 = vadd.f32 %v409, %v427
  %429 = vmatmul.bf16.gmra.mxu0 %v76
  %v430 = vpop.f32.mrf.mxu0
  %v431 = vadd.f32 %v412, %v430
  %v432 = vpop.f32.mrf.mxu0
  %v433 = vadd.f32 %v414, %v432
  %434 = vdwg.mxu0
  %435 = vmatpush.bf16.msra.mxu0 %v330
  %436 = vmatpush.bf16.msra.mxu0 %v329
  %437 = vmatpush.bf16.msra.mxu0 %v328
  %438 = vmatpush.bf16.msra.mxu0 %v327
  %439 = vmatpush.bf16.msra.mxu0 %v326
  %440 = vmatpush.bf16.msra.mxu0 %v325
  %441 = vmatpush.bf16.msra.mxu0 %v324
  %442 = vmatpush.bf16.msra.mxu0 %v323
  %443 = vmatmul.bf16.gmra.mxu0 %v72
  %v444 = vpop.f32.mrf.mxu0
  %v445 = vadd.f32 %v426, %v444
  %v446 = vpop.f32.mrf.mxu0
  %v447 = vadd.f32 %v428, %v446
  %448 = vmatmul.bf16.gmra.mxu0 %v77
  %v449 = vpop.f32.mrf.mxu0
  %v450 = vadd.f32 %v431, %v449
  %v451 = vpop.f32.mrf.mxu0
  %v452 = vadd.f32 %v433, %v451
  %453 = vdwg.mxu0
  %454 = vmatpush.bf16.msra.mxu0 0
  %455 = vmatpush.bf16.msra.mxu0 0
  %456 = vmatpush.bf16.msra.mxu0 0
  %457 = vmatpush.bf16.msra.mxu0 0
  %458 = vmatpush.bf16.msra.mxu0 %v334
  %459 = vmatpush.bf16.msra.mxu0 %v333
  %460 = vmatpush.bf16.msra.mxu0 %v332
  %461 = vmatpush.bf16.msra.mxu0 %v331
  %462 = vmatmul.bf16.gmra.mxu0 %v373
  %v463 = vpop.f32.mrf.mxu0
  %v464 = vadd.f32 %v445, %v463
  %v465 = vpop.f32.mrf.mxu0
  %v466 = vadd.f32 %v447, %v465
  %467 = vmatmul.bf16.gmra.mxu0 %v376
  %v468 = vpop.f32.mrf.mxu0
  %v469 = vadd.f32 %v450, %v468
  %v470 = vpop.f32.mrf.mxu0
  %v471 = vadd.f32 %v452, %v470
  %472 = vdwg.mxu0
  %v473 = vpack.c.bf16 %v464, %v464
  %v474 = vpack.c.bf16 %v466, %v466
  %v475 = vpack.c.bf16 %v469, %v469
  %v476 = vpack.c.bf16 %v471, %v471
  %477 = vst [vmem:[%s3] sm:$0xf] %v473
  %478 = vst [vmem:[%s3 + $0x4] sm:$0xf] %v474
  %479 = vst [vmem:[%s3 + $0x8] sm:$0xf] %v475
  %480 = vst [vmem:[%s3 + $0xc] sm:$0xf] %v476
  %v481 = vlaneseq
  %v482 = vshrl.u32 %v481, 7
  %v483 = vadd.s32 %v482, 8
  %v484 = vadd.s32 %v482, 16
  %v485 = vadd.s32 %v482, 24
  %s486 = smul.u32 0, 32
  %s487 = ssub.s32 32, %s486
  %v488 = vstv %s487
  %vm489 = vcmp.lt.s32.totalorder %v482, %v488
  %vm490 = vcmp.lt.s32.totalorder %v483, %v488
  %vm491 = vcmp.lt.s32.totalorder %v484, %v488
  %vm492 = vcmp.lt.s32.totalorder %v485, %v488
  %v493 = vsel %vm489, %v464, 0.0
  %v494 = vsel %vm490, %v466, 0.0
  %v495 = vsel %vm491, %v469, 0.0
  %v496 = vsel %vm492, %v471, 0.0
  %v497 = vadd.f32 %v493, %v494
  %v498 = vadd.f32 %v497, %v495
  %v499 = vadd.f32 %v498, %v496
  %v500 = vrot.slane %v499, 4
  %v501 = vadd.f32 %v499, %v500
  %v502 = vrot.slane %v501, 2
  %v503 = vadd.f32 %v501, %v502
  %v504 = vrot.slane %v503, 1
  %v505 = vadd.f32 %v503, %v504
  %v506 = vmul.f32 %v493, %v493
  %v507 = vmul.f32 %v494, %v494
  %v508 = vmul.f32 %v495, %v495
  %v509 = vmul.f32 %v496, %v496
  %v510 = vadd.f32 %v506, %v507
  %v511 = vadd.f32 %v510, %v508
  %v512 = vadd.f32 %v511, %v509
  %v513 = vrot.slane %v512, 4
  %v514 = vadd.f32 %v512, %v513
  %v515 = vrot.slane %v514, 2
  %v516 = vadd.f32 %v514, %v515
  %v517 = vrot.slane %v516, 1
  %v518 = vadd.f32 %v516, %v517
  %vm519 = vcmp.eq.s32.totalorder %v482, 0
  %vm520 = vcmp.eq.s32.totalorder %v482, 1
  %v521 = vsel %vm520, %v518, 0.0
  %v522 = vsel %vm519, %v505, %v521
  %523 = vst [vmem:[%s4] sm:$0xff] %v522
  // Predicated region
  $region14: #{unet_forward.10} parent=0 // pred_check
    _
  $region15: #{unet_forward.10} parent=0 // pred_check_branch
    %525 = sbr.rel (0) target = $region17
  $region16: #{unet_forward.10} parent=0 // pred_region
    _
  $region17: #{unet_forward.10} parent=0 // pred_fallthru
    _
  // Predicated region
  $region18: #{unet_forward.10} parent=0 // pred_check
    _
  $region19: #{unet_forward.10} parent=0 // pred_check_branch
    %527 = sbr.rel (0) target = $region21
  $region20: #{unet_forward.10} parent=0 // pred_region
    _
  $region21: #{unet_forward.10} parent=0 // pred_fallthru
    _
  // Predicated region
  $region22: #{unet_forward.10} parent=0 // pred_check
    _
  $region23: #{unet_forward.10} parent=0 // pred_check_branch
    %529 = sbr.rel (0) target = $region25
  $region24: #{unet_forward.10} parent=0 // pred_region
    _
  $region25: #{unet_forward.10} parent=0 // pred_fallthru
    _
  // Predicated region
  $region26: #{unet_forward.10} parent=0 // pred_check
    _
  $region27: #{unet_forward.10} parent=0 // pred_check_branch
    %531 = sbr.rel (0) target = $region29
  $region28: #{unet_forward.10} parent=0 // pred_region
    _
  $region29: #{unet_forward.10} parent=0 // pred_fallthru
    _

// kernel: unet_forward.11
$region0: #{unet_forward.11}
  #allocation0 [shape = 'u32[]', space=smem, size = 0x4, offset = 0x4, fixed_abs, tag = 'smem constant byte address 0x4 - core index']
  #allocation1 [shape = 'u32[72,128]{1,0:T(1,128)}', space=vmem, size = 0x9000, scoped, tag = 'internal scratch']
  %s0 = inlined_call_operand.vmem [shape: bf16[128,288], index: 0, kind: input, shape index: {}]
  %s1 = inlined_call_operand.vmem [shape: bf16[288,128], index: 1, kind: input, shape index: {}]
  %s2 = inlined_call_operand.vmem [shape: f32[1,128], index: 2, kind: input, shape index: {}]
  %s3 = inlined_call_operand.vmem [shape: f32[128,128], index: 3, kind: output, shape index: {0}]
  %s4 = inlined_call_operand.hbm [shape: f32[8,128], index: 4, kind: output, shape index: {1}]
  %5 = xla_tuple %s3, %s4
  %s6 = sld [smem:[#allocation0]]
  $region30: #{unet_forward.11} parent=0
    _
  %s8 = ssub.s32 1, %s6
  %s9 = scalar_select 0, %s8, %s6
  $region1: #{unet_forward.11} parent=0
    #allocation2 [shape = 'u8[4096]{0}', space=vmem, size = 0x1000, scoped, tag = 'output window, operand 1, single buffered']
    #allocation3 [shape = 's32[1]{0}', space=sflag, size = 0x4, scoped, tag = 'scoped memory for unet_forward.11']
    %10 = vsyncpa [#allocation3], 0
    // Predicated region
    $region2: #{unet_forward.11} parent=1 // pred_check
      _
    $region3: #{unet_forward.11} parent=1 // pred_check_branch
      %12 = sbr.rel (0) target = $region5
    $region4: #{unet_forward.11} parent=1 // pred_region
      _
    $region5: #{unet_forward.11} parent=1 // pred_fallthru
      _
    // Predicated region
    $region6: #{unet_forward.11} parent=1 // pred_check
      _
    $region7: #{unet_forward.11} parent=1 // pred_check_branch
      %14 = sbr.rel (0) target = $region9
    $region8: #{unet_forward.11} parent=1 // pred_region
      _
    $region9: #{unet_forward.11} parent=1 // pred_fallthru
      _
    // Predicated region
    $region10: #{unet_forward.11} parent=1 // pred_check
      _
    $region11: #{unet_forward.11} parent=1 // pred_check_branch
      %16 = sbr.rel (0) target = $region13
    $region12: #{unet_forward.11} parent=1 // pred_region
      _
    $region13: #{unet_forward.11} parent=1 // pred_fallthru
      _
    %v18 = vld [vmem:[%s0] sm:$0xff]
    %v19 = vld [vmem:[%s0 + $0x8] sm:$0xf]
    %v20 = vld [vmem:[%s0 + $0xc] sm:$0xff]
    %v21 = vld [vmem:[%s0 + $0x14] sm:$0xf]
    %v22 = vld [vmem:[%s0 + $0x18] sm:$0xff]
    %v23 = vld [vmem:[%s0 + $0x20] sm:$0xf]
    %v24 = vld [vmem:[%s0 + $0x24] sm:$0xff]
    %v25 = vld [vmem:[%s0 + $0x2c] sm:$0xf]
    %v26 = vld [vmem:[%s0 + $0x30] sm:$0xff]
    %v27 = vld [vmem:[%s0 + $0x38] sm:$0xf]
    %v28 = vld [vmem:[%s0 + $0x3c] sm:$0xff]
    %v29 = vld [vmem:[%s0 + $0x44] sm:$0xf]
    %v30 = vld [vmem:[%s0 + $0x48] sm:$0xff]
    %v31 = vld [vmem:[%s0 + $0x50] sm:$0xf]
    %v32 = vld [vmem:[%s0 + $0x54] sm:$0xff]
    %v33 = vld [vmem:[%s0 + $0x5c] sm:$0xf]
    %v34 = vld [vmem:[%s0 + $0x60] sm:$0xff]
    %v35 = vld [vmem:[%s0 + $0x68] sm:$0xf]
    %v36 = vld [vmem:[%s0 + $0x6c] sm:$0xff]
    %v37 = vld [vmem:[%s0 + $0x74] sm:$0xf]
    %v38 = vld [vmem:[%s0 + $0x78] sm:$0xff]
    %v39 = vld [vmem:[%s0 + $0x80] sm:$0xf]
    %v40 = vld [vmem:[%s0 + $0x84] sm:$0xff]
    %v41 = vld [vmem:[%s0 + $0x8c] sm:$0xf]
    %v42 = vld [vmem:[%s0 + $0x90] sm:$0xff]
    %v43 = vld [vmem:[%s0 + $0x98] sm:$0xf]
    %v44 = vld [vmem:[%s0 + $0x9c] sm:$0xff]
    %v45 = vld [vmem:[%s0 + $0xa4] sm:$0xf]
    %v46 = vld [vmem:[%s0 + $0xa8] sm:$0xff]
    %v47 = vld [vmem:[%s0 + $0xb0] sm:$0xf]
    %v48 = vld [vmem:[%s0 + $0xb4] sm:$0xff]
    %v49 = vld [vmem:[%s0 + $0xbc] sm:$0xf]
    %v50 = vunpack.c.l.bf16 %v18
    %v51 = vunpack.c.h.bf16 %v18
    %v52 = vunpack.c.l.bf16 %v19
    %v53 = vunpack.c.l.bf16 %v20
    %v54 = vunpack.c.h.bf16 %v20
    %v55 = vunpack.c.l.bf16 %v21
    %v56 = vunpack.c.l.bf16 %v22
    %v57 = vunpack.c.h.bf16 %v22
    %v58 = vunpack.c.l.bf16 %v23
    %v59 = vunpack.c.l.bf16 %v24
    %v60 = vunpack.c.h.bf16 %v24
    %v61 = vunpack.c.l.bf16 %v25
    %v62 = vunpack.c.l.bf16 %v26
    %v63 = vunpack.c.h.bf16 %v26
    %v64 = vunpack.c.l.bf16 %v27
    %v65 = vunpack.c.l.bf16 %v28
    %v66 = vunpack.c.h.bf16 %v28
    %v67 = vunpack.c.l.bf16 %v29
    %v68 = vunpack.c.l.bf16 %v30
    %v69 = vunpack.c.h.bf16 %v30
    %v70 = vunpack.c.l.bf16 %v31
    %v71 = vunpack.c.l.bf16 %v32
    %v72 = vunpack.c.h.bf16 %v32
    %v73 = vunpack.c.l.bf16 %v33
    %v74 = vunpack.c.l.bf16 %v34
    %v75 = vunpack.c.h.bf16 %v34
    %v76 = vunpack.c.l.bf16 %v35
    %v77 = vunpack.c.l.bf16 %v36
    %v78 = vunpack.c.h.bf16 %v36
    %v79 = vunpack.c.l.bf16 %v37
    %v80 = vunpack.c.l.bf16 %v38
    %v81 = vunpack.c.h.bf16 %v38
    %v82 = vunpack.c.l.bf16 %v39
    %v83 = vunpack.c.l.bf16 %v40
    %v84 = vunpack.c.h.bf16 %v40
    %v85 = vunpack.c.l.bf16 %v41
    %v86 = vunpack.c.l.bf16 %v42
    %v87 = vunpack.c.h.bf16 %v42
    %v88 = vunpack.c.l.bf16 %v43
    %v89 = vunpack.c.l.bf16 %v44
    %v90 = vunpack.c.h.bf16 %v44
    %v91 = vunpack.c.l.bf16 %v45
    %v92 = vunpack.c.l.bf16 %v46
    %v93 = vunpack.c.h.bf16 %v46
    %v94 = vunpack.c.l.bf16 %v47
    %v95 = vunpack.c.l.bf16 %v48
    %v96 = vunpack.c.h.bf16 %v48
    %v97 = vunpack.c.l.bf16 %v49
    %v98 = vmax.f32 %v50, 0.0
    %v99 = vmax.f32 %v51, 0.0
    %v100 = vmax.f32 %v52, 0.0
    %v101 = vmax.f32 %v53, 0.0
    %v102 = vmax.f32 %v54, 0.0
    %v103 = vmax.f32 %v55, 0.0
    %v104 = vmax.f32 %v56, 0.0
    %v105 = vmax.f32 %v57, 0.0
    %v106 = vmax.f32 %v58, 0.0
    %v107 = vmax.f32 %v59, 0.0
    %v108 = vmax.f32 %v60, 0.0
    %v109 = vmax.f32 %v61, 0.0
    %v110 = vmax.f32 %v62, 0.0
    %v111 = vmax.f32 %v63, 0.0
    %v112 = vmax.f32 %v64, 0.0
    %v113 = vmax.f32 %v65, 0.0
    %v114 = vmax.f32 %v66, 0.0
    %v115 = vmax.f32 %v67, 0.0
    %v116 = vmax.f32 %v68, 0.0
    %v117 = vmax.f32 %v69, 0.0
    %v118 = vmax.f32 %v70, 0.0
    %v119 = vmax.f32 %v71, 0.0
    %v120 = vmax.f32 %v72, 0.0
    %v121 = vmax.f32 %v73, 0.0
    %v122 = vmax.f32 %v74, 0.0
    %v123 = vmax.f32 %v75, 0.0
    %v124 = vmax.f32 %v76, 0.0
    %v125 = vmax.f32 %v77, 0.0
    %v126 = vmax.f32 %v78, 0.0
    %v127 = vmax.f32 %v79, 0.0
    %v128 = vmax.f32 %v80, 0.0
    %v129 = vmax.f32 %v81, 0.0
    %v130 = vmax.f32 %v82, 0.0
    %v131 = vmax.f32 %v83, 0.0
    %v132 = vmax.f32 %v84, 0.0
    %v133 = vmax.f32 %v85, 0.0
    %v134 = vmax.f32 %v86, 0.0
    %v135 = vmax.f32 %v87, 0.0
    %v136 = vmax.f32 %v88, 0.0
    %v137 = vmax.f32 %v89, 0.0
    %v138 = vmax.f32 %v90, 0.0
    %v139 = vmax.f32 %v91, 0.0
    %v140 = vmax.f32 %v92, 0.0
    %v141 = vmax.f32 %v93, 0.0
    %v142 = vmax.f32 %v94, 0.0
    %v143 = vmax.f32 %v95, 0.0
    %v144 = vmax.f32 %v96, 0.0
    %v145 = vmax.f32 %v97, 0.0
    %v146 = vpack.c.bf16 %v101, %v98
    %v147 = vpack.c.bf16 %v102, %v99
    %v148 = vpack.c.bf16 %v103, %v100
    %v149 = vpack.c.bf16 %v107, %v104
    %v150 = vpack.c.bf16 %v108, %v105
    %v151 = vpack.c.bf16 %v109, %v106
    %v152 = vpack.c.bf16 %v113, %v110
    %v153 = vpack.c.bf16 %v114, %v111
    %v154 = vpack.c.bf16 %v115, %v112
    %v155 = vpack.c.bf16 %v119, %v116
    %v156 = vpack.c.bf16 %v120, %v117
    %v157 = vpack.c.bf16 %v121, %v118
    %v158 = vpack.c.bf16 %v125, %v122
    %v159 = vpack.c.bf16 %v126, %v123
    %v160 = vpack.c.bf16 %v127, %v124
    %v161 = vpack.c.bf16 %v131, %v128
    %v162 = vpack.c.bf16 %v132, %v129
    %v163 = vpack.c.bf16 %v133, %v130
    %v164 = vpack.c.bf16 %v137, %v134
    %v165 = vpack.c.bf16 %v138, %v135
    %v166 = vpack.c.bf16 %v139, %v136
    %v167 = vpack.c.bf16 %v143, %v140
    %v168 = vpack.c.bf16 %v144, %v141
    %v169 = vpack.c.bf16 %v145, %v142
    %v170 = vld [vmem:[%s1] sm:$0xf]
    %v171 = vld [vmem:[%s1 + $0x4] sm:$0xf]
    %v172 = vld [vmem:[%s1 + $0x8] sm:$0xf]
    %v173 = vld [vmem:[%s1 + $0xc] sm:$0xf]
    %v174 = vld [vmem:[%s1 + $0x10] sm:$0xf]
    %v175 = vld [vmem:[%s1 + $0x14] sm:$0xf]
    %v176 = vld [vmem:[%s1 + $0x18] sm:$0xf]
    %v177 = vld [vmem:[%s1 + $0x1c] sm:$0xf]
    %v178 = vld [vmem:[%s1 + $0x20] sm:$0xf]
    %v179 = vld [vmem:[%s1 + $0x24] sm:$0xf]
    %v180 = vld [vmem:[%s1 + $0x28] sm:$0xf]
    %v181 = vld [vmem:[%s1 + $0x2c] sm:$0xf]
    %v182 = vld [vmem:[%s1 + $0x30] sm:$0xf]
    %v183 = vld [vmem:[%s1 + $0x34] sm:$0xf]
    %v184 = vld [vmem:[%s1 + $0x38] sm:$0xf]
    %v185 = vld [vmem:[%s1 + $0x3c] sm:$0xf]
    %v186 = vld [vmem:[%s1 + $0x40] sm:$0xf]
    %v187 = vld [vmem:[%s1 + $0x44] sm:$0xf]
    %v188 = vld [vmem:[%s1 + $0x48] sm:$0xf]
    %v189 = vld [vmem:[%s1 + $0x4c] sm:$0xf]
    %v190 = vld [vmem:[%s1 + $0x50] sm:$0xf]
    %v191 = vld [vmem:[%s1 + $0x54] sm:$0xf]
    %v192 = vld [vmem:[%s1 + $0x58] sm:$0xf]
    %v193 = vld [vmem:[%s1 + $0x5c] sm:$0xf]
    %v194 = vld [vmem:[%s1 + $0x60] sm:$0xf]
    %v195 = vld [vmem:[%s1 + $0x64] sm:$0xf]
    %v196 = vld [vmem:[%s1 + $0x68] sm:$0xf]
    %v197 = vld [vmem:[%s1 + $0x6c] sm:$0xf]
    %v198 = vld [vmem:[%s1 + $0x70] sm:$0xf]
    %v199 = vld [vmem:[%s1 + $0x74] sm:$0xf]
    %v200 = vld [vmem:[%s1 + $0x78] sm:$0xf]
    %v201 = vld [vmem:[%s1 + $0x7c] sm:$0xf]
    %v202 = vld [vmem:[%s1 + $0x80] sm:$0xf]
    %v203 = vld [vmem:[%s1 + $0x84] sm:$0xf]
    %v204 = vld [vmem:[%s1 + $0x88] sm:$0xf]
    %v205 = vld [vmem:[%s1 + $0x8c] sm:$0xf]
    %v206 = vld [vmem:[%s2] sm:$0x1]
    %v208 = vperm.slane %v206, 0
    %v246 = vunpack.c.l.b16 %v170
    %v247 = vunpack.c.l.b16 %v171
    %v248 = vunpack.c.l.b16 %v172
    %v249 = vunpack.c.l.b16 %v173
    %v250 = vunpack.c.l.b16 %v174
    %v251 = vunpack.c.l.b16 %v175
    %v252 = vunpack.c.l.b16 %v176
    %v253 = vunpack.c.l.b16 %v177
    %v254 = vunpack.c.l.b16 %v178
    %v255 = vunpack.c.l.b16 %v179
    %v256 = vunpack.c.l.b16 %v180
    %v257 = vunpack.c.l.b16 %v181
    %v258 = vunpack.c.l.b16 %v182
    %v259 = vunpack.c.l.b16 %v183
    %v260 = vunpack.c.l.b16 %v184
    %v261 = vunpack.c.l.b16 %v185
    %v262 = vunpack.c.l.b16 %v186
    %v263 = vunpack.c.l.b16 %v187
    %v264 = vunpack.c.l.b16 %v188
    %v265 = vunpack.c.l.b16 %v189
    %v266 = vunpack.c.l.b16 %v190
    %v267 = vunpack.c.l.b16 %v191
    %v268 = vunpack.c.l.b16 %v192
    %v269 = vunpack.c.l.b16 %v193
    %v270 = vunpack.c.l.b16 %v194
    %v271 = vunpack.c.l.b16 %v195
    %v272 = vunpack.c.l.b16 %v196
    %v273 = vunpack.c.l.b16 %v197
    %v274 = vunpack.c.l.b16 %v198
    %v275 = vunpack.c.l.b16 %v199
    %v276 = vunpack.c.l.b16 %v200
    %v277 = vunpack.c.l.b16 %v201
    %v278 = vunpack.c.l.b16 %v202
    %v279 = vunpack.c.l.b16 %v203
    %v280 = vunpack.c.l.b16 %v204
    %v281 = vunpack.c.l.b16 %v205
    %v282 = vpack.c.b16 %v247, %v246
    %v283 = vpack.c.b16 %v249, %v248
    %v284 = vpack.c.b16 %v251, %v250
    %v285 = vpack.c.b16 %v253, %v252
    %v286 = vpack.c.b16 %v255, %v254
    %v287 = vpack.c.b16 %v257, %v256
    %v288 = vpack.c.b16 %v259, %v258
    %v289 = vpack.c.b16 %v261, %v260
    %v290 = vpack.c.b16 %v263, %v262
    %v291 = vpack.c.b16 %v265, %v264
    %v292 = vpack.c.b16 %v267, %v266
    %v293 = vpack.c.b16 %v269, %v268
    %v294 = vpack.c.b16 %v271, %v270
    %v295 = vpack.c.b16 %v273, %v272
    %v296 = vpack.c.b16 %v275, %v274
    %v297 = vpack.c.b16 %v277, %v276
    %v298 = vpack.c.b16 %v279, %v278
    %v299 = vpack.c.b16 %v281, %v280
    %vm318 = vcmask 261120
    %v320 = vsel %vm318, %v148, 0
    %v323 = vsel %vm318, %v151, 0
    %v326 = vsel %vm318, %v154, 0
    %v329 = vsel %vm318, %v157, 0
    %v332 = vsel %vm318, %v160, 0
    %v335 = vsel %vm318, %v163, 0
    %v338 = vsel %vm318, %v166, 0
    %v341 = vsel %vm318, %v169, 0
    %343 = vmatpush.bf16.msra.mxu0 %v289
    %344 = vmatpush.bf16.msra.mxu0 %v288
    %345 = vmatpush.bf16.msra.mxu0 %v287
    %346 = vmatpush.bf16.msra.mxu0 %v286
    %347 = vmatpush.bf16.msra.mxu0 %v285
    %348 = vmatpush.bf16.msra.mxu0 %v284
    %349 = vmatpush.bf16.msra.mxu0 %v283
    %350 = vmatpush.bf16.msra.mxu0 %v282
    %351 = vmatmul.bf16.gmra.mxu0 %v146
    %v352 = vpop.f32.mrf.mxu0
    %v353 = vadd.f32 %v208, %v352
    %v354 = vpop.f32.mrf.mxu0
    %v355 = vadd.f32 %v208, %v354
    %356 = vmatmul.bf16.gmra.mxu0 %v149
    %v357 = vpop.f32.mrf.mxu0
    %v358 = vadd.f32 %v208, %v357
    %v359 = vpop.f32.mrf.mxu0
    %v360 = vadd.f32 %v208, %v359
    %361 = vmatmul.bf16.gmra.mxu0 %v152
    %v362 = vpop.f32.mrf.mxu0
    %v363 = vadd.f32 %v208, %v362
    %v364 = vpop.f32.mrf.mxu0
    %v365 = vadd.f32 %v208, %v364
    %366 = vmatmul.bf16.gmra.mxu0 %v155
    %v367 = vpop.f32.mrf.mxu0
    %v368 = vadd.f32 %v208, %v367
    %v369 = vpop.f32.mrf.mxu0
    %v370 = vadd.f32 %v208, %v369
    %371 = vmatmul.bf16.gmra.mxu0 %v158
    %v372 = vpop.f32.mrf.mxu0
    %v373 = vadd.f32 %v208, %v372
    %v374 = vpop.f32.mrf.mxu0
    %v375 = vadd.f32 %v208, %v374
    %376 = vmatmul.bf16.gmra.mxu0 %v161
    %v377 = vpop.f32.mrf.mxu0
    %v378 = vadd.f32 %v208, %v377
    %v379 = vpop.f32.mrf.mxu0
    %v380 = vadd.f32 %v208, %v379
    %381 = vmatmul.bf16.gmra.mxu0 %v164
    %v382 = vpop.f32.mrf.mxu0
    %v383 = vadd.f32 %v208, %v382
    %v384 = vpop.f32.mrf.mxu0
    %v385 = vadd.f32 %v208, %v384
    %386 = vmatmul.bf16.gmra.mxu0 %v167
    %v387 = vpop.f32.mrf.mxu0
    %v388 = vadd.f32 %v208, %v387
    %v389 = vpop.f32.mrf.mxu0
    %v390 = vadd.f32 %v208, %v389
    %391 = vdwg.mxu0
    %392 = vmatpush.bf16.msra.mxu0 %v297
    %393 = vmatpush.bf16.msra.mxu0 %v296
    %394 = vmatpush.bf16.msra.mxu0 %v295
    %395 = vmatpush.bf16.msra.mxu0 %v294
    %396 = vmatpush.bf16.msra.mxu0 %v293
    %397 = vmatpush.bf16.msra.mxu0 %v292
    %398 = vmatpush.bf16.msra.mxu0 %v291
    %399 = vmatpush.bf16.msra.mxu0 %v290
    %400 = vmatmul.bf16.gmra.mxu0 %v147
    %v401 = vpop.f32.mrf.mxu0
    %v402 = vadd.f32 %v353, %v401
    %v403 = vpop.f32.mrf.mxu0
    %v404 = vadd.f32 %v355, %v403
    %405 = vmatmul.bf16.gmra.mxu0 %v150
    %v406 = vpop.f32.mrf.mxu0
    %v407 = vadd.f32 %v358, %v406
    %v408 = vpop.f32.mrf.mxu0
    %v409 = vadd.f32 %v360, %v408
    %410 = vmatmul.bf16.gmra.mxu0 %v153
    %v411 = vpop.f32.mrf.mxu0
    %v412 = vadd.f32 %v363, %v411
    %v413 = vpop.f32.mrf.mxu0
    %v414 = vadd.f32 %v365, %v413
    %415 = vmatmul.bf16.gmra.mxu0 %v156
    %v416 = vpop.f32.mrf.mxu0
    %v417 = vadd.f32 %v368, %v416
    %v418 = vpop.f32.mrf.mxu0
    %v419 = vadd.f32 %v370, %v418
    %420 = vmatmul.bf16.gmra.mxu0 %v159
    %v421 = vpop.f32.mrf.mxu0
    %v422 = vadd.f32 %v373, %v421
    %v423 = vpop.f32.mrf.mxu0
    %v424 = vadd.f32 %v375, %v423
    %425 = vmatmul.bf16.gmra.mxu0 %v162
    %v426 = vpop.f32.mrf.mxu0
    %v427 = vadd.f32 %v378, %v426
    %v428 = vpop.f32.mrf.mxu0
    %v429 = vadd.f32 %v380, %v428
    %430 = vmatmul.bf16.gmra.mxu0 %v165
    %v431 = vpop.f32.mrf.mxu0
    %v432 = vadd.f32 %v383, %v431
    %v433 = vpop.f32.mrf.mxu0
    %v434 = vadd.f32 %v385, %v433
    %435 = vmatmul.bf16.gmra.mxu0 %v168
    %v436 = vpop.f32.mrf.mxu0
    %v437 = vadd.f32 %v388, %v436
    %v438 = vpop.f32.mrf.mxu0
    %v439 = vadd.f32 %v390, %v438
    %440 = vdwg.mxu0
    %441 = vmatpush.bf16.msra.mxu0 0
    %442 = vmatpush.bf16.msra.mxu0 0
    %443 = vmatpush.bf16.msra.mxu0 0
    %444 = vmatpush.bf16.msra.mxu0 0
    %445 = vmatpush.bf16.msra.mxu0 0
    %446 = vmatpush.bf16.msra.mxu0 0
    %447 = vmatpush.bf16.msra.mxu0 %v299
    %448 = vmatpush.bf16.msra.mxu0 %v298
    %449 = vmatmul.bf16.gmra.mxu0 %v320
    %v450 = vpop.f32.mrf.mxu0
    %v451 = vadd.f32 %v402, %v450
    %v452 = vpop.f32.mrf.mxu0
    %v453 = vadd.f32 %v404, %v452
    %454 = vmatmul.bf16.gmra.mxu0 %v323
    %v455 = vpop.f32.mrf.mxu0
    %v456 = vadd.f32 %v407, %v455
    %v457 = vpop.f32.mrf.mxu0
    %v458 = vadd.f32 %v409, %v457
    %459 = vmatmul.bf16.gmra.mxu0 %v326
    %v460 = vpop.f32.mrf.mxu0
    %v461 = vadd.f32 %v412, %v460
    %v462 = vpop.f32.mrf.mxu0
    %v463 = vadd.f32 %v414, %v462
    %464 = vmatmul.bf16.gmra.mxu0 %v329
    %v465 = vpop.f32.mrf.mxu0
    %v466 = vadd.f32 %v417, %v465
    %v467 = vpop.f32.mrf.mxu0
    %v468 = vadd.f32 %v419, %v467
    %469 = vmatmul.bf16.gmra.mxu0 %v332
    %v470 = vpop.f32.mrf.mxu0
    %v471 = vadd.f32 %v422, %v470
    %v472 = vpop.f32.mrf.mxu0
    %v473 = vadd.f32 %v424, %v472
    %474 = vmatmul.bf16.gmra.mxu0 %v335
    %v475 = vpop.f32.mrf.mxu0
    %v476 = vadd.f32 %v427, %v475
    %v477 = vpop.f32.mrf.mxu0
    %v478 = vadd.f32 %v429, %v477
    %479 = vmatmul.bf16.gmra.mxu0 %v338
    %v480 = vpop.f32.mrf.mxu0
    %v481 = vadd.f32 %v432, %v480
    %v482 = vpop.f32.mrf.mxu0
    %v483 = vadd.f32 %v434, %v482
    %484 = vmatmul.bf16.gmra.mxu0 %v341
    %v485 = vpop.f32.mrf.mxu0
    %v486 = vadd.f32 %v437, %v485
    %v487 = vpop.f32.mrf.mxu0
    %v488 = vadd.f32 %v439, %v487
    %489 = vdwg.mxu0
    %v490 = vtanh.pop %v451
    %v491 = vtanh.pop %v453
    %v492 = vtanh.pop %v456
    %v493 = vtanh.pop %v458
    %v494 = vtanh.pop %v461
    %v495 = vtanh.pop %v463
    %v496 = vtanh.pop %v466
    %v497 = vtanh.pop %v468
    %v498 = vtanh.pop %v471
    %v499 = vtanh.pop %v473
    %v500 = vtanh.pop %v476
    %v501 = vtanh.pop %v478
    %v502 = vtanh.pop %v481
    %v503 = vtanh.pop %v483
    %v504 = vtanh.pop %v486
    %v505 = vtanh.pop %v488
    %506 = vst [vmem:[%s3] sm:$0xff] %v490
    %507 = vst [vmem:[%s3 + $0x8] sm:$0xff] %v491
    %508 = vst [vmem:[%s3 + $0x10] sm:$0xff] %v492
    %509 = vst [vmem:[%s3 + $0x18] sm:$0xff] %v493
    %510 = vst [vmem:[%s3 + $0x20] sm:$0xff] %v494
    %511 = vst [vmem:[%s3 + $0x28] sm:$0xff] %v495
    %512 = vst [vmem:[%s3 + $0x30] sm:$0xff] %v496
    %513 = vst [vmem:[%s3 + $0x38] sm:$0xff] %v497
    %514 = vst [vmem:[%s3 + $0x40] sm:$0xff] %v498
    %515 = vst [vmem:[%s3 + $0x48] sm:$0xff] %v499
    %516 = vst [vmem:[%s3 + $0x50] sm:$0xff] %v500
    %517 = vst [vmem:[%s3 + $0x58] sm:$0xff] %v501
    %518 = vst [vmem:[%s3 + $0x60] sm:$0xff] %v502
    %519 = vst [vmem:[%s3 + $0x68] sm:$0xff] %v503
    %520 = vst [vmem:[%s3 + $0x70] sm:$0xff] %v504
    %521 = vst [vmem:[%s3 + $0x78] sm:$0xff] %v505
    %v522 = vlaneseq
    %v523 = vshrl.u32 %v522, 7
    %v524 = vadd.s32 %v523, 8
    %v525 = vadd.s32 %v523, 16
    %v526 = vadd.s32 %v523, 24
    %v527 = vadd.s32 %v523, 32
    %v528 = vadd.s32 %v523, 40
    %v529 = vadd.s32 %v523, 48
    %v530 = vadd.s32 %v523, 56
    %v531 = vadd.s32 %v523, 64
    %v532 = vadd.s32 %v523, 72
    %v533 = vadd.s32 %v523, 80
    %v534 = vadd.s32 %v523, 88
    %v535 = vadd.s32 %v523, 96
    %v536 = vadd.s32 %v523, 104
    %v537 = vadd.s32 %v523, 112
    %v538 = vadd.s32 %v523, 120
    %s539 = smul.u32 0, 128
    %s540 = ssub.s32 128, %s539
    %v541 = vstv %s540
    %vm542 = vcmp.lt.s32.totalorder %v523, %v541
    %vm543 = vcmp.lt.s32.totalorder %v524, %v541
    %vm544 = vcmp.lt.s32.totalorder %v525, %v541
    %vm545 = vcmp.lt.s32.totalorder %v526, %v541
    %vm546 = vcmp.lt.s32.totalorder %v527, %v541
    %vm547 = vcmp.lt.s32.totalorder %v528, %v541
    %vm548 = vcmp.lt.s32.totalorder %v529, %v541
    %vm549 = vcmp.lt.s32.totalorder %v530, %v541
    %vm550 = vcmp.lt.s32.totalorder %v531, %v541
    %vm551 = vcmp.lt.s32.totalorder %v532, %v541
    %vm552 = vcmp.lt.s32.totalorder %v533, %v541
    %vm553 = vcmp.lt.s32.totalorder %v534, %v541
    %vm554 = vcmp.lt.s32.totalorder %v535, %v541
    %vm555 = vcmp.lt.s32.totalorder %v536, %v541
    %vm556 = vcmp.lt.s32.totalorder %v537, %v541
    %vm557 = vcmp.lt.s32.totalorder %v538, %v541
    %v558 = vsel %vm542, %v490, 0.0
    %v559 = vsel %vm543, %v491, 0.0
    %v560 = vsel %vm544, %v492, 0.0
    %v561 = vsel %vm545, %v493, 0.0
    %v562 = vsel %vm546, %v494, 0.0
    %v563 = vsel %vm547, %v495, 0.0
    %v564 = vsel %vm548, %v496, 0.0
    %v565 = vsel %vm549, %v497, 0.0
    %v566 = vsel %vm550, %v498, 0.0
    %v567 = vsel %vm551, %v499, 0.0
    %v568 = vsel %vm552, %v500, 0.0
    %v569 = vsel %vm553, %v501, 0.0
    %v570 = vsel %vm554, %v502, 0.0
    %v571 = vsel %vm555, %v503, 0.0
    %v572 = vsel %vm556, %v504, 0.0
    %v573 = vsel %vm557, %v505, 0.0
    %v574 = vadd.f32 %v558, %v559
    %v575 = vadd.f32 %v574, %v560
    %v576 = vadd.f32 %v575, %v561
    %v577 = vadd.f32 %v576, %v562
    %v578 = vadd.f32 %v577, %v563
    %v579 = vadd.f32 %v578, %v564
    %v580 = vadd.f32 %v579, %v565
    %v581 = vadd.f32 %v580, %v566
    %v582 = vadd.f32 %v581, %v567
    %v583 = vadd.f32 %v582, %v568
    %v584 = vadd.f32 %v583, %v569
    %v585 = vadd.f32 %v584, %v570
    %v586 = vadd.f32 %v585, %v571
    %v587 = vadd.f32 %v586, %v572
    %v588 = vadd.f32 %v587, %v573
    %v589 = vrot.slane %v588, 4
    %v590 = vadd.f32 %v588, %v589
    %v591 = vrot.slane %v590, 2
    %v592 = vadd.f32 %v590, %v591
    %v593 = vrot.slane %v592, 1
    %v594 = vadd.f32 %v592, %v593
    %v595 = vmul.f32 %v558, %v558
    %v596 = vmul.f32 %v559, %v559
    %v597 = vmul.f32 %v560, %v560
    %v598 = vmul.f32 %v561, %v561
    %v599 = vmul.f32 %v562, %v562
    %v600 = vmul.f32 %v563, %v563
    %v601 = vmul.f32 %v564, %v564
    %v602 = vmul.f32 %v565, %v565
    %v603 = vmul.f32 %v566, %v566
    %v604 = vmul.f32 %v567, %v567
    %v605 = vmul.f32 %v568, %v568
    %v606 = vmul.f32 %v569, %v569
    %v607 = vmul.f32 %v570, %v570
    %v608 = vmul.f32 %v571, %v571
    %v609 = vmul.f32 %v572, %v572
    %v610 = vmul.f32 %v573, %v573
    %v611 = vadd.f32 %v595, %v596
    %v612 = vadd.f32 %v611, %v597
    %v613 = vadd.f32 %v612, %v598
    %v614 = vadd.f32 %v613, %v599
    %v615 = vadd.f32 %v614, %v600
    %v616 = vadd.f32 %v615, %v601
    %v617 = vadd.f32 %v616, %v602
    %v618 = vadd.f32 %v617, %v603
    %v619 = vadd.f32 %v618, %v604
    %v620 = vadd.f32 %v619, %v605
    %v621 = vadd.f32 %v620, %v606
    %v622 = vadd.f32 %v621, %v607
    %v623 = vadd.f32 %v622, %v608
    %v624 = vadd.f32 %v623, %v609
    %v625 = vadd.f32 %v624, %v610
    %v626 = vrot.slane %v625, 4
    %v627 = vadd.f32 %v625, %v626
    %v628 = vrot.slane %v627, 2
    %v629 = vadd.f32 %v627, %v628
    %v630 = vrot.slane %v629, 1
    %v631 = vadd.f32 %v629, %v630
    %vm632 = vcmp.eq.s32.totalorder %v523, 0
    %vm633 = vcmp.eq.s32.totalorder %v523, 1
    %v634 = vsel %vm633, %v631, 0.0
    %v635 = vsel %vm632, %v594, %v634
    %636 = vst [vmem:[#allocation2] sm:$0xff] %v635
    // Predicated region
    $region14: #{unet_forward.11} parent=1 // pred_check
      _
    $region15: #{unet_forward.11} parent=1 // pred_check_branch
      %638 = sbr.rel (0) target = $region17
    $region16: #{unet_forward.11} parent=1 // pred_region
      _
    $region17: #{unet_forward.11} parent=1 // pred_fallthru
      _
    // Predicated region
    $region18: #{unet_forward.11} parent=1 // pred_check
      _
    $region19: #{unet_forward.11} parent=1 // pred_check_branch
      %640 = sbr.rel (0) target = $region21
    $region20: #{unet_forward.11} parent=1 // pred_region
      %642 = vsyncadd [#allocation3], 0
      %s644 = sshll.u32 [#allocation2], 4
      %s645 = int_to_ptr.vmem [resolvable:$true] %s644
      %s646 = sshll.u32 %s4, 4
      %s647 = int_to_ptr.hbm [resolvable:$true] %s646
      %649 = dma.vmem_to_hbm [thread:$0]  %s645, 128, %s647, [#allocation3]
    $region21: #{unet_forward.11} parent=1 // pred_fallthru
      _
    // Predicated region
    $region22: #{unet_forward.11} parent=1 // pred_check
      _
    $region23: #{unet_forward.11} parent=1 // pred_check_branch
      %651 = sbr.rel (0) target = $region25
    $region24: #{unet_forward.11} parent=1 // pred_region
      _
    $region25: #{unet_forward.11} parent=1 // pred_fallthru
      _
    // Predicated region
    $region26: #{unet_forward.11} parent=1 // pred_check
      _
    $region27: #{unet_forward.11} parent=1 // pred_check_branch
      %653 = sbr.rel (0) target = $region29
    $region28: #{unet_forward.11} parent=1 // pred_region
      %655 = dma.done [#allocation3], 128
    $region29: #{unet_forward.11} parent=1 // pred_fallthru
      _
    %656 = vsyncpa [#allocation3], 1

</llo_original>
